<compile_context>
chip_gen: v6e
topology: v6e:2x2x1
jax: 0.10.0
libtpu: 0.0.40
codegen_flags: <defaults>
</compile_context>

<pallas_src>
import numpy as np
import jax
import jax.numpy as jnp
from jax import lax
from jax.experimental import pallas as pl
from jax.experimental.pallas import tpu as pltpu

# ----------------------------- configuration --------------------------------
B, NVARS = 2, 3          # batch, enc_in (number of variables)
H_TOK = 8                # tokens per variable (= total_token_number)
HIDDEN = 32              # hidden_size (C)
NH = 2                   # num_heads
HD = HIDDEN // NH        # head_dim
D_FF = 64
DP_RANK = 4
ALPHA = 0.3
ENC_IN = NVARS
BN_EPS = 1e-5

BN_SLICES = B * NVARS                  # number of (batch, nvar) attention slices (6)
R = BN_SLICES * H_TOK                  # token rows handled by the single grid step (48)
NPB = HIDDEN // HD                     # HD-wide column blocks of the odd reshape (== NH)

_P_KERNEL = jax.lax.Precision.DEFAULT  # single-pass bf16 MXU, f32 accumulation
_P_REF = jax.lax.Precision.HIGHEST


# --------------------------- packed-constant layout --------------------------
def _pack_layout():
    # every row count is a multiple of 8 -> all offsets stay sublane-aligned
    items = (('ema', R, R),                    # block-diag EMA, token score scale folded
             ('wqkv', HIDDEN, 3 * HIDDEN),     # q|k|v weights, hidden score scale folded
             ('bias', 8, 128),                 # all bias / BN scale-shift rows
             ('mask_tok', NH * R, NH * R),     # per-(head,slice) token-attention mask
             ('mask_hid', HIDDEN, HIDDEN),     # cross-head mask for hidden attention
             ('qg0', R, NH * R),               # row-gather matrices for the odd reshape
             ('qg1', R, NH * R),
             ('wbd_a', HIDDEN, 2 * D_FF),      # block-diag FFN-1st-layer weights (p=0)
             ('wbd_b', HIDDEN, 2 * D_FF),      # (p=1)
             ('wout', 2 * D_FF, HIDDEN))       # stacked FFN-2nd-layer weights
    layout, off = {}, 0
    for name, r, w in items:
        layout[name] = (off, r, w)
        off += r
    return layout, off


_LAYOUT, _CONST_ROWS = _pack_layout()


# ------------------------------ kernel helpers --------------------------------
def _dot(a, b):
    return jnp.dot(a, b, preferred_element_type=jnp.float32, precision=_P_KERNEL)


def _softmax_lastdim(s):
    m = jnp.max(s, axis=-1, keepdims=True)
    p = jnp.exp(s - m)
    return p * pl.reciprocal(jnp.sum(p, axis=-1, keepdims=True), approx=True)


def _gelu_exact(x):
    # nn.GELU() default: exact erf formulation
    return 0.5 * x * (1.0 + lax.erf(x * 0.7071067811865476))


# ------------------------------- fused kernel --------------------------------
def _fused_kernel(x_ref, c_ref, out_ref):
    def cst(name):
        o, r, w = _LAYOUT[name]
        return c_ref[o:o + r, 0:w]

    bias8 = c_ref[_LAYOUT['bias'][0]:_LAYOUT['bias'][0] + 8, :]   # (8,128), aligned

    def brow(row, w):
        return bias8[row:row + 1, 0:w]

    C = HIDDEN
    x = x_ref[...]                                    # (48, 32) rows = (slice, token)

    # EMA-smoothed input; the token-path score scale is folded into the EMA matrix
    xe = _dot(cst('ema'), x)                          # (48, 32)

    # fused qkv projection (heads side by side in columns; hidden-path score
    # scale already folded into the q/k weights & biases)
    qkv = _dot(x, cst('wqkv')) + brow(0, 3 * C)       # (48, 96) = q | k | v
    q_full = qkv[:, 0:C]
    k_full = qkv[:, C:2 * C]
    v_full = qkv[:, 2 * C:3 * C]

    # EMA-path q/k: same folded weights, EMA-scaled bias
    wq_off = _LAYOUT['wqkv'][0]
    eqk = _dot(xe, c_ref[wq_off:wq_off + C, 0:2 * C]) + brow(1, 2 * C)   # (48, 64)

    # head-stacked (NH*48, HD) layouts for the token path
    eq = jnp.concatenate([eqk[:, 0:HD], eqk[:, HD:C]], axis=0)           # (96, 16)
    ek = jnp.concatenate([eqk[:, C:C + HD], eqk[:, C + HD:2 * C]], axis=0)
    vcat = jnp.concatenate([v_full[:, 0:HD], v_full[:, HD:C]], axis=0)

    # ---- attention along tokens: all heads & slices in ONE masked matmul ----
    s_tok = lax.dot_general(eq, ek, (((1,), (1,)), ((), ())),
                            preferred_element_type=jnp.float32,
                            precision=_P_KERNEL) + cst('mask_tok')       # (96, 96)
    a_tok = _softmax_lastdim(s_tok)
    ycat1 = _dot(a_tok, vcat)                                            # (96, 16)

    # ---- attention along hidden dim: per-slice scores with a cross-head mask,
    #      ONE softmax over the row-stacked score blocks ----
    mask_h = cst('mask_hid')                                             # (32, 32)
    s_blk = []
    for s in range(BN_SLICES):
        r0 = s * H_TOK
        s_blk.append(lax.dot_general(q_full[r0:r0 + H_TOK, :],
                                     k_full[r0:r0 + H_TOK, :],
                                     (((0,), (0,)), ((), ())),
                                     preferred_element_type=jnp.float32,
                                     precision=_P_KERNEL) + mask_h)      # (32, 32)
    a_hid = _softmax_lastdim(jnp.concatenate(s_blk, axis=0))             # (192, 32)
    o_blk = []
    for s in range(BN_SLICES):
        o_blk.append(lax.dot_general(v_full[s * H_TOK:(s + 1) * H_TOK, :],
                                     a_hid[s * C:(s + 1) * C, :],
                                     (((1,), (1,)), ((), ())),
                                     preferred_element_type=jnp.float32,
                                     precision=_P_KERNEL))               # (8, 32)
    o_all = jnp.concatenate(o_blk, axis=0)                               # (48, 32)
    ycat2 = jnp.concatenate([o_all[:, 0:HD], o_all[:, HD:C]], axis=0)    # (96, 16)

    # ---- both FFNs (norm_post1/2 folded in).  The module's odd
    # (head, token, dim) -> (row, C) reshape is realised with the constant 0/1
    # row-gather matrices qg0/qg1 on the MXU. ----
    y2 = jnp.concatenate([ycat1, ycat2], axis=1)                         # (96, 32)
    z_a = _dot(y2, cst('wbd_a'))                                         # (96, 128)
    z_b = _dot(y2, cst('wbd_b'))                                         # (96, 128)
    h = brow(2, 2 * D_FF) + _dot(cst('qg0'), z_a) + _dot(cst('qg1'), z_b)  # (48, 128)
    f = _dot(_gelu_exact(h), cst('wout')) + brow(3, C)                   # (48, 32)

    y = x + f                                                            # residual
    out_ref[...] = y * brow(4, C) + brow(5, C)                           # norm_attn (eval BN)


# ------------------------ wrapper-side parameter prep -------------------------
def prepare_kernel_params(p):
    """Fold / re-layout every constant operand into ONE packed (504, 128) f32
    buffer -> a single prologue DMA instead of ~19."""
    C = HIDDEN
    a_qk = np.float32(H_TOK ** 0.25)                 # hidden-path score scale (sqrt(H) total)
    b_ema = np.float32(HD ** 0.25 / H_TOK ** 0.25)   # token-path score scale (sqrt(HD) total)

    buf = np.zeros((_CONST_ROWS, 128), np.float32)

    def put(name, a):
        o, r, w = _LAYOUT[name]
        a = np.asarray(a, np.float32)
        assert a.shape[0] <= r and a.shape[1] <= w, (name, a.shape)
        buf[o:o + a.shape[0], 0:a.shape[1]] = a

    # block-diagonal EMA over the 6 (batch, nvar) slices, score scale folded
    ema8 = np.asarray(p['ema'], np.float32)
    put('ema', np.kron(np.eye(BN_SLICES, dtype=np.float32), ema8) * b_ema)

    # qkv weights with the hidden-path score scale folded into q/k
    w = np.array(p['wqkv'], np.float32)              # (32, 96)
    w[:, 0:2 * C] *= a_qk
    put('wqkv', w)

    bias = np.zeros((8, 128), np.float32)
    b_f = np.array(p['bqkv'], np.float32)[0]         # (96,)
    b_f[0:2 * C] *= a_qk
    bias[0, 0:3 * C] = b_f                           # raw-path qkv bias
    # EMA rows sum to 1 -> the bias passes straight through; only the folded
    # score scale changes: EMA-path q/k bias = HD**0.25 * original bias
    bias[1, 0:2 * C] = b_f[0:2 * C] * b_ema

    # fold eval-mode BatchNorm (norm_post1/2) into the ff_* first layers
    def fold_ff(scale, shift, w1, b1):
        scale = np.asarray(scale, np.float32)[0]
        shift = np.asarray(shift, np.float32)[0]
        w1 = np.asarray(w1, np.float32)
        b1 = np.asarray(b1, np.float32)[0]
        return scale[:, None] * w1, b1 + shift @ w1   # (32, 64), (64,)

    w1s_1, b1a = fold_ff(p['bn1_scale'], p['bn1_shift'], p['ff1_w1'], p['ff1_b1'])
    w1s_2, b2a = fold_ff(p['bn2_scale'], p['bn2_shift'], p['ff2_w1'], p['ff2_b1'])

    # block-diagonal first-layer weights:
    #   [ycat1 | ycat2] @ wbd_p = [ycat1 @ w1s_1[block p] | ycat2 @ w1s_2[block p]]
    def wbd(pblk):
        wb = np.zeros((C, 2 * D_FF), np.float32)
        wb[0:HD, 0:D_FF] = w1s_1[pblk * HD:(pblk + 1) * HD, :]
        wb[HD:C, D_FF:2 * D_FF] = w1s_2[pblk * HD:(pblk + 1) * HD, :]
        return wb

    put('wbd_a', wbd(0))
    put('wbd_b', wbd(1))
    bias[2, 0:D_FF] = b1a
    bias[2, D_FF:2 * D_FF] = b2a
    bias[3, 0:C] = (np.asarray(p['ff1_b2'], np.float32)[0]
                    + np.asarray(p['ff2_b2'], np.float32)[0])
    bias[4, 0:C] = np.asarray(p['bna_scale'], np.float32)[0]
    bias[5, 0:C] = np.asarray(p['bna_shift'], np.float32)[0]
    put('bias', bias)

    # additive masks (stay f32; added to the f32 MXU accumulator)
    rows = np.arange(NH * R)
    put('mask_tok', np.where(rows[:, None] // H_TOK == rows[None, :] // H_TOK,
                             0.0, -1e30).astype(np.float32))
    e = np.arange(C)
    put('mask_hid', np.where(e[:, None] // HD == e[None, :] // HD,
                             0.0, -1e30).astype(np.float32))

    # constant row-gather matrices realising `output.reshape(B*nvars, -1, C)`
    qg = np.zeros((NPB, R, NH * R), np.float32)
    for pblk in range(NPB):
        for r in range(R):
            s, r_loc = divmod(r, H_TOK)
            flat = r_loc * C + pblk * HD
            h = flat // (H_TOK * HD)
            t = (flat % (H_TOK * HD)) // HD
            qg[pblk, r, h * R + s * H_TOK + t] = 1.0
    put('qg0', qg[0])
    put('qg1', qg[1])

    # stacked second-layer weights: gelu([h1|h2]) @ [ff1_w2; ff2_w2] = ff1+ff2
    put('wout', np.concatenate([np.asarray(p['ff1_w2'], np.float32),
                                np.asarray(p['ff2_w2'], np.float32)], axis=0))

    return jnp.asarray(buf)


def dual_attention_forward(src, consts):
    Bv, nv, H, C = src.shape
    x2d = src.reshape(Bv * nv * H, C)                 # (48, 32)
    out2d = pl.pallas_call(
        _fused_kernel,
        out_shape=jax.ShapeDtypeStruct((Bv * nv * H, C), jnp.float32),
        grid=(1,),                                    # single step (1 TC on v5e/v6e)
        in_specs=[pl.BlockSpec((Bv * nv * H, C), lambda i: (0, 0)),
                  pl.BlockSpec((_CONST_ROWS, 128), lambda i: (0, 0))],
        out_specs=pl.BlockSpec((Bv * nv * H, C), lambda i: (0, 0)),
    )(x2d, consts)
    return out2d.reshape(Bv, nv, H, C)


# --------------------------- pure-JAX reference -------------------------------
def reference(src, p):
    Bv, nv, H, C = src.shape
    qkv = jnp.einsum('bnhc,cd->bnhd', src, p['wqkv'], precision=_P_REF) + p['bqkv'][0]
    qkv = qkv.reshape(Bv, nv, H, 3, NH, HD).transpose(3, 0, 1, 4, 2, 5)
    q, k, v = qkv[0], qkv[1], qkv[2]
    E = p['ema']
    ema = lambda s: jnp.einsum('bnhad,ga->bnhgd', s, E, precision=_P_REF)

    # note: "* sqrt(d)" reproduces the module's "/ d**(-0.5)" quirk on purpose
    s_tok = jnp.einsum('bnhed,bnhfd->bnhef', ema(q), ema(k), precision=_P_REF) * (HD ** 0.5)
    a_tok = jax.nn.softmax(s_tok, axis=-1)
    o_tok = jnp.einsum('bnhef,bnhfd->bnhed', a_tok, v, precision=_P_REF)

    s_hid = jnp.einsum('bnhae,bnhaf->bnhef', q, k, precision=_P_REF) * (H ** 0.5)
    a_hid = jax.nn.softmax(s_hid, axis=-1)
    o_hid = jnp.einsum('bnhef,bnhaf->bnhae', a_hid, v, precision=_P_REF)

    out1 = o_tok.reshape(Bv * nv, -1, C) * p['bn1_scale'] + p['bn1_shift']
    out2 = o_hid.reshape(Bv * nv, -1, C) * p['bn2_scale'] + p['bn2_shift']
    out1 = out1.reshape(Bv, nv, -1, C)
    out2 = out2.reshape(Bv, nv, -1, C)

    def ff(x, w1, b1, w2, b2):
        h = _gelu_exact(jnp.einsum('...c,cd->...d', x, w1, precision=_P_REF) + b1[0])
        return jnp.einsum('...c,cd->...d', h, w2, precision=_P_REF) + b2[0]

    src2 = (ff(out1, p['ff1_w1'], p['ff1_b1'], p['ff1_w2'], p['ff1_b2'])
            + ff(out2, p['ff2_w1'], p['ff2_b1'], p['ff2_w2'], p['ff2_b2']))
    y = src + src2
    y = y.reshape(Bv * nv, -1, C) * p['bna_scale'] + p['bna_shift']
    return y.reshape(Bv, nv, -1, C)


# ------------------------------ parameter init --------------------------------
def make_ema_matrix():
    ema_size = max(ENC_IN, H_TOK, DP_RANK)
    E = np.zeros((ema_size, ema_size), np.float32)
    E[0, 0] = 1.0
    for i in range(1, H_TOK):
        for j in range(i):
            E[i, j] = E[i - 1, j] * (1.0 - ALPHA)
        E[i, i] = ALPHA
    return jnp.asarray(E[:H_TOK, :H_TOK])


def make_params():
    keys = jax.random.split(jax.random.PRNGKey(0), 24)
    it = iter(range(24))

    def nrm(shape, scale):
        return scale * jax.random.normal(keys[next(it)], shape, dtype=jnp.float32)

    def bn_fold():
        gamma = 1.0 + 0.1 * jax.random.normal(keys[next(it)], (1, HIDDEN), dtype=jnp.float32)
        beta = 0.1 * jax.random.normal(keys[next(it)], (1, HIDDEN), dtype=jnp.float32)
        mean = 0.1 * jax.random.normal(keys[next(it)], (1, HIDDEN), dtype=jnp.float32)
        var = 1.0 + 0.2 * jax.random.uniform(keys[next(it)], (1, HIDDEN), dtype=jnp.float32)
        scale = gamma / jnp.sqrt(var + BN_EPS)
        shift = beta - mean * scale
        return scale, shift

    p = {
        'wqkv': nrm((HIDDEN, 3 * HIDDEN), 0.08),
        'bqkv': nrm((1, 3 * HIDDEN), 0.02),
        'ema': make_ema_matrix(),
        'ff1_w1': nrm((HIDDEN, D_FF), 0.08),
        'ff1_b1': nrm((1, D_FF), 0.02),
        'ff1_w2': nrm((D_FF, HIDDEN), 0.08),
        'ff1_b2': nrm((1, HIDDEN), 0.02),
        'ff2_w1': nrm((HIDDEN, D_FF), 0.08),
        'ff2_b1': nrm((1, D_FF), 0.02),
        'ff2_w2': nrm((D_FF, HIDDEN), 0.08),
        'ff2_b2': nrm((1, HIDDEN), 0.02),
    }
    p['bn1_scale'], p['bn1_shift'] = bn_fold()
    p['bn2_scale'], p['bn2_shift'] = bn_fold()
    p['bna_scale'], p['bna_shift'] = bn_fold()
    return p


# ----------------------------------- main --------------------------------------
if __name__ == "__main__":
    params = make_params()
    consts = prepare_kernel_params(params)
    src = jax.random.normal(jax.random.PRNGKey(1), (B, NVARS, H_TOK, HIDDEN),
                            dtype=jnp.float32)

    out = jax.block_until_ready(dual_attention_forward(src, consts))
    assert out.shape == (B, NVARS, H_TOK, HIDDEN), out.shape

    ref = jax.block_until_ready(reference(src, params))
    # single-pass bf16 MXU (precision=DEFAULT) + approx softmax reciprocal vs.
    # a HIGHEST-precision f32 reference -> compare at bf16-level tolerance.
    np.testing.assert_allclose(np.asarray(out), np.asarray(ref), rtol=2e-2, atol=2e-2)

    print("KERNEL_OK")
</pallas_src>

<mosaic_0001>
module attributes {stable_mosaic.version = 11 : i64} {
  func.func @_fused_kernel(%arg0: i32, %arg1: memref<48x32xf32, #tpu.memory_space<vmem>>, %arg2: memref<504x128xf32, #tpu.memory_space<vmem>>, %arg3: memref<48x32xf32, #tpu.memory_space<vmem>>) attributes {dimension_semantics = [#tpu.dimension_semantics<arbitrary>], iteration_bounds = array<i64: 1>, scalar_prefetch = 0 : i64, scratch_operands = 0 : i64, tpu.core_type = #tpu.core_type<tc>, window_params = [{pipeline_mode = #tpu.pipeline_mode<synchronous>, transform_indices = @transform_0, window_bounds = array<i64: 48, 32>}, {pipeline_mode = #tpu.pipeline_mode<synchronous>, transform_indices = @transform_1, window_bounds = array<i64: 504, 128>}, {pipeline_mode = #tpu.pipeline_mode<synchronous>, transform_indices = @transform_2, window_bounds = array<i64: 48, 32>}]} {
    %c80 = arith.constant 80 : index
    %c0 = arith.constant 0 : index
    %0 = vector.load %arg2[%c80, %c0] : memref<504x128xf32, #tpu.memory_space<vmem>>, vector<8x128xf32>
    %c0_0 = arith.constant 0 : index
    %c0_1 = arith.constant 0 : index
    %1 = vector.load %arg1[%c0_0, %c0_1] : memref<48x32xf32, #tpu.memory_space<vmem>>, vector<48x32xf32>
    %c0_2 = arith.constant 0 : index
    %c0_3 = arith.constant 0 : index
    %2 = vector.load %arg2[%c0_2, %c0_3] : memref<504x128xf32, #tpu.memory_space<vmem>>, vector<48x48xf32>
    %cst = arith.constant dense<0.000000e+00> : vector<48x32xf32>
    %3 = tpu.matmul %2, %1, %cst {dimension_numbers = #tpu.dot_dimension_numbers<[1], [0], [0], [1], [0, 0, 1, 1], [], []>} : vector<48x48xf32>, vector<48x32xf32>, vector<48x32xf32> -> vector<48x32xf32>
    %c48 = arith.constant 48 : index
    %c0_4 = arith.constant 0 : index
    %4 = vector.load %arg2[%c48, %c0_4] : memref<504x128xf32, #tpu.memory_space<vmem>>, vector<32x96xf32>
    %cst_5 = arith.constant dense<0.000000e+00> : vector<48x96xf32>
    %5 = tpu.matmul %1, %4, %cst_5 {dimension_numbers = #tpu.dot_dimension_numbers<[1], [0], [0], [1], [0, 0, 1, 1], [], []>} : vector<48x32xf32>, vector<32x96xf32>, vector<48x96xf32> -> vector<48x96xf32>
    %6 = vector.extract_strided_slice %0 {offsets = [0, 0], sizes = [1, 96], strides = [1, 1]} : vector<8x128xf32> to vector<1x96xf32>
    %7 = vector.broadcast %6 : vector<1x96xf32> to vector<48x96xf32>
    %8 = arith.addf %5, %7 : vector<48x96xf32>
    %9 = vector.extract_strided_slice %8 {offsets = [0, 0], sizes = [48, 32], strides = [1, 1]} : vector<48x96xf32> to vector<48x32xf32>
    %10 = vector.extract_strided_slice %8 {offsets = [0, 32], sizes = [48, 32], strides = [1, 1]} : vector<48x96xf32> to vector<48x32xf32>
    %11 = vector.extract_strided_slice %8 {offsets = [0, 64], sizes = [48, 32], strides = [1, 1]} : vector<48x96xf32> to vector<48x32xf32>
    %c48_6 = arith.constant 48 : index
    %c0_7 = arith.constant 0 : index
    %12 = vector.load %arg2[%c48_6, %c0_7] : memref<504x128xf32, #tpu.memory_space<vmem>>, vector<32x64xf32>
    %cst_8 = arith.constant dense<0.000000e+00> : vector<48x64xf32>
    %13 = tpu.matmul %3, %12, %cst_8 {dimension_numbers = #tpu.dot_dimension_numbers<[1], [0], [0], [1], [0, 0, 1, 1], [], []>} : vector<48x32xf32>, vector<32x64xf32>, vector<48x64xf32> -> vector<48x64xf32>
    %14 = vector.extract_strided_slice %0 {offsets = [1, 0], sizes = [1, 64], strides = [1, 1]} : vector<8x128xf32> to vector<1x64xf32>
    %15 = vector.broadcast %14 : vector<1x64xf32> to vector<48x64xf32>
    %16 = arith.addf %13, %15 : vector<48x64xf32>
    %17 = vector.extract_strided_slice %16 {offsets = [0, 0], sizes = [48, 16], strides = [1, 1]} : vector<48x64xf32> to vector<48x16xf32>
    %18 = vector.extract_strided_slice %16 {offsets = [0, 16], sizes = [48, 16], strides = [1, 1]} : vector<48x64xf32> to vector<48x16xf32>
    %19 = tpu.concatenate %17, %18 in 0 : vector<48x16xf32>, vector<48x16xf32> -> vector<96x16xf32>
    %20 = vector.extract_strided_slice %16 {offsets = [0, 32], sizes = [48, 16], strides = [1, 1]} : vector<48x64xf32> to vector<48x16xf32>
    %21 = vector.extract_strided_slice %16 {offsets = [0, 48], sizes = [48, 16], strides = [1, 1]} : vector<48x64xf32> to vector<48x16xf32>
    %22 = tpu.concatenate %20, %21 in 0 : vector<48x16xf32>, vector<48x16xf32> -> vector<96x16xf32>
    %23 = vector.extract_strided_slice %11 {offsets = [0, 0], sizes = [48, 16], strides = [1, 1]} : vector<48x32xf32> to vector<48x16xf32>
    %24 = vector.extract_strided_slice %11 {offsets = [0, 16], sizes = [48, 16], strides = [1, 1]} : vector<48x32xf32> to vector<48x16xf32>
    %25 = tpu.concatenate %23, %24 in 0 : vector<48x16xf32>, vector<48x16xf32> -> vector<96x16xf32>
    %cst_9 = arith.constant dense<0.000000e+00> : vector<96x96xf32>
    %26 = tpu.matmul %19, %22, %cst_9 {dimension_numbers = #tpu.dot_dimension_numbers<[1], [1], [0], [0], [0, 0, 1, 0], [], []>} : vector<96x16xf32>, vector<96x16xf32>, vector<96x96xf32> -> vector<96x96xf32>
    %c88 = arith.constant 88 : index
    %c0_10 = arith.constant 0 : index
    %27 = vector.load %arg2[%c88, %c0_10] : memref<504x128xf32, #tpu.memory_space<vmem>>, vector<96x96xf32>
    %28 = arith.addf %26, %27 : vector<96x96xf32>
    %cst_11 = arith.constant dense<0xFF800000> : vector<96xf32>
    %29 = vector.multi_reduction <maximumf>, %28, %cst_11 [1] : vector<96x96xf32> to vector<96xf32>
    %30 = vector.shape_cast %29 : vector<96xf32> to vector<96x1xf32>
    %31 = vector.broadcast %30 : vector<96x1xf32> to vector<96x96xf32>
    %32 = arith.subf %28, %31 : vector<96x96xf32>
    %33 = math.exp %32 : vector<96x96xf32>
    %cst_12 = arith.constant dense<0.000000e+00> : vector<96xf32>
    %34 = vector.multi_reduction <add>, %33, %cst_12 [1] : vector<96x96xf32> to vector<96xf32>
    %35 = vector.shape_cast %34 : vector<96xf32> to vector<96x1xf32>
    %36 = tpu.reciprocal %35 {approx = true} : vector<96x1xf32> -> vector<96x1xf32>
    %37 = vector.broadcast %36 : vector<96x1xf32> to vector<96x96xf32>
    %38 = arith.mulf %33, %37 : vector<96x96xf32>
    %cst_13 = arith.constant dense<0.000000e+00> : vector<96x16xf32>
    %39 = tpu.matmul %38, %25, %cst_13 {dimension_numbers = #tpu.dot_dimension_numbers<[1], [0], [0], [1], [0, 0, 1, 1], [], []>} : vector<96x96xf32>, vector<96x16xf32>, vector<96x16xf32> -> vector<96x16xf32>
    %c184 = arith.constant 184 : index
    %c0_14 = arith.constant 0 : index
    %40 = vector.load %arg2[%c184, %c0_14] : memref<504x128xf32, #tpu.memory_space<vmem>>, vector<32x32xf32>
    %41 = vector.extract_strided_slice %9 {offsets = [0, 0], sizes = [8, 32], strides = [1, 1]} : vector<48x32xf32> to vector<8x32xf32>
    %42 = vector.extract_strided_slice %10 {offsets = [0, 0], sizes = [8, 32], strides = [1, 1]} : vector<48x32xf32> to vector<8x32xf32>
    %cst_15 = arith.constant dense<0.000000e+00> : vector<32x32xf32>
    %43 = tpu.matmul %41, %42, %cst_15 {dimension_numbers = #tpu.dot_dimension_numbers<[0], [0], [1], [1], [0, 1, 1, 1], [], []>} : vector<8x32xf32>, vector<8x32xf32>, vector<32x32xf32> -> vector<32x32xf32>
    %44 = arith.addf %43, %40 : vector<32x32xf32>
    %45 = vector.extract_strided_slice %9 {offsets = [8, 0], sizes = [8, 32], strides = [1, 1]} : vector<48x32xf32> to vector<8x32xf32>
    %46 = vector.extract_strided_slice %10 {offsets = [8, 0], sizes = [8, 32], strides = [1, 1]} : vector<48x32xf32> to vector<8x32xf32>
    %cst_16 = arith.constant dense<0.000000e+00> : vector<32x32xf32>
    %47 = tpu.matmul %45, %46, %cst_16 {dimension_numbers = #tpu.dot_dimension_numbers<[0], [0], [1], [1], [0, 1, 1, 1], [], []>} : vector<8x32xf32>, vector<8x32xf32>, vector<32x32xf32> -> vector<32x32xf32>
    %48 = arith.addf %47, %40 : vector<32x32xf32>
    %49 = vector.extract_strided_slice %9 {offsets = [16, 0], sizes = [8, 32], strides = [1, 1]} : vector<48x32xf32> to vector<8x32xf32>
    %50 = vector.extract_strided_slice %10 {offsets = [16, 0], sizes = [8, 32], strides = [1, 1]} : vector<48x32xf32> to vector<8x32xf32>
    %cst_17 = arith.constant dense<0.000000e+00> : vector<32x32xf32>
    %51 = tpu.matmul %49, %50, %cst_17 {dimension_numbers = #tpu.dot_dimension_numbers<[0], [0], [1], [1], [0, 1, 1, 1], [], []>} : vector<8x32xf32>, vector<8x32xf32>, vector<32x32xf32> -> vector<32x32xf32>
    %52 = arith.addf %51, %40 : vector<32x32xf32>
    %53 = vector.extract_strided_slice %9 {offsets = [24, 0], sizes = [8, 32], strides = [1, 1]} : vector<48x32xf32> to vector<8x32xf32>
    %54 = vector.extract_strided_slice %10 {offsets = [24, 0], sizes = [8, 32], strides = [1, 1]} : vector<48x32xf32> to vector<8x32xf32>
    %cst_18 = arith.constant dense<0.000000e+00> : vector<32x32xf32>
    %55 = tpu.matmul %53, %54, %cst_18 {dimension_numbers = #tpu.dot_dimension_numbers<[0], [0], [1], [1], [0, 1, 1, 1], [], []>} : vector<8x32xf32>, vector<8x32xf32>, vector<32x32xf32> -> vector<32x32xf32>
    %56 = arith.addf %55, %40 : vector<32x32xf32>
    %57 = vector.extract_strided_slice %9 {offsets = [32, 0], sizes = [8, 32], strides = [1, 1]} : vector<48x32xf32> to vector<8x32xf32>
    %58 = vector.extract_strided_slice %10 {offsets = [32, 0], sizes = [8, 32], strides = [1, 1]} : vector<48x32xf32> to vector<8x32xf32>
    %cst_19 = arith.constant dense<0.000000e+00> : vector<32x32xf32>
    %59 = tpu.matmul %57, %58, %cst_19 {dimension_numbers = #tpu.dot_dimension_numbers<[0], [0], [1], [1], [0, 1, 1, 1], [], []>} : vector<8x32xf32>, vector<8x32xf32>, vector<32x32xf32> -> vector<32x32xf32>
    %60 = arith.addf %59, %40 : vector<32x32xf32>
    %61 = vector.extract_strided_slice %9 {offsets = [40, 0], sizes = [8, 32], strides = [1, 1]} : vector<48x32xf32> to vector<8x32xf32>
    %62 = vector.extract_strided_slice %10 {offsets = [40, 0], sizes = [8, 32], strides = [1, 1]} : vector<48x32xf32> to vector<8x32xf32>
    %cst_20 = arith.constant dense<0.000000e+00> : vector<32x32xf32>
    %63 = tpu.matmul %61, %62, %cst_20 {dimension_numbers = #tpu.dot_dimension_numbers<[0], [0], [1], [1], [0, 1, 1, 1], [], []>} : vector<8x32xf32>, vector<8x32xf32>, vector<32x32xf32> -> vector<32x32xf32>
    %64 = arith.addf %63, %40 : vector<32x32xf32>
    %65 = tpu.concatenate %44, %48, %52, %56, %60, %64 in 0 : vector<32x32xf32>, vector<32x32xf32>, vector<32x32xf32>, vector<32x32xf32>, vector<32x32xf32>, vector<32x32xf32> -> vector<192x32xf32>
    %cst_21 = arith.constant dense<0xFF800000> : vector<192xf32>
    %66 = vector.multi_reduction <maximumf>, %65, %cst_21 [1] : vector<192x32xf32> to vector<192xf32>
    %67 = vector.shape_cast %66 : vector<192xf32> to vector<192x1xf32>
    %68 = vector.broadcast %67 : vector<192x1xf32> to vector<192x32xf32>
    %69 = arith.subf %65, %68 : vector<192x32xf32>
    %70 = math.exp %69 : vector<192x32xf32>
    %cst_22 = arith.constant dense<0.000000e+00> : vector<192xf32>
    %71 = vector.multi_reduction <add>, %70, %cst_22 [1] : vector<192x32xf32> to vector<192xf32>
    %72 = vector.shape_cast %71 : vector<192xf32> to vector<192x1xf32>
    %73 = tpu.reciprocal %72 {approx = true} : vector<192x1xf32> -> vector<192x1xf32>
    %74 = vector.broadcast %73 : vector<192x1xf32> to vector<192x32xf32>
    %75 = arith.mulf %70, %74 : vector<192x32xf32>
    %76 = vector.extract_strided_slice %11 {offsets = [0, 0], sizes = [8, 32], strides = [1, 1]} : vector<48x32xf32> to vector<8x32xf32>
    %77 = vector.extract_strided_slice %75 {offsets = [0, 0], sizes = [32, 32], strides = [1, 1]} : vector<192x32xf32> to vector<32x32xf32>
    %cst_23 = arith.constant dense<0.000000e+00> : vector<8x32xf32>
    %78 = tpu.matmul %76, %77, %cst_23 {dimension_numbers = #tpu.dot_dimension_numbers<[1], [1], [0], [0], [0, 0, 1, 0], [], []>} : vector<8x32xf32>, vector<32x32xf32>, vector<8x32xf32> -> vector<8x32xf32>
    %79 = vector.extract_strided_slice %11 {offsets = [8, 0], sizes = [8, 32], strides = [1, 1]} : vector<48x32xf32> to vector<8x32xf32>
    %80 = vector.extract_strided_slice %75 {offsets = [32, 0], sizes = [32, 32], strides = [1, 1]} : vector<192x32xf32> to vector<32x32xf32>
    %cst_24 = arith.constant dense<0.000000e+00> : vector<8x32xf32>
    %81 = tpu.matmul %79, %80, %cst_24 {dimension_numbers = #tpu.dot_dimension_numbers<[1], [1], [0], [0], [0, 0, 1, 0], [], []>} : vector<8x32xf32>, vector<32x32xf32>, vector<8x32xf32> -> vector<8x32xf32>
    %82 = vector.extract_strided_slice %11 {offsets = [16, 0], sizes = [8, 32], strides = [1, 1]} : vector<48x32xf32> to vector<8x32xf32>
    %83 = vector.extract_strided_slice %75 {offsets = [64, 0], sizes = [32, 32], strides = [1, 1]} : vector<192x32xf32> to vector<32x32xf32>
    %cst_25 = arith.constant dense<0.000000e+00> : vector<8x32xf32>
    %84 = tpu.matmul %82, %83, %cst_25 {dimension_numbers = #tpu.dot_dimension_numbers<[1], [1], [0], [0], [0, 0, 1, 0], [], []>} : vector<8x32xf32>, vector<32x32xf32>, vector<8x32xf32> -> vector<8x32xf32>
    %85 = vector.extract_strided_slice %11 {offsets = [24, 0], sizes = [8, 32], strides = [1, 1]} : vector<48x32xf32> to vector<8x32xf32>
    %86 = vector.extract_strided_slice %75 {offsets = [96, 0], sizes = [32, 32], strides = [1, 1]} : vector<192x32xf32> to vector<32x32xf32>
    %cst_26 = arith.constant dense<0.000000e+00> : vector<8x32xf32>
    %87 = tpu.matmul %85, %86, %cst_26 {dimension_numbers = #tpu.dot_dimension_numbers<[1], [1], [0], [0], [0, 0, 1, 0], [], []>} : vector<8x32xf32>, vector<32x32xf32>, vector<8x32xf32> -> vector<8x32xf32>
    %88 = vector.extract_strided_slice %11 {offsets = [32, 0], sizes = [8, 32], strides = [1, 1]} : vector<48x32xf32> to vector<8x32xf32>
    %89 = vector.extract_strided_slice %75 {offsets = [128, 0], sizes = [32, 32], strides = [1, 1]} : vector<192x32xf32> to vector<32x32xf32>
    %cst_27 = arith.constant dense<0.000000e+00> : vector<8x32xf32>
    %90 = tpu.matmul %88, %89, %cst_27 {dimension_numbers = #tpu.dot_dimension_numbers<[1], [1], [0], [0], [0, 0, 1, 0], [], []>} : vector<8x32xf32>, vector<32x32xf32>, vector<8x32xf32> -> vector<8x32xf32>
    %91 = vector.extract_strided_slice %11 {offsets = [40, 0], sizes = [8, 32], strides = [1, 1]} : vector<48x32xf32> to vector<8x32xf32>
    %92 = vector.extract_strided_slice %75 {offsets = [160, 0], sizes = [32, 32], strides = [1, 1]} : vector<192x32xf32> to vector<32x32xf32>
    %cst_28 = arith.constant dense<0.000000e+00> : vector<8x32xf32>
    %93 = tpu.matmul %91, %92, %cst_28 {dimension_numbers = #tpu.dot_dimension_numbers<[1], [1], [0], [0], [0, 0, 1, 0], [], []>} : vector<8x32xf32>, vector<32x32xf32>, vector<8x32xf32> -> vector<8x32xf32>
    %94 = tpu.concatenate %78, %81, %84, %87, %90, %93 in 0 : vector<8x32xf32>, vector<8x32xf32>, vector<8x32xf32>, vector<8x32xf32>, vector<8x32xf32>, vector<8x32xf32> -> vector<48x32xf32>
    %95 = vector.extract_strided_slice %94 {offsets = [0, 0], sizes = [48, 16], strides = [1, 1]} : vector<48x32xf32> to vector<48x16xf32>
    %96 = vector.extract_strided_slice %94 {offsets = [0, 16], sizes = [48, 16], strides = [1, 1]} : vector<48x32xf32> to vector<48x16xf32>
    %97 = tpu.concatenate %95, %96 in 0 : vector<48x16xf32>, vector<48x16xf32> -> vector<96x16xf32>
    %98 = tpu.concatenate %39, %97 in 1 : vector<96x16xf32>, vector<96x16xf32> -> vector<96x32xf32>
    %c312 = arith.constant 312 : index
    %c0_29 = arith.constant 0 : index
    %99 = vector.load %arg2[%c312, %c0_29] : memref<504x128xf32, #tpu.memory_space<vmem>>, vector<32x128xf32>
    %cst_30 = arith.constant dense<0.000000e+00> : vector<96x128xf32>
    %100 = tpu.matmul %98, %99, %cst_30 {dimension_numbers = #tpu.dot_dimension_numbers<[1], [0], [0], [1], [0, 0, 1, 1], [], []>} : vector<96x32xf32>, vector<32x128xf32>, vector<96x128xf32> -> vector<96x128xf32>
    %c344 = arith.constant 344 : index
    %c0_31 = arith.constant 0 : index
    %101 = vector.load %arg2[%c344, %c0_31] : memref<504x128xf32, #tpu.memory_space<vmem>>, vector<32x128xf32>
    %cst_32 = arith.constant dense<0.000000e+00> : vector<96x128xf32>
    %102 = tpu.matmul %98, %101, %cst_32 {dimension_numbers = #tpu.dot_dimension_numbers<[1], [0], [0], [1], [0, 0, 1, 1], [], []>} : vector<96x32xf32>, vector<32x128xf32>, vector<96x128xf32> -> vector<96x128xf32>
    %103 = vector.extract_strided_slice %0 {offsets = [2, 0], sizes = [1, 128], strides = [1, 1]} : vector<8x128xf32> to vector<1x128xf32>
    %c216 = arith.constant 216 : index
    %c0_33 = arith.constant 0 : index
    %104 = vector.load %arg2[%c216, %c0_33] : memref<504x128xf32, #tpu.memory_space<vmem>>, vector<48x96xf32>
    %cst_34 = arith.constant dense<0.000000e+00> : vector<48x128xf32>
    %105 = tpu.matmul %104, %100, %cst_34 {dimension_numbers = #tpu.dot_dimension_numbers<[1], [0], [0], [1], [0, 0, 1, 1], [], []>} : vector<48x96xf32>, vector<96x128xf32>, vector<48x128xf32> -> vector<48x128xf32>
    %106 = vector.broadcast %103 : vector<1x128xf32> to vector<48x128xf32>
    %107 = arith.addf %106, %105 : vector<48x128xf32>
    %c264 = arith.constant 264 : index
    %c0_35 = arith.constant 0 : index
    %108 = vector.load %arg2[%c264, %c0_35] : memref<504x128xf32, #tpu.memory_space<vmem>>, vector<48x96xf32>
    %cst_36 = arith.constant dense<0.000000e+00> : vector<48x128xf32>
    %109 = tpu.matmul %108, %102, %cst_36 {dimension_numbers = #tpu.dot_dimension_numbers<[1], [0], [0], [1], [0, 0, 1, 1], [], []>} : vector<48x96xf32>, vector<96x128xf32>, vector<48x128xf32> -> vector<48x128xf32>
    %110 = arith.addf %107, %109 : vector<48x128xf32>
    %cst_37 = arith.constant 5.000000e-01 : f32
    %111 = vector.broadcast %cst_37 : f32 to vector<48x128xf32>
    %112 = arith.mulf %111, %110 : vector<48x128xf32>
    %cst_38 = arith.constant 0.707106769 : f32
    %113 = vector.broadcast %cst_38 : f32 to vector<48x128xf32>
    %114 = arith.mulf %110, %113 : vector<48x128xf32>
    %115 = math.erf %114 : vector<48x128xf32>
    %cst_39 = arith.constant 1.000000e+00 : f32
    %116 = vector.broadcast %cst_39 : f32 to vector<48x128xf32>
    %117 = arith.addf %116, %115 : vector<48x128xf32>
    %118 = arith.mulf %112, %117 : vector<48x128xf32>
    %c376 = arith.constant 376 : index
    %c0_40 = arith.constant 0 : index
    %119 = vector.load %arg2[%c376, %c0_40] : memref<504x128xf32, #tpu.memory_space<vmem>>, vector<128x32xf32>
    %cst_41 = arith.constant dense<0.000000e+00> : vector<48x32xf32>
    %120 = tpu.matmul %118, %119, %cst_41 {dimension_numbers = #tpu.dot_dimension_numbers<[1], [0], [0], [1], [0, 0, 1, 1], [], []>} : vector<48x128xf32>, vector<128x32xf32>, vector<48x32xf32> -> vector<48x32xf32>
    %121 = vector.extract_strided_slice %0 {offsets = [3, 0], sizes = [1, 32], strides = [1, 1]} : vector<8x128xf32> to vector<1x32xf32>
    %122 = vector.broadcast %121 : vector<1x32xf32> to vector<48x32xf32>
    %123 = arith.addf %120, %122 : vector<48x32xf32>
    %124 = arith.addf %1, %123 : vector<48x32xf32>
    %125 = vector.extract_strided_slice %0 {offsets = [4, 0], sizes = [1, 32], strides = [1, 1]} : vector<8x128xf32> to vector<1x32xf32>
    %126 = vector.broadcast %125 : vector<1x32xf32> to vector<48x32xf32>
    %127 = arith.mulf %124, %126 : vector<48x32xf32>
    %128 = vector.extract_strided_slice %0 {offsets = [5, 0], sizes = [1, 32], strides = [1, 1]} : vector<8x128xf32> to vector<1x32xf32>
    %129 = vector.broadcast %128 : vector<1x32xf32> to vector<48x32xf32>
    %130 = arith.addf %127, %129 : vector<48x32xf32>
    %c0_42 = arith.constant 0 : index
    %c0_43 = arith.constant 0 : index
    %131 = vector.load %arg3[%c0_42, %c0_43] : memref<48x32xf32, #tpu.memory_space<vmem>>, vector<48x32xf32>
    tpu.vector_store %arg3[%c0_42, %c0_43], %130 {strides = array<i32>} : memref<48x32xf32, #tpu.memory_space<vmem>>, vector<48x32xf32>,
    return
  }
  func.func @transform_0(%arg0: i32) -> (i32, i32) {
    %c0_i32 = arith.constant 0 : i32
    %c0_i32_0 = arith.constant 0 : i32
    %c0_i32_1 = arith.constant 0 : i32
    return %c0_i32, %c0_i32_0 : i32, i32
  }
  func.func @transform_1(%arg0: i32) -> (i32, i32) {
    %c0_i32 = arith.constant 0 : i32
    %c0_i32_0 = arith.constant 0 : i32
    %c0_i32_1 = arith.constant 0 : i32
    return %c0_i32, %c0_i32_0 : i32, i32
  }
  func.func @transform_2(%arg0: i32) -> (i32, i32) {
    %c0_i32 = arith.constant 0 : i32
    %c0_i32_0 = arith.constant 0 : i32
    %c0_i32_1 = arith.constant 0 : i32
    return %c0_i32, %c0_i32_0 : i32, i32
  }
}

</mosaic_0001>

<llo_original>
// kernel: tpu_custom_call.1
$region0: #{tpu_custom_call.1}
  #allocation0 [shape = 'u32[]', space=smem, size = 0x4, offset = 0x4, fixed_abs, tag = 'smem constant byte address 0x4 - core index']
  #allocation1 [shape = 'u32[144,128]{1,0:T(1,128)}', space=vmem, size = 0x12000, scoped, tag = 'internal scratch']
  %s0 = inlined_call_operand.vmem [shape: f32[48,32], index: 0, kind: input, shape index: {}]
  %s1 = inlined_call_operand.hbm [shape: f32[504,128], index: 1, kind: input, shape index: {}]
  %s2 = inlined_call_operand.vmem [shape: f32[48,32], index: 2, kind: output, shape index: {}]
  %s3 = sld [smem:[#allocation0]]
  $region22: #{tpu_custom_call.1} parent=0
    _
  %s5 = ssub.s32 1, %s3
  %s6 = scalar_select 0, %s5, %s3
  $region1: #{tpu_custom_call.1} parent=0
    #allocation2 [shape = 'u8[258048]{0}', space=vmem, size = 0x3f000, scoped, tag = 'input window, operand 1, single buffered']
    #allocation3 [shape = 's32[1]{0}', space=sflag, size = 0x4, scoped, tag = 'scoped memory for tpu_custom_call.1']
    %7 = vsyncpa [#allocation3], 0
    // Predicated region
    $region2: #{tpu_custom_call.1} parent=1 // pred_check
      _
    $region3: #{tpu_custom_call.1} parent=1 // pred_check_branch
      %9 = sbr.rel (0) target = $region5
    $region4: #{tpu_custom_call.1} parent=1 // pred_region
      _
    $region5: #{tpu_custom_call.1} parent=1 // pred_fallthru
      _
    // Predicated region
    $region6: #{tpu_custom_call.1} parent=1 // pred_check
      _
    $region7: #{tpu_custom_call.1} parent=1 // pred_check_branch
      %11 = sbr.rel (0) target = $region9
    $region8: #{tpu_custom_call.1} parent=1 // pred_region
      %s13 = ssub.s32 8064, 8064
      %14 = vsyncadd [#allocation3], %s13
      %s15 = sshll.u32 [#allocation2], 4
      %s16 = int_to_ptr.vmem [resolvable:$true] %s15
      %21 = dma.hbm_to_vmem [thread:$0]  %s1, 8064, %s16, [#allocation3], 128, 128, 8
    $region9: #{tpu_custom_call.1} parent=1 // pred_fallthru
      _
    // Predicated region
    $region10: #{tpu_custom_call.1} parent=1 // pred_check
      _
    $region11: #{tpu_custom_call.1} parent=1 // pred_check_branch
      %23 = sbr.rel (0) target = $region13
    $region12: #{tpu_custom_call.1} parent=1 // pred_region
      %24 = dma.done [#allocation3], 8064
    $region13: #{tpu_custom_call.1} parent=1 // pred_fallthru
      _
    %v25 = vld [vmem:[#allocation2 + $0x50] sm:$0xff]
    %v26 = vld [vmem:[%s0] sm:$0xff]
    %v27 = vld [vmem:[%s0 + $0x8] sm:$0xff]
    %v28 = vld [vmem:[%s0 + $0x10] sm:$0xff]
    %v29 = vld [vmem:[%s0 + $0x18] sm:$0xff]
    %v30 = vld [vmem:[%s0 + $0x20] sm:$0xff]
    %v31 = vld [vmem:[%s0 + $0x28] sm:$0xff]
    %v32 = vld [vmem:[#allocation2] sm:$0xff]
    %v33 = vld [vmem:[#allocation2 + $0x8] sm:$0xff]
    %v34 = vld [vmem:[#allocation2 + $0x10] sm:$0xff]
    %v35 = vld [vmem:[#allocation2 + $0x18] sm:$0xff]
    %v36 = vld [vmem:[#allocation2 + $0x20] sm:$0xff]
    %v37 = vld [vmem:[#allocation2 + $0x28] sm:$0xff]
    %vm38 = vcmask 392192
    %v40 = vsel %vm38, %v32, 0
    %v43 = vsel %vm38, %v33, 0
    %v46 = vsel %vm38, %v34, 0
    %v49 = vsel %vm38, %v35, 0
    %v52 = vsel %vm38, %v36, 0
    %v55 = vsel %vm38, %v37, 0
    %57 = vmatprep.subr.mxu0 0.0
    %58 = vmatpush1.msra.mxu0 0.0
    %59 = vmatprep.subr.mxu0 0.0
    %60 = vmatpush1.msra.mxu0 0.0
    %61 = vmatprep.subr.mxu0 0.0
    %62 = vmatpush1.msra.mxu0 0.0
    %63 = vmatprep.subr.mxu0 0.0
    %64 = vmatpush1.msra.mxu0 0.0
    %65 = vmatprep.subr.mxu0 0.0
    %66 = vmatpush1.msra.mxu0 0.0
    %67 = vmatprep.subr.mxu0 0.0
    %68 = vmatpush1.msra.mxu0 0.0
    %69 = vmatprep.subr.mxu0 0.0
    %70 = vmatpush1.msra.mxu0 0.0
    %71 = vmatprep.subr.mxu0 0.0
    %72 = vmatpush1.msra.mxu0 0.0
    %73 = vmatprep.subr.mxu0 0.0
    %74 = vmatpush1.msra.mxu0 0.0
    %75 = vmatprep.subr.mxu0 0.0
    %76 = vmatpush1.msra.mxu0 0.0
    %77 = vmatprep.subr.mxu0 0.0
    %78 = vmatpush1.msra.mxu0 %v31
    %79 = vmatprep.subr.mxu0 0.0
    %80 = vmatpush1.msra.mxu0 %v30
    %81 = vmatprep.subr.mxu0 0.0
    %82 = vmatpush1.msra.mxu0 %v29
    %83 = vmatprep.subr.mxu0 0.0
    %84 = vmatpush1.msra.mxu0 %v28
    %85 = vmatprep.subr.mxu0 0.0
    %86 = vmatpush1.msra.mxu0 %v27
    %87 = vmatprep.subr.mxu0 0.0
    %88 = vmatpush1.msra.mxu0 %v26
    %89 = vmatprep.subr.mxu0 0.0
    %90 = vmatpush2.msra.mxu0 0.0
    %91 = vmatprep.subr.mxu0 0.0
    %92 = vmatpush2.msra.mxu0 0.0
    %93 = vmatprep.subr.mxu0 0.0
    %94 = vmatpush2.msra.mxu0 0.0
    %95 = vmatprep.subr.mxu0 0.0
    %96 = vmatpush2.msra.mxu0 0.0
    %97 = vmatprep.subr.mxu0 0.0
    %98 = vmatpush2.msra.mxu0 0.0
    %99 = vmatprep.subr.mxu0 0.0
    %100 = vmatpush2.msra.mxu0 0.0
    %101 = vmatprep.subr.mxu0 0.0
    %102 = vmatpush2.msra.mxu0 0.0
    %103 = vmatprep.subr.mxu0 0.0
    %104 = vmatpush2.msra.mxu0 0.0
    %105 = vmatprep.subr.mxu0 0.0
    %106 = vmatpush2.msra.mxu0 0.0
    %107 = vmatprep.subr.mxu0 0.0
    %108 = vmatpush2.msra.mxu0 0.0
    %109 = vmatprep.subr.mxu0 0.0
    %110 = vmatpush2.msra.mxu0 0.0
    %111 = vmatprep.subr.mxu0 0.0
    %112 = vmatpush2.msra.mxu0 0.0
    %113 = vmatprep.subr.mxu0 0.0
    %114 = vmatpush2.msra.mxu0 0.0
    %115 = vmatprep.subr.mxu0 0.0
    %116 = vmatpush2.msra.mxu0 0.0
    %117 = vmatprep.subr.mxu0 0.0
    %118 = vmatpush2.msra.mxu0 0.0
    %119 = vmatprep.subr.mxu0 0.0
    %120 = vmatpush2.msra.mxu0 0.0
    %121 = vmatprep.mubr.f32.mxu0 0.0
    %122 = vmatmul.mubr.f32.gmra.mxu0 %v40
    %v123 = vpop.f32.mrf.mxu0
    %v124 = vadd.f32 0.0, %v123
    %v125 = vpop.f32.mrf.mxu0
    %126 = vmatprep.mubr.f32.mxu0 0.0
    %127 = vmatmul.mubr.f32.gmra.mxu0 %v43
    %v128 = vpop.f32.mrf.mxu0
    %v129 = vadd.f32 0.0, %v128
    %v130 = vpop.f32.mrf.mxu0
    %131 = vmatprep.mubr.f32.mxu0 0.0
    %132 = vmatmul.mubr.f32.gmra.mxu0 %v46
    %v133 = vpop.f32.mrf.mxu0
    %v134 = vadd.f32 0.0, %v133
    %v135 = vpop.f32.mrf.mxu0
    %136 = vmatprep.mubr.f32.mxu0 0.0
    %137 = vmatmul.mubr.f32.gmra.mxu0 %v49
    %v138 = vpop.f32.mrf.mxu0
    %v139 = vadd.f32 0.0, %v138
    %v140 = vpop.f32.mrf.mxu0
    %141 = vmatprep.mubr.f32.mxu0 0.0
    %142 = vmatmul.mubr.f32.gmra.mxu0 %v52
    %v143 = vpop.f32.mrf.mxu0
    %v144 = vadd.f32 0.0, %v143
    %v145 = vpop.f32.mrf.mxu0
    %146 = vmatprep.mubr.f32.mxu0 0.0
    %147 = vmatmul.mubr.f32.gmra.mxu0 %v55
    %v148 = vpop.f32.mrf.mxu0
    %v149 = vadd.f32 0.0, %v148
    %v150 = vpop.f32.mrf.mxu0
    %151 = vdwg.mxu0
    %v152 = vld [vmem:[#allocation2 + $0x30] sm:$0xff]
    %v153 = vld [vmem:[#allocation2 + $0x38] sm:$0xff]
    %v154 = vld [vmem:[#allocation2 + $0x40] sm:$0xff]
    %v155 = vld [vmem:[#allocation2 + $0x48] sm:$0xff]
    %v156 = vlaneseq
    %v157 = vshrl.u32 %v156, 7
    %v158 = vsub.s32 0, %v157
    %v159 = vrot.slane %v25, %v158
    %vm160 = vcmask 261120
    %v162 = vsel %vm160, %v26, 0
    %v165 = vsel %vm160, %v27, 0
    %v168 = vsel %vm160, %v28, 0
    %v171 = vsel %vm160, %v29, 0
    %v174 = vsel %vm160, %v30, 0
    %v177 = vsel %vm160, %v31, 0
    %179 = vmatprep.subr.mxu0 0.0
    %180 = vmatpush1.msra.mxu0 0.0
    %181 = vmatprep.subr.mxu0 0.0
    %182 = vmatpush1.msra.mxu0 0.0
    %183 = vmatprep.subr.mxu0 0.0
    %184 = vmatpush1.msra.mxu0 0.0
    %185 = vmatprep.subr.mxu0 0.0
    %186 = vmatpush1.msra.mxu0 0.0
    %187 = vmatprep.subr.mxu0 0.0
    %188 = vmatpush1.msra.mxu0 0.0
    %189 = vmatprep.subr.mxu0 0.0
    %190 = vmatpush1.msra.mxu0 0.0
    %191 = vmatprep.subr.mxu0 0.0
    %192 = vmatpush1.msra.mxu0 0.0
    %193 = vmatprep.subr.mxu0 0.0
    %194 = vmatpush1.msra.mxu0 0.0
    %195 = vmatprep.subr.mxu0 0.0
    %196 = vmatpush1.msra.mxu0 0.0
    %197 = vmatprep.subr.mxu0 0.0
    %198 = vmatpush1.msra.mxu0 0.0
    %199 = vmatprep.subr.mxu0 0.0
    %200 = vmatpush1.msra.mxu0 0.0
    %201 = vmatprep.subr.mxu0 0.0
    %202 = vmatpush1.msra.mxu0 0.0
    %203 = vmatprep.subr.mxu0 0.0
    %204 = vmatpush1.msra.mxu0 %v155
    %205 = vmatprep.subr.mxu0 0.0
    %206 = vmatpush1.msra.mxu0 %v154
    %207 = vmatprep.subr.mxu0 0.0
    %208 = vmatpush1.msra.mxu0 %v153
    %209 = vmatprep.subr.mxu0 0.0
    %210 = vmatpush1.msra.mxu0 %v152
    %211 = vmatprep.subr.mxu0 0.0
    %212 = vmatpush2.msra.mxu0 0.0
    %213 = vmatprep.subr.mxu0 0.0
    %214 = vmatpush2.msra.mxu0 0.0
    %215 = vmatprep.subr.mxu0 0.0
    %216 = vmatpush2.msra.mxu0 0.0
    %217 = vmatprep.subr.mxu0 0.0
    %218 = vmatpush2.msra.mxu0 0.0
    %219 = vmatprep.subr.mxu0 0.0
    %220 = vmatpush2.msra.mxu0 0.0
    %221 = vmatprep.subr.mxu0 0.0
    %222 = vmatpush2.msra.mxu0 0.0
    %223 = vmatprep.subr.mxu0 0.0
    %224 = vmatpush2.msra.mxu0 0.0
    %225 = vmatprep.subr.mxu0 0.0
    %226 = vmatpush2.msra.mxu0 0.0
    %227 = vmatprep.subr.mxu0 0.0
    %228 = vmatpush2.msra.mxu0 0.0
    %229 = vmatprep.subr.mxu0 0.0
    %230 = vmatpush2.msra.mxu0 0.0
    %231 = vmatprep.subr.mxu0 0.0
    %232 = vmatpush2.msra.mxu0 0.0
    %233 = vmatprep.subr.mxu0 0.0
    %234 = vmatpush2.msra.mxu0 0.0
    %235 = vmatprep.subr.mxu0 0.0
    %236 = vmatpush2.msra.mxu0 0.0
    %237 = vmatprep.subr.mxu0 0.0
    %238 = vmatpush2.msra.mxu0 0.0
    %239 = vmatprep.subr.mxu0 0.0
    %240 = vmatpush2.msra.mxu0 0.0
    %241 = vmatprep.subr.mxu0 0.0
    %242 = vmatpush2.msra.mxu0 0.0
    %243 = vmatprep.mubr.f32.mxu0 0.0
    %244 = vmatmul.mubr.f32.gmra.mxu0 %v162
    %v245 = vpop.f32.mrf.mxu0
    %v246 = vadd.f32 %v159, %v245
    %v247 = vpop.f32.mrf.mxu0
    %248 = vmatprep.mubr.f32.mxu0 0.0
    %249 = vmatmul.mubr.f32.gmra.mxu0 %v165
    %v250 = vpop.f32.mrf.mxu0
    %v251 = vadd.f32 %v159, %v250
    %v252 = vpop.f32.mrf.mxu0
    %253 = vmatprep.mubr.f32.mxu0 0.0
    %254 = vmatmul.mubr.f32.gmra.mxu0 %v168
    %v255 = vpop.f32.mrf.mxu0
    %v256 = vadd.f32 %v159, %v255
    %v257 = vpop.f32.mrf.mxu0
    %258 = vmatprep.mubr.f32.mxu0 0.0
    %259 = vmatmul.mubr.f32.gmra.mxu0 %v171
    %v260 = vpop.f32.mrf.mxu0
    %v261 = vadd.f32 %v159, %v260
    %v262 = vpop.f32.mrf.mxu0
    %263 = vmatprep.mubr.f32.mxu0 0.0
    %264 = vmatmul.mubr.f32.gmra.mxu0 %v174
    %v265 = vpop.f32.mrf.mxu0
    %v266 = vadd.f32 %v159, %v265
    %v267 = vpop.f32.mrf.mxu0
    %268 = vmatprep.mubr.f32.mxu0 0.0
    %269 = vmatmul.mubr.f32.gmra.mxu0 %v177
    %v270 = vpop.f32.mrf.mxu0
    %v271 = vadd.f32 %v159, %v270
    %v272 = vpop.f32.mrf.mxu0
    %273 = vdwg.mxu0
    %v274 = vlaneseq
    %v275 = vshrl.u32 %v274, 7
    %v276 = vsub.s32 1, %v275
    %v277 = vrot.slane %v25, %v276
    %v279 = vsel %vm160, %v124, 0
    %v282 = vsel %vm160, %v129, 0
    %v285 = vsel %vm160, %v134, 0
    %v288 = vsel %vm160, %v139, 0
    %v291 = vsel %vm160, %v144, 0
    %v294 = vsel %vm160, %v149, 0
    %296 = vmatprep.subr.mxu0 0.0
    %297 = vmatpush1.msra.mxu0 0.0
    %298 = vmatprep.subr.mxu0 0.0
    %299 = vmatpush1.msra.mxu0 0.0
    %300 = vmatprep.subr.mxu0 0.0
    %301 = vmatpush1.msra.mxu0 0.0
    %302 = vmatprep.subr.mxu0 0.0
    %303 = vmatpush1.msra.mxu0 0.0
    %304 = vmatprep.subr.mxu0 0.0
    %305 = vmatpush1.msra.mxu0 0.0
    %306 = vmatprep.subr.mxu0 0.0
    %307 = vmatpush1.msra.mxu0 0.0
    %308 = vmatprep.subr.mxu0 0.0
    %309 = vmatpush1.msra.mxu0 0.0
    %310 = vmatprep.subr.mxu0 0.0
    %311 = vmatpush1.msra.mxu0 0.0
    %312 = vmatprep.subr.mxu0 0.0
    %313 = vmatpush1.msra.mxu0 0.0
    %314 = vmatprep.subr.mxu0 0.0
    %315 = vmatpush1.msra.mxu0 0.0
    %316 = vmatprep.subr.mxu0 0.0
    %317 = vmatpush1.msra.mxu0 0.0
    %318 = vmatprep.subr.mxu0 0.0
    %319 = vmatpush1.msra.mxu0 0.0
    %320 = vmatprep.subr.mxu0 0.0
    %321 = vmatpush1.msra.mxu0 %v155
    %322 = vmatprep.subr.mxu0 0.0
    %323 = vmatpush1.msra.mxu0 %v154
    %324 = vmatprep.subr.mxu0 0.0
    %325 = vmatpush1.msra.mxu0 %v153
    %326 = vmatprep.subr.mxu0 0.0
    %327 = vmatpush1.msra.mxu0 %v152
    %328 = vmatprep.subr.mxu0 0.0
    %329 = vmatpush2.msra.mxu0 0.0
    %330 = vmatprep.subr.mxu0 0.0
    %331 = vmatpush2.msra.mxu0 0.0
    %332 = vmatprep.subr.mxu0 0.0
    %333 = vmatpush2.msra.mxu0 0.0
    %334 = vmatprep.subr.mxu0 0.0
    %335 = vmatpush2.msra.mxu0 0.0
    %336 = vmatprep.subr.mxu0 0.0
    %337 = vmatpush2.msra.mxu0 0.0
    %338 = vmatprep.subr.mxu0 0.0
    %339 = vmatpush2.msra.mxu0 0.0
    %340 = vmatprep.subr.mxu0 0.0
    %341 = vmatpush2.msra.mxu0 0.0
    %342 = vmatprep.subr.mxu0 0.0
    %343 = vmatpush2.msra.mxu0 0.0
    %344 = vmatprep.subr.mxu0 0.0
    %345 = vmatpush2.msra.mxu0 0.0
    %346 = vmatprep.subr.mxu0 0.0
    %347 = vmatpush2.msra.mxu0 0.0
    %348 = vmatprep.subr.mxu0 0.0
    %349 = vmatpush2.msra.mxu0 0.0
    %350 = vmatprep.subr.mxu0 0.0
    %351 = vmatpush2.msra.mxu0 0.0
    %352 = vmatprep.subr.mxu0 0.0
    %353 = vmatpush2.msra.mxu0 0.0
    %354 = vmatprep.subr.mxu0 0.0
    %355 = vmatpush2.msra.mxu0 0.0
    %356 = vmatprep.subr.mxu0 0.0
    %357 = vmatpush2.msra.mxu0 0.0
    %358 = vmatprep.subr.mxu0 0.0
    %359 = vmatpush2.msra.mxu0 0.0
    %360 = vmatprep.mubr.f32.mxu0 0.0
    %361 = vmatmul.mubr.f32.gmra.mxu0 %v279
    %v362 = vpop.f32.mrf.mxu0
    %v363 = vadd.f32 %v277, %v362
    %v364 = vpop.f32.mrf.mxu0
    %365 = vmatprep.mubr.f32.mxu0 0.0
    %366 = vmatmul.mubr.f32.gmra.mxu0 %v282
    %v367 = vpop.f32.mrf.mxu0
    %v368 = vadd.f32 %v277, %v367
    %v369 = vpop.f32.mrf.mxu0
    %370 = vmatprep.mubr.f32.mxu0 0.0
    %371 = vmatmul.mubr.f32.gmra.mxu0 %v285
    %v372 = vpop.f32.mrf.mxu0
    %v373 = vadd.f32 %v277, %v372
    %v374 = vpop.f32.mrf.mxu0
    %375 = vmatprep.mubr.f32.mxu0 0.0
    %376 = vmatmul.mubr.f32.gmra.mxu0 %v288
    %v377 = vpop.f32.mrf.mxu0
    %v378 = vadd.f32 %v277, %v377
    %v379 = vpop.f32.mrf.mxu0
    %380 = vmatprep.mubr.f32.mxu0 0.0
    %381 = vmatmul.mubr.f32.gmra.mxu0 %v291
    %v382 = vpop.f32.mrf.mxu0
    %v383 = vadd.f32 %v277, %v382
    %v384 = vpop.f32.mrf.mxu0
    %385 = vmatprep.mubr.f32.mxu0 0.0
    %386 = vmatmul.mubr.f32.gmra.mxu0 %v294
    %v387 = vpop.f32.mrf.mxu0
    %v388 = vadd.f32 %v277, %v387
    %v389 = vpop.f32.mrf.mxu0
    %390 = vdwg.mxu0
    %397 = vrot.lane.b32.xlu0 %v363, 112
    %v398 = vpop.permute.xlu0 %397
    %399 = vrot.lane.b32.xlu0 %v368, 112
    %v400 = vpop.permute.xlu0 %399
    %401 = vrot.lane.b32.xlu0 %v373, 112
    %v402 = vpop.permute.xlu0 %401
    %403 = vrot.lane.b32.xlu0 %v378, 112
    %v404 = vpop.permute.xlu0 %403
    %405 = vrot.lane.b32.xlu0 %v383, 112
    %v406 = vpop.permute.xlu0 %405
    %407 = vrot.lane.b32.xlu0 %v388, 112
    %v408 = vpop.permute.xlu0 %407
    %415 = vrot.lane.b32.xlu0 %v246, 112
    %v416 = vpop.permute.xlu0 %415
    %417 = vrot.lane.b32.xlu0 %v251, 112
    %v418 = vpop.permute.xlu0 %417
    %419 = vrot.lane.b32.xlu0 %v256, 112
    %v420 = vpop.permute.xlu0 %419
    %421 = vrot.lane.b32.xlu0 %v261, 112
    %v422 = vpop.permute.xlu0 %421
    %423 = vrot.lane.b32.xlu0 %v266, 112
    %v424 = vpop.permute.xlu0 %423
    %425 = vrot.lane.b32.xlu0 %v271, 112
    %v426 = vpop.permute.xlu0 %425
    %v427 = vld [vmem:[#allocation2 + $0x58] sm:$0xff]
    %v428 = vld [vmem:[#allocation2 + $0x60] sm:$0xff]
    %v429 = vld [vmem:[#allocation2 + $0x68] sm:$0xff]
    %v430 = vld [vmem:[#allocation2 + $0x70] sm:$0xff]
    %v431 = vld [vmem:[#allocation2 + $0x78] sm:$0xff]
    %v432 = vld [vmem:[#allocation2 + $0x80] sm:$0xff]
    %v433 = vld [vmem:[#allocation2 + $0x88] sm:$0xff]
    %v434 = vld [vmem:[#allocation2 + $0x90] sm:$0xff]
    %v435 = vld [vmem:[#allocation2 + $0x98] sm:$0xff]
    %v436 = vld [vmem:[#allocation2 + $0xa0] sm:$0xff]
    %v437 = vld [vmem:[#allocation2 + $0xa8] sm:$0xff]
    %v438 = vld [vmem:[#allocation2 + $0xb0] sm:$0xff]
    %439 = vrot.lane.b32.xlu0 %v363, 96
    %v440 = vpop.permute.xlu0 %439
    %441 = vrot.lane.b32.xlu0 %v368, 96
    %v442 = vpop.permute.xlu0 %441
    %443 = vrot.lane.b32.xlu0 %v373, 96
    %v444 = vpop.permute.xlu0 %443
    %445 = vrot.lane.b32.xlu0 %v378, 96
    %v446 = vpop.permute.xlu0 %445
    %447 = vrot.lane.b32.xlu0 %v383, 96
    %v448 = vpop.permute.xlu0 %447
    %449 = vrot.lane.b32.xlu0 %v388, 96
    %v450 = vpop.permute.xlu0 %449
    %451 = vrot.lane.b32.xlu0 %v398, 96
    %v452 = vpop.permute.xlu0 %451
    %453 = vrot.lane.b32.xlu0 %v400, 96
    %v454 = vpop.permute.xlu0 %453
    %455 = vrot.lane.b32.xlu0 %v402, 96
    %v456 = vpop.permute.xlu0 %455
    %457 = vrot.lane.b32.xlu0 %v404, 96
    %v458 = vpop.permute.xlu0 %457
    %459 = vrot.lane.b32.xlu0 %v406, 96
    %v460 = vpop.permute.xlu0 %459
    %461 = vrot.lane.b32.xlu0 %v408, 96
    %v462 = vpop.permute.xlu0 %461
    %vm463 = vcmask 130048
    %v464 = vsel %vm463, %v363, 0
    %v466 = vsel %vm463, %v368, 0
    %v468 = vsel %vm463, %v373, 0
    %v470 = vsel %vm463, %v378, 0
    %v472 = vsel %vm463, %v383, 0
    %v474 = vsel %vm463, %v388, 0
    %v476 = vsel %vm463, %v398, 0
    %v478 = vsel %vm463, %v400, 0
    %v480 = vsel %vm463, %v402, 0
    %v482 = vsel %vm463, %v404, 0
    %v484 = vsel %vm463, %v406, 0
    %v486 = vsel %vm463, %v408, 0
    %v488 = vsel %vm463, %v440, 0
    %v490 = vsel %vm463, %v442, 0
    %v492 = vsel %vm463, %v444, 0
    %v494 = vsel %vm463, %v446, 0
    %v496 = vsel %vm463, %v448, 0
    %v498 = vsel %vm463, %v450, 0
    %v500 = vsel %vm463, %v452, 0
    %v502 = vsel %vm463, %v454, 0
    %v504 = vsel %vm463, %v456, 0
    %v506 = vsel %vm463, %v458, 0
    %v508 = vsel %vm463, %v460, 0
    %v510 = vsel %vm463, %v462, 0
    %512 = vmatprep.subr.mxu0 0.0
    %513 = vmatpush1.xpose.msra.mxu0 0.0
    %514 = vmatprep.subr.mxu0 0.0
    %515 = vmatpush1.xpose.msra.mxu0 0.0
    %516 = vmatprep.subr.mxu0 0.0
    %517 = vmatpush1.xpose.msra.mxu0 0.0
    %518 = vmatprep.subr.mxu0 0.0
    %519 = vmatpush1.xpose.msra.mxu0 0.0
    %520 = vmatprep.subr.mxu0 0.0
    %521 = vmatpush1.xpose.msra.mxu0 %v510
    %522 = vmatprep.subr.mxu0 0.0
    %523 = vmatpush1.xpose.msra.mxu0 %v508
    %524 = vmatprep.subr.mxu0 0.0
    %525 = vmatpush1.xpose.msra.mxu0 %v506
    %526 = vmatprep.subr.mxu0 0.0
    %527 = vmatpush1.xpose.msra.mxu0 %v504
    %528 = vmatprep.subr.mxu0 0.0
    %529 = vmatpush1.xpose.msra.mxu0 %v502
    %530 = vmatprep.subr.mxu0 0.0
    %531 = vmatpush1.xpose.msra.mxu0 %v500
    %532 = vmatprep.subr.mxu0 0.0
    %533 = vmatpush1.xpose.msra.mxu0 %v498
    %534 = vmatprep.subr.mxu0 0.0
    %535 = vmatpush1.xpose.msra.mxu0 %v496
    %536 = vmatprep.subr.mxu0 0.0
    %537 = vmatpush1.xpose.msra.mxu0 %v494
    %538 = vmatprep.subr.mxu0 0.0
    %539 = vmatpush1.xpose.msra.mxu0 %v492
    %540 = vmatprep.subr.mxu0 0.0
    %541 = vmatpush1.xpose.msra.mxu0 %v490
    %542 = vmatprep.subr.mxu0 0.0
    %543 = vmatpush1.xpose.msra.mxu0 %v488
    %544 = vmatprep.subr.mxu0 0.0
    %545 = vmatpush2.xpose.msra.mxu0 0.0
    %546 = vmatprep.subr.mxu0 0.0
    %547 = vmatpush2.xpose.msra.mxu0 0.0
    %548 = vmatprep.subr.mxu0 0.0
    %549 = vmatpush2.xpose.msra.mxu0 0.0
    %550 = vmatprep.subr.mxu0 0.0
    %551 = vmatpush2.xpose.msra.mxu0 0.0
    %552 = vmatprep.subr.mxu0 0.0
    %553 = vmatpush2.xpose.msra.mxu0 0.0
    %554 = vmatprep.subr.mxu0 0.0
    %555 = vmatpush2.xpose.msra.mxu0 0.0
    %556 = vmatprep.subr.mxu0 0.0
    %557 = vmatpush2.xpose.msra.mxu0 0.0
    %558 = vmatprep.subr.mxu0 0.0
    %559 = vmatpush2.xpose.msra.mxu0 0.0
    %560 = vmatprep.subr.mxu0 0.0
    %561 = vmatpush2.xpose.msra.mxu0 0.0
    %562 = vmatprep.subr.mxu0 0.0
    %563 = vmatpush2.xpose.msra.mxu0 0.0
    %564 = vmatprep.subr.mxu0 0.0
    %565 = vmatpush2.xpose.msra.mxu0 0.0
    %566 = vmatprep.subr.mxu0 0.0
    %567 = vmatpush2.xpose.msra.mxu0 0.0
    %568 = vmatprep.subr.mxu0 0.0
    %569 = vmatpush2.xpose.msra.mxu0 0.0
    %570 = vmatprep.subr.mxu0 0.0
    %571 = vmatpush2.xpose.msra.mxu0 0.0
    %572 = vmatprep.subr.mxu0 0.0
    %573 = vmatpush2.xpose.msra.mxu0 0.0
    %574 = vmatprep.subr.mxu0 0.0
    %575 = vmatpush2.xpose.msra.mxu0 0.0
    %576 = vmatprep.mubr.f32.mxu0 0.0
    %577 = vmatmul.mubr.f32.gmra.mxu0 %v464
    %v578 = vpop.f32.mrf.mxu0
    %v579 = vadd.f32 %v427, %v578
    %v580 = vpop.f32.mrf.mxu0
    %581 = vmatprep.mubr.f32.mxu0 0.0
    %582 = vmatmul.mubr.f32.gmra.mxu0 %v466
    %v583 = vpop.f32.mrf.mxu0
    %v584 = vadd.f32 %v428, %v583
    %v585 = vpop.f32.mrf.mxu0
    %586 = vmatprep.mubr.f32.mxu0 0.0
    %587 = vmatmul.mubr.f32.gmra.mxu0 %v468
    %v588 = vpop.f32.mrf.mxu0
    %v589 = vadd.f32 %v429, %v588
    %v590 = vpop.f32.mrf.mxu0
    %591 = vmatprep.mubr.f32.mxu0 0.0
    %592 = vmatmul.mubr.f32.gmra.mxu0 %v470
    %v593 = vpop.f32.mrf.mxu0
    %v594 = vadd.f32 %v430, %v593
    %v595 = vpop.f32.mrf.mxu0
    %596 = vmatprep.mubr.f32.mxu0 0.0
    %597 = vmatmul.mubr.f32.gmra.mxu0 %v472
    %v598 = vpop.f32.mrf.mxu0
    %v599 = vadd.f32 %v431, %v598
    %v600 = vpop.f32.mrf.mxu0
    %601 = vmatprep.mubr.f32.mxu0 0.0
    %602 = vmatmul.mubr.f32.gmra.mxu0 %v474
    %v603 = vpop.f32.mrf.mxu0
    %v604 = vadd.f32 %v432, %v603
    %v605 = vpop.f32.mrf.mxu0
    %606 = vmatprep.mubr.f32.mxu0 0.0
    %607 = vmatmul.mubr.f32.gmra.mxu0 %v476
    %v608 = vpop.f32.mrf.mxu0
    %v609 = vadd.f32 %v433, %v608
    %v610 = vpop.f32.mrf.mxu0
    %611 = vmatprep.mubr.f32.mxu0 0.0
    %612 = vmatmul.mubr.f32.gmra.mxu0 %v478
    %v613 = vpop.f32.mrf.mxu0
    %v614 = vadd.f32 %v434, %v613
    %v615 = vpop.f32.mrf.mxu0
    %616 = vmatprep.mubr.f32.mxu0 0.0
    %617 = vmatmul.mubr.f32.gmra.mxu0 %v480
    %v618 = vpop.f32.mrf.mxu0
    %v619 = vadd.f32 %v435, %v618
    %v620 = vpop.f32.mrf.mxu0
    %621 = vmatprep.mubr.f32.mxu0 0.0
    %622 = vmatmul.mubr.f32.gmra.mxu0 %v482
    %v623 = vpop.f32.mrf.mxu0
    %v624 = vadd.f32 %v436, %v623
    %v625 = vpop.f32.mrf.mxu0
    %626 = vmatprep.mubr.f32.mxu0 0.0
    %627 = vmatmul.mubr.f32.gmra.mxu0 %v484
    %v628 = vpop.f32.mrf.mxu0
    %v629 = vadd.f32 %v437, %v628
    %v630 = vpop.f32.mrf.mxu0
    %631 = vmatprep.mubr.f32.mxu0 0.0
    %632 = vmatmul.mubr.f32.gmra.mxu0 %v486
    %v633 = vpop.f32.mrf.mxu0
    %v634 = vadd.f32 %v438, %v633
    %v635 = vpop.f32.mrf.mxu0
    %636 = vdwg.mxu0
    %vm637 = vcmask 785408
    %v638 = vsel %vm637, %v579, -inf
    %639 = vmax.xlane.f32.xlu0 %v638
    %v640 = vpop.xlane.xlu0 %639
    %v641 = vsel %vm637, %v584, -inf
    %642 = vmax.xlane.f32.xlu0 %v641
    %v643 = vpop.xlane.xlu0 %642
    %v644 = vsel %vm637, %v589, -inf
    %645 = vmax.xlane.f32.xlu0 %v644
    %v646 = vpop.xlane.xlu0 %645
    %v647 = vsel %vm637, %v594, -inf
    %648 = vmax.xlane.f32.xlu0 %v647
    %v649 = vpop.xlane.xlu0 %648
    %v650 = vsel %vm637, %v599, -inf
    %651 = vmax.xlane.f32.xlu0 %v650
    %v652 = vpop.xlane.xlu0 %651
    %v653 = vsel %vm637, %v604, -inf
    %654 = vmax.xlane.f32.xlu0 %v653
    %v655 = vpop.xlane.xlu0 %654
    %v656 = vsel %vm637, %v609, -inf
    %657 = vmax.xlane.f32.xlu0 %v656
    %v658 = vpop.xlane.xlu0 %657
    %v659 = vsel %vm637, %v614, -inf
    %660 = vmax.xlane.f32.xlu0 %v659
    %v661 = vpop.xlane.xlu0 %660
    %v662 = vsel %vm637, %v619, -inf
    %663 = vmax.xlane.f32.xlu0 %v662
    %v664 = vpop.xlane.xlu0 %663
    %v665 = vsel %vm637, %v624, -inf
    %666 = vmax.xlane.f32.xlu0 %v665
    %v667 = vpop.xlane.xlu0 %666
    %v668 = vsel %vm637, %v629, -inf
    %669 = vmax.xlane.f32.xlu0 %v668
    %v670 = vpop.xlane.xlu0 %669
    %v671 = vsel %vm637, %v634, -inf
    %672 = vmax.xlane.f32.xlu0 %v671
    %v673 = vpop.xlane.xlu0 %672
    %v674 = vsub.f32 %v579, %v640
    %v675 = vsub.f32 %v584, %v643
    %v676 = vsub.f32 %v589, %v646
    %v677 = vsub.f32 %v594, %v649
    %v678 = vsub.f32 %v599, %v652
    %v679 = vsub.f32 %v604, %v655
    %v680 = vsub.f32 %v609, %v658
    %v681 = vsub.f32 %v614, %v661
    %v682 = vsub.f32 %v619, %v664
    %v683 = vsub.f32 %v624, %v667
    %v684 = vsub.f32 %v629, %v670
    %v685 = vsub.f32 %v634, %v673
    %v686 = vmul.f32 %v674, 1.442695
    %v687 = vpow.pop %v686
    %v688 = vmul.f32 %v675, 1.442695
    %v689 = vpow.pop %v688
    %v690 = vmul.f32 %v676, 1.442695
    %v691 = vpow.pop %v690
    %v692 = vmul.f32 %v677, 1.442695
    %v693 = vpow.pop %v692
    %v694 = vmul.f32 %v678, 1.442695
    %v695 = vpow.pop %v694
    %v696 = vmul.f32 %v679, 1.442695
    %v697 = vpow.pop %v696
    %v698 = vmul.f32 %v680, 1.442695
    %v699 = vpow.pop %v698
    %v700 = vmul.f32 %v681, 1.442695
    %v701 = vpow.pop %v700
    %v702 = vmul.f32 %v682, 1.442695
    %v703 = vpow.pop %v702
    %v704 = vmul.f32 %v683, 1.442695
    %v705 = vpow.pop %v704
    %v706 = vmul.f32 %v684, 1.442695
    %v707 = vpow.pop %v706
    %v708 = vmul.f32 %v685, 1.442695
    %v709 = vpow.pop %v708
    %v710 = vsel %vm637, %v687, 0.0
    %711 = vadd.xlane.f32.xlu0 %v710
    %v712 = vpop.xlane.xlu0 %711
    %v713 = vsel %vm637, %v689, 0.0
    %714 = vadd.xlane.f32.xlu0 %v713
    %v715 = vpop.xlane.xlu0 %714
    %v716 = vsel %vm637, %v691, 0.0
    %717 = vadd.xlane.f32.xlu0 %v716
    %v718 = vpop.xlane.xlu0 %717
    %v719 = vsel %vm637, %v693, 0.0
    %720 = vadd.xlane.f32.xlu0 %v719
    %v721 = vpop.xlane.xlu0 %720
    %v722 = vsel %vm637, %v695, 0.0
    %723 = vadd.xlane.f32.xlu0 %v722
    %v724 = vpop.xlane.xlu0 %723
    %v725 = vsel %vm637, %v697, 0.0
    %726 = vadd.xlane.f32.xlu0 %v725
    %v727 = vpop.xlane.xlu0 %726
    %v728 = vsel %vm637, %v699, 0.0
    %729 = vadd.xlane.f32.xlu0 %v728
    %v730 = vpop.xlane.xlu0 %729
    %v731 = vsel %vm637, %v701, 0.0
    %732 = vadd.xlane.f32.xlu0 %v731
    %v733 = vpop.xlane.xlu0 %732
    %v734 = vsel %vm637, %v703, 0.0
    %735 = vadd.xlane.f32.xlu0 %v734
    %v736 = vpop.xlane.xlu0 %735
    %v737 = vsel %vm637, %v705, 0.0
    %738 = vadd.xlane.f32.xlu0 %v737
    %v739 = vpop.xlane.xlu0 %738
    %v740 = vsel %vm637, %v707, 0.0
    %741 = vadd.xlane.f32.xlu0 %v740
    %v742 = vpop.xlane.xlu0 %741
    %v743 = vsel %vm637, %v709, 0.0
    %744 = vadd.xlane.f32.xlu0 %v743
    %v745 = vpop.xlane.xlu0 %744
    %v746 = vrcp.pop %v712
    %v747 = vrcp.pop %v715
    %v748 = vrcp.pop %v718
    %v749 = vrcp.pop %v721
    %v750 = vrcp.pop %v724
    %v751 = vrcp.pop %v727
    %v752 = vrcp.pop %v730
    %v753 = vrcp.pop %v733
    %v754 = vrcp.pop %v736
    %v755 = vrcp.pop %v739
    %v756 = vrcp.pop %v742
    %v757 = vrcp.pop %v745
    %v758 = vmul.f32 %v687, %v746
    %v759 = vmul.f32 %v689, %v747
    %v760 = vmul.f32 %v691, %v748
    %v761 = vmul.f32 %v693, %v749
    %v762 = vmul.f32 %v695, %v750
    %v763 = vmul.f32 %v697, %v751
    %v764 = vmul.f32 %v699, %v752
    %v765 = vmul.f32 %v701, %v753
    %v766 = vmul.f32 %v703, %v754
    %v767 = vmul.f32 %v705, %v755
    %v768 = vmul.f32 %v707, %v756
    %v769 = vmul.f32 %v709, %v757
    %770 = vrot.lane.b32.xlu0 %v246, 64
    %v771 = vpop.permute.xlu0 %770
    %772 = vrot.lane.b32.xlu0 %v251, 64
    %v773 = vpop.permute.xlu0 %772
    %774 = vrot.lane.b32.xlu0 %v256, 64
    %v775 = vpop.permute.xlu0 %774
    %776 = vrot.lane.b32.xlu0 %v261, 64
    %v777 = vpop.permute.xlu0 %776
    %778 = vrot.lane.b32.xlu0 %v266, 64
    %v779 = vpop.permute.xlu0 %778
    %780 = vrot.lane.b32.xlu0 %v271, 64
    %v781 = vpop.permute.xlu0 %780
    %782 = vrot.lane.b32.xlu0 %v416, 64
    %v783 = vpop.permute.xlu0 %782
    %784 = vrot.lane.b32.xlu0 %v418, 64
    %v785 = vpop.permute.xlu0 %784
    %786 = vrot.lane.b32.xlu0 %v420, 64
    %v787 = vpop.permute.xlu0 %786
    %788 = vrot.lane.b32.xlu0 %v422, 64
    %v789 = vpop.permute.xlu0 %788
    %790 = vrot.lane.b32.xlu0 %v424, 64
    %v791 = vpop.permute.xlu0 %790
    %792 = vrot.lane.b32.xlu0 %v426, 64
    %v793 = vpop.permute.xlu0 %792
    %v807 = vsel %vm637, %v758, 0
    %v810 = vsel %vm637, %v759, 0
    %v813 = vsel %vm637, %v760, 0
    %v816 = vsel %vm637, %v761, 0
    %v819 = vsel %vm637, %v762, 0
    %v822 = vsel %vm637, %v763, 0
    %v825 = vsel %vm637, %v764, 0
    %v828 = vsel %vm637, %v765, 0
    %v831 = vsel %vm637, %v766, 0
    %v834 = vsel %vm637, %v767, 0
    %v837 = vsel %vm637, %v768, 0
    %v840 = vsel %vm637, %v769, 0
    %842 = vmatprep.subr.mxu0 0.0
    %843 = vmatpush1.msra.mxu0 0.0
    %844 = vmatprep.subr.mxu0 0.0
    %845 = vmatpush1.msra.mxu0 0.0
    %846 = vmatprep.subr.mxu0 0.0
    %847 = vmatpush1.msra.mxu0 0.0
    %848 = vmatprep.subr.mxu0 0.0
    %849 = vmatpush1.msra.mxu0 0.0
    %850 = vmatprep.subr.mxu0 0.0
    %851 = vmatpush1.msra.mxu0 %v793
    %852 = vmatprep.subr.mxu0 0.0
    %853 = vmatpush1.msra.mxu0 %v791
    %854 = vmatprep.subr.mxu0 0.0
    %855 = vmatpush1.msra.mxu0 %v789
    %856 = vmatprep.subr.mxu0 0.0
    %857 = vmatpush1.msra.mxu0 %v787
    %858 = vmatprep.subr.mxu0 0.0
    %859 = vmatpush1.msra.mxu0 %v785
    %860 = vmatprep.subr.mxu0 0.0
    %861 = vmatpush1.msra.mxu0 %v783
    %862 = vmatprep.subr.mxu0 0.0
    %863 = vmatpush1.msra.mxu0 %v781
    %864 = vmatprep.subr.mxu0 0.0
    %865 = vmatpush1.msra.mxu0 %v779
    %866 = vmatprep.subr.mxu0 0.0
    %867 = vmatpush1.msra.mxu0 %v777
    %868 = vmatprep.subr.mxu0 0.0
    %869 = vmatpush1.msra.mxu0 %v775
    %870 = vmatprep.subr.mxu0 0.0
    %871 = vmatpush1.msra.mxu0 %v773
    %872 = vmatprep.subr.mxu0 0.0
    %873 = vmatpush1.msra.mxu0 %v771
    %874 = vmatprep.subr.mxu0 0.0
    %875 = vmatpush2.msra.mxu0 0.0
    %876 = vmatprep.subr.mxu0 0.0
    %877 = vmatpush2.msra.mxu0 0.0
    %878 = vmatprep.subr.mxu0 0.0
    %879 = vmatpush2.msra.mxu0 0.0
    %880 = vmatprep.subr.mxu0 0.0
    %881 = vmatpush2.msra.mxu0 0.0
    %882 = vmatprep.subr.mxu0 0.0
    %883 = vmatpush2.msra.mxu0 0.0
    %884 = vmatprep.subr.mxu0 0.0
    %885 = vmatpush2.msra.mxu0 0.0
    %886 = vmatprep.subr.mxu0 0.0
    %887 = vmatpush2.msra.mxu0 0.0
    %888 = vmatprep.subr.mxu0 0.0
    %889 = vmatpush2.msra.mxu0 0.0
    %890 = vmatprep.subr.mxu0 0.0
    %891 = vmatpush2.msra.mxu0 0.0
    %892 = vmatprep.subr.mxu0 0.0
    %893 = vmatpush2.msra.mxu0 0.0
    %894 = vmatprep.subr.mxu0 0.0
    %895 = vmatpush2.msra.mxu0 0.0
    %896 = vmatprep.subr.mxu0 0.0
    %897 = vmatpush2.msra.mxu0 0.0
    %898 = vmatprep.subr.mxu0 0.0
    %899 = vmatpush2.msra.mxu0 0.0
    %900 = vmatprep.subr.mxu0 0.0
    %901 = vmatpush2.msra.mxu0 0.0
    %902 = vmatprep.subr.mxu0 0.0
    %903 = vmatpush2.msra.mxu0 0.0
    %904 = vmatprep.subr.mxu0 0.0
    %905 = vmatpush2.msra.mxu0 0.0
    %906 = vmatprep.mubr.f32.mxu0 0.0
    %907 = vmatmul.mubr.f32.gmra.mxu0 %v807
    %v908 = vpop.f32.mrf.mxu0
    %v909 = vadd.f32 0.0, %v908
    %v910 = vpop.f32.mrf.mxu0
    %911 = vmatprep.mubr.f32.mxu0 0.0
    %912 = vmatmul.mubr.f32.gmra.mxu0 %v810
    %v913 = vpop.f32.mrf.mxu0
    %v914 = vadd.f32 0.0, %v913
    %v915 = vpop.f32.mrf.mxu0
    %916 = vmatprep.mubr.f32.mxu0 0.0
    %917 = vmatmul.mubr.f32.gmra.mxu0 %v813
    %v918 = vpop.f32.mrf.mxu0
    %v919 = vadd.f32 0.0, %v918
    %v920 = vpop.f32.mrf.mxu0
    %921 = vmatprep.mubr.f32.mxu0 0.0
    %922 = vmatmul.mubr.f32.gmra.mxu0 %v816
    %v923 = vpop.f32.mrf.mxu0
    %v924 = vadd.f32 0.0, %v923
    %v925 = vpop.f32.mrf.mxu0
    %926 = vmatprep.mubr.f32.mxu0 0.0
    %927 = vmatmul.mubr.f32.gmra.mxu0 %v819
    %v928 = vpop.f32.mrf.mxu0
    %v929 = vadd.f32 0.0, %v928
    %v930 = vpop.f32.mrf.mxu0
    %931 = vmatprep.mubr.f32.mxu0 0.0
    %932 = vmatmul.mubr.f32.gmra.mxu0 %v822
    %v933 = vpop.f32.mrf.mxu0
    %v934 = vadd.f32 0.0, %v933
    %v935 = vpop.f32.mrf.mxu0
    %936 = vmatprep.mubr.f32.mxu0 0.0
    %937 = vmatmul.mubr.f32.gmra.mxu0 %v825
    %v938 = vpop.f32.mrf.mxu0
    %v939 = vadd.f32 0.0, %v938
    %v940 = vpop.f32.mrf.mxu0
    %941 = vmatprep.mubr.f32.mxu0 0.0
    %942 = vmatmul.mubr.f32.gmra.mxu0 %v828
    %v943 = vpop.f32.mrf.mxu0
    %v944 = vadd.f32 0.0, %v943
    %v945 = vpop.f32.mrf.mxu0
    %946 = vmatprep.mubr.f32.mxu0 0.0
    %947 = vmatmul.mubr.f32.gmra.mxu0 %v831
    %v948 = vpop.f32.mrf.mxu0
    %v949 = vadd.f32 0.0, %v948
    %v950 = vpop.f32.mrf.mxu0
    %951 = vmatprep.mubr.f32.mxu0 0.0
    %952 = vmatmul.mubr.f32.gmra.mxu0 %v834
    %v953 = vpop.f32.mrf.mxu0
    %v954 = vadd.f32 0.0, %v953
    %v955 = vpop.f32.mrf.mxu0
    %956 = vmatprep.mubr.f32.mxu0 0.0
    %957 = vmatmul.mubr.f32.gmra.mxu0 %v837
    %v958 = vpop.f32.mrf.mxu0
    %v959 = vadd.f32 0.0, %v958
    %v960 = vpop.f32.mrf.mxu0
    %961 = vmatprep.mubr.f32.mxu0 0.0
    %962 = vmatmul.mubr.f32.gmra.mxu0 %v840
    %v963 = vpop.f32.mrf.mxu0
    %v964 = vadd.f32 0.0, %v963
    %v965 = vpop.f32.mrf.mxu0
    %966 = vdwg.mxu0
    %v967 = vld [vmem:[#allocation2 + $0xb8] sm:$0xff]
    %v968 = vld [vmem:[#allocation2 + $0xc0] sm:$0xff]
    %v969 = vld [vmem:[#allocation2 + $0xc8] sm:$0xff]
    %v970 = vld [vmem:[#allocation2 + $0xd0] sm:$0xff]
    %971 = vxpose.xlu0.b32.start [1/16] %v246, 128
    %972 = vxpose.xlu0.b32.cont [2/16] 0.0, 128
    %973 = vxpose.xlu0.b32.cont [3/16] 0.0, 128
    %974 = vxpose.xlu0.b32.cont [4/16] 0.0, 128
    %975 = vxpose.xlu0.b32.cont [5/16] 0.0, 128
    %976 = vxpose.xlu0.b32.cont [6/16] 0.0, 128
    %977 = vxpose.xlu0.b32.cont [7/16] 0.0, 128
    %978 = vxpose.xlu0.b32.cont [8/16] 0.0, 128
    %979 = vxpose.xlu0.b32.cont [9/16] 0.0, 128
    %980 = vxpose.xlu0.b32.cont [10/16] 0.0, 128
    %981 = vxpose.xlu0.b32.cont [11/16] 0.0, 128
    %982 = vxpose.xlu0.b32.cont [12/16] 0.0, 128
    %983 = vxpose.xlu0.b32.cont [13/16] 0.0, 128
    %984 = vxpose.xlu0.b32.cont [14/16] 0.0, 128
    %985 = vxpose.xlu0.b32.cont [15/16] 0.0, 128
    %986 = vxpose.xlu0.b32.end [16/16] 0.0, 128
    %v987 = vpop.trf.xlu0
    %v988 = vpop.trf.xlu0
    %v989 = vpop.trf.xlu0
    %v990 = vpop.trf.xlu0
    %v991 = vpop.trf.xlu0
    %v992 = vpop.trf.xlu0
    %v993 = vpop.trf.xlu0
    %v994 = vpop.trf.xlu0
    %v995 = vpop.trf.xlu0
    %v996 = vpop.trf.xlu0
    %v997 = vpop.trf.xlu0
    %v998 = vpop.trf.xlu0
    %v999 = vpop.trf.xlu0
    %v1000 = vpop.trf.xlu0
    %v1001 = vpop.trf.xlu0
    %v1002 = vpop.trf.xlu0
    %1003 = vrot.lane.b32.xlu0 %v246, 96
    %v1004 = vpop.permute.xlu0 %1003
    %vm1006 = vcmask 64512
    %v1008 = vsel %vm1006, %v987, 0
    %v1011 = vsel %vm1006, %v988, 0
    %v1014 = vsel %vm1006, %v989, 0
    %v1017 = vsel %vm1006, %v990, 0
    %1019 = vmatprep.subr.mxu0 0.0
    %1020 = vmatpush1.msra.mxu0 0.0
    %1021 = vmatprep.subr.mxu0 0.0
    %1022 = vmatpush1.msra.mxu0 0.0
    %1023 = vmatprep.subr.mxu0 0.0
    %1024 = vmatpush1.msra.mxu0 0.0
    %1025 = vmatprep.subr.mxu0 0.0
    %1026 = vmatpush1.msra.mxu0 0.0
    %1027 = vmatprep.subr.mxu0 0.0
    %1028 = vmatpush1.msra.mxu0 0.0
    %1029 = vmatprep.subr.mxu0 0.0
    %1030 = vmatpush1.msra.mxu0 0.0
    %1031 = vmatprep.subr.mxu0 0.0
    %1032 = vmatpush1.msra.mxu0 0.0
    %1033 = vmatprep.subr.mxu0 0.0
    %1034 = vmatpush1.msra.mxu0 0.0
    %1035 = vmatprep.subr.mxu0 0.0
    %1036 = vmatpush1.msra.mxu0 0.0
    %1037 = vmatprep.subr.mxu0 0.0
    %1038 = vmatpush1.msra.mxu0 0.0
    %1039 = vmatprep.subr.mxu0 0.0
    %1040 = vmatpush1.msra.mxu0 0.0
    %1041 = vmatprep.subr.mxu0 0.0
    %1042 = vmatpush1.msra.mxu0 0.0
    %1043 = vmatprep.subr.mxu0 0.0
    %1044 = vmatpush1.msra.mxu0 0.0
    %1045 = vmatprep.subr.mxu0 0.0
    %1046 = vmatpush1.msra.mxu0 0.0
    %1047 = vmatprep.subr.mxu0 0.0
    %1048 = vmatpush1.msra.mxu0 0.0
    %1049 = vmatprep.subr.mxu0 0.0
    %1050 = vmatpush1.msra.mxu0 %v1004
    %1051 = vmatprep.subr.mxu0 0.0
    %1052 = vmatpush2.msra.mxu0 0.0
    %1053 = vmatprep.subr.mxu0 0.0
    %1054 = vmatpush2.msra.mxu0 0.0
    %1055 = vmatprep.subr.mxu0 0.0
    %1056 = vmatpush2.msra.mxu0 0.0
    %1057 = vmatprep.subr.mxu0 0.0
    %1058 = vmatpush2.msra.mxu0 0.0
    %1059 = vmatprep.subr.mxu0 0.0
    %1060 = vmatpush2.msra.mxu0 0.0
    %1061 = vmatprep.subr.mxu0 0.0
    %1062 = vmatpush2.msra.mxu0 0.0
    %1063 = vmatprep.subr.mxu0 0.0
    %1064 = vmatpush2.msra.mxu0 0.0
    %1065 = vmatprep.subr.mxu0 0.0
    %1066 = vmatpush2.msra.mxu0 0.0
    %1067 = vmatprep.subr.mxu0 0.0
    %1068 = vmatpush2.msra.mxu0 0.0
    %1069 = vmatprep.subr.mxu0 0.0
    %1070 = vmatpush2.msra.mxu0 0.0
    %1071 = vmatprep.subr.mxu0 0.0
    %1072 = vmatpush2.msra.mxu0 0.0
    %1073 = vmatprep.subr.mxu0 0.0
    %1074 = vmatpush2.msra.mxu0 0.0
    %1075 = vmatprep.subr.mxu0 0.0
    %1076 = vmatpush2.msra.mxu0 0.0
    %1077 = vmatprep.subr.mxu0 0.0
    %1078 = vmatpush2.msra.mxu0 0.0
    %1079 = vmatprep.subr.mxu0 0.0
    %1080 = vmatpush2.msra.mxu0 0.0
    %1081 = vmatprep.subr.mxu0 0.0
    %1082 = vmatpush2.msra.mxu0 0.0
    %1083 = vmatprep.mubr.f32.mxu0 0.0
    %1084 = vmatmul.mubr.f32.gmra.mxu0 %v1008
    %v1085 = vpop.f32.mrf.mxu0
    %v1086 = vadd.f32 %v967, %v1085
    %v1087 = vpop.f32.mrf.mxu0
    %1088 = vmatprep.mubr.f32.mxu0 0.0
    %1089 = vmatmul.mubr.f32.gmra.mxu0 %v1011
    %v1090 = vpop.f32.mrf.mxu0
    %v1091 = vadd.f32 %v968, %v1090
    %v1092 = vpop.f32.mrf.mxu0
    %1093 = vmatprep.mubr.f32.mxu0 0.0
    %1094 = vmatmul.mubr.f32.gmra.mxu0 %v1014
    %v1095 = vpop.f32.mrf.mxu0
    %v1096 = vadd.f32 %v969, %v1095
    %v1097 = vpop.f32.mrf.mxu0
    %1098 = vmatprep.mubr.f32.mxu0 0.0
    %1099 = vmatmul.mubr.f32.gmra.mxu0 %v1017
    %v1100 = vpop.f32.mrf.mxu0
    %v1101 = vadd.f32 %v970, %v1100
    %v1102 = vpop.f32.mrf.mxu0
    %1103 = vdwg.mxu0
    %1104 = vxpose.xlu0.b32.start [1/16] %v251, 128
    %1105 = vxpose.xlu0.b32.cont [2/16] 0.0, 128
    %1106 = vxpose.xlu0.b32.cont [3/16] 0.0, 128
    %1107 = vxpose.xlu0.b32.cont [4/16] 0.0, 128
    %1108 = vxpose.xlu0.b32.cont [5/16] 0.0, 128
    %1109 = vxpose.xlu0.b32.cont [6/16] 0.0, 128
    %1110 = vxpose.xlu0.b32.cont [7/16] 0.0, 128
    %1111 = vxpose.xlu0.b32.cont [8/16] 0.0, 128
    %1112 = vxpose.xlu0.b32.cont [9/16] 0.0, 128
    %1113 = vxpose.xlu0.b32.cont [10/16] 0.0, 128
    %1114 = vxpose.xlu0.b32.cont [11/16] 0.0, 128
    %1115 = vxpose.xlu0.b32.cont [12/16] 0.0, 128
    %1116 = vxpose.xlu0.b32.cont [13/16] 0.0, 128
    %1117 = vxpose.xlu0.b32.cont [14/16] 0.0, 128
    %1118 = vxpose.xlu0.b32.cont [15/16] 0.0, 128
    %1119 = vxpose.xlu0.b32.end [16/16] 0.0, 128
    %v1120 = vpop.trf.xlu0
    %v1121 = vpop.trf.xlu0
    %v1122 = vpop.trf.xlu0
    %v1123 = vpop.trf.xlu0
    %v1124 = vpop.trf.xlu0
    %v1125 = vpop.trf.xlu0
    %v1126 = vpop.trf.xlu0
    %v1127 = vpop.trf.xlu0
    %v1128 = vpop.trf.xlu0
    %v1129 = vpop.trf.xlu0
    %v1130 = vpop.trf.xlu0
    %v1131 = vpop.trf.xlu0
    %v1132 = vpop.trf.xlu0
    %v1133 = vpop.trf.xlu0
    %v1134 = vpop.trf.xlu0
    %v1135 = vpop.trf.xlu0
    %1136 = vrot.lane.b32.xlu0 %v251, 96
    %v1137 = vpop.permute.xlu0 %1136
    %v1140 = vsel %vm1006, %v1120, 0
    %v1143 = vsel %vm1006, %v1121, 0
    %v1146 = vsel %vm1006, %v1122, 0
    %v1149 = vsel %vm1006, %v1123, 0
    %1151 = vmatprep.subr.mxu0 0.0
    %1152 = vmatpush1.msra.mxu0 0.0
    %1153 = vmatprep.subr.mxu0 0.0
    %1154 = vmatpush1.msra.mxu0 0.0
    %1155 = vmatprep.subr.mxu0 0.0
    %1156 = vmatpush1.msra.mxu0 0.0
    %1157 = vmatprep.subr.mxu0 0.0
    %1158 = vmatpush1.msra.mxu0 0.0
    %1159 = vmatprep.subr.mxu0 0.0
    %1160 = vmatpush1.msra.mxu0 0.0
    %1161 = vmatprep.subr.mxu0 0.0
    %1162 = vmatpush1.msra.mxu0 0.0
    %1163 = vmatprep.subr.mxu0 0.0
    %1164 = vmatpush1.msra.mxu0 0.0
    %1165 = vmatprep.subr.mxu0 0.0
    %1166 = vmatpush1.msra.mxu0 0.0
    %1167 = vmatprep.subr.mxu0 0.0
    %1168 = vmatpush1.msra.mxu0 0.0
    %1169 = vmatprep.subr.mxu0 0.0
    %1170 = vmatpush1.msra.mxu0 0.0
    %1171 = vmatprep.subr.mxu0 0.0
    %1172 = vmatpush1.msra.mxu0 0.0
    %1173 = vmatprep.subr.mxu0 0.0
    %1174 = vmatpush1.msra.mxu0 0.0
    %1175 = vmatprep.subr.mxu0 0.0
    %1176 = vmatpush1.msra.mxu0 0.0
    %1177 = vmatprep.subr.mxu0 0.0
    %1178 = vmatpush1.msra.mxu0 0.0
    %1179 = vmatprep.subr.mxu0 0.0
    %1180 = vmatpush1.msra.mxu0 0.0
    %1181 = vmatprep.subr.mxu0 0.0
    %1182 = vmatpush1.msra.mxu0 %v1137
    %1183 = vmatprep.subr.mxu0 0.0
    %1184 = vmatpush2.msra.mxu0 0.0
    %1185 = vmatprep.subr.mxu0 0.0
    %1186 = vmatpush2.msra.mxu0 0.0
    %1187 = vmatprep.subr.mxu0 0.0
    %1188 = vmatpush2.msra.mxu0 0.0
    %1189 = vmatprep.subr.mxu0 0.0
    %1190 = vmatpush2.msra.mxu0 0.0
    %1191 = vmatprep.subr.mxu0 0.0
    %1192 = vmatpush2.msra.mxu0 0.0
    %1193 = vmatprep.subr.mxu0 0.0
    %1194 = vmatpush2.msra.mxu0 0.0
    %1195 = vmatprep.subr.mxu0 0.0
    %1196 = vmatpush2.msra.mxu0 0.0
    %1197 = vmatprep.subr.mxu0 0.0
    %1198 = vmatpush2.msra.mxu0 0.0
    %1199 = vmatprep.subr.mxu0 0.0
    %1200 = vmatpush2.msra.mxu0 0.0
    %1201 = vmatprep.subr.mxu0 0.0
    %1202 = vmatpush2.msra.mxu0 0.0
    %1203 = vmatprep.subr.mxu0 0.0
    %1204 = vmatpush2.msra.mxu0 0.0
    %1205 = vmatprep.subr.mxu0 0.0
    %1206 = vmatpush2.msra.mxu0 0.0
    %1207 = vmatprep.subr.mxu0 0.0
    %1208 = vmatpush2.msra.mxu0 0.0
    %1209 = vmatprep.subr.mxu0 0.0
    %1210 = vmatpush2.msra.mxu0 0.0
    %1211 = vmatprep.subr.mxu0 0.0
    %1212 = vmatpush2.msra.mxu0 0.0
    %1213 = vmatprep.subr.mxu0 0.0
    %1214 = vmatpush2.msra.mxu0 0.0
    %1215 = vmatprep.mubr.f32.mxu0 0.0
    %1216 = vmatmul.mubr.f32.gmra.mxu0 %v1140
    %v1217 = vpop.f32.mrf.mxu0
    %v1218 = vadd.f32 %v967, %v1217
    %v1219 = vpop.f32.mrf.mxu0
    %1220 = vmatprep.mubr.f32.mxu0 0.0
    %1221 = vmatmul.mubr.f32.gmra.mxu0 %v1143
    %v1222 = vpop.f32.mrf.mxu0
    %v1223 = vadd.f32 %v968, %v1222
    %v1224 = vpop.f32.mrf.mxu0
    %1225 = vmatprep.mubr.f32.mxu0 0.0
    %1226 = vmatmul.mubr.f32.gmra.mxu0 %v1146
    %v1227 = vpop.f32.mrf.mxu0
    %v1228 = vadd.f32 %v969, %v1227
    %v1229 = vpop.f32.mrf.mxu0
    %1230 = vmatprep.mubr.f32.mxu0 0.0
    %1231 = vmatmul.mubr.f32.gmra.mxu0 %v1149
    %v1232 = vpop.f32.mrf.mxu0
    %v1233 = vadd.f32 %v970, %v1232
    %v1234 = vpop.f32.mrf.mxu0
    %1235 = vdwg.mxu0
    %1236 = vxpose.xlu0.b32.start [1/16] %v256, 128
    %1237 = vxpose.xlu0.b32.cont [2/16] 0.0, 128
    %1238 = vxpose.xlu0.b32.cont [3/16] 0.0, 128
    %1239 = vxpose.xlu0.b32.cont [4/16] 0.0, 128
    %1240 = vxpose.xlu0.b32.cont [5/16] 0.0, 128
    %1241 = vxpose.xlu0.b32.cont [6/16] 0.0, 128
    %1242 = vxpose.xlu0.b32.cont [7/16] 0.0, 128
    %1243 = vxpose.xlu0.b32.cont [8/16] 0.0, 128
    %1244 = vxpose.xlu0.b32.cont [9/16] 0.0, 128
    %1245 = vxpose.xlu0.b32.cont [10/16] 0.0, 128
    %1246 = vxpose.xlu0.b32.cont [11/16] 0.0, 128
    %1247 = vxpose.xlu0.b32.cont [12/16] 0.0, 128
    %1248 = vxpose.xlu0.b32.cont [13/16] 0.0, 128
    %1249 = vxpose.xlu0.b32.cont [14/16] 0.0, 128
    %1250 = vxpose.xlu0.b32.cont [15/16] 0.0, 128
    %1251 = vxpose.xlu0.b32.end [16/16] 0.0, 128
    %v1252 = vpop.trf.xlu0
    %v1253 = vpop.trf.xlu0
    %v1254 = vpop.trf.xlu0
    %v1255 = vpop.trf.xlu0
    %v1256 = vpop.trf.xlu0
    %v1257 = vpop.trf.xlu0
    %v1258 = vpop.trf.xlu0
    %v1259 = vpop.trf.xlu0
    %v1260 = vpop.trf.xlu0
    %v1261 = vpop.trf.xlu0
    %v1262 = vpop.trf.xlu0
    %v1263 = vpop.trf.xlu0
    %v1264 = vpop.trf.xlu0
    %v1265 = vpop.trf.xlu0
    %v1266 = vpop.trf.xlu0
    %v1267 = vpop.trf.xlu0
    %1268 = vrot.lane.b32.xlu0 %v256, 96
    %v1269 = vpop.permute.xlu0 %1268
    %v1272 = vsel %vm1006, %v1252, 0
    %v1275 = vsel %vm1006, %v1253, 0
    %v1278 = vsel %vm1006, %v1254, 0
    %v1281 = vsel %vm1006, %v1255, 0
    %1283 = vmatprep.subr.mxu0 0.0
    %1284 = vmatpush1.msra.mxu0 0.0
    %1285 = vmatprep.subr.mxu0 0.0
    %1286 = vmatpush1.msra.mxu0 0.0
    %1287 = vmatprep.subr.mxu0 0.0
    %1288 = vmatpush1.msra.mxu0 0.0
    %1289 = vmatprep.subr.mxu0 0.0
    %1290 = vmatpush1.msra.mxu0 0.0
    %1291 = vmatprep.subr.mxu0 0.0
    %1292 = vmatpush1.msra.mxu0 0.0
    %1293 = vmatprep.subr.mxu0 0.0
    %1294 = vmatpush1.msra.mxu0 0.0
    %1295 = vmatprep.subr.mxu0 0.0
    %1296 = vmatpush1.msra.mxu0 0.0
    %1297 = vmatprep.subr.mxu0 0.0
    %1298 = vmatpush1.msra.mxu0 0.0
    %1299 = vmatprep.subr.mxu0 0.0
    %1300 = vmatpush1.msra.mxu0 0.0
    %1301 = vmatprep.subr.mxu0 0.0
    %1302 = vmatpush1.msra.mxu0 0.0
    %1303 = vmatprep.subr.mxu0 0.0
    %1304 = vmatpush1.msra.mxu0 0.0
    %1305 = vmatprep.subr.mxu0 0.0
    %1306 = vmatpush1.msra.mxu0 0.0
    %1307 = vmatprep.subr.mxu0 0.0
    %1308 = vmatpush1.msra.mxu0 0.0
    %1309 = vmatprep.subr.mxu0 0.0
    %1310 = vmatpush1.msra.mxu0 0.0
    %1311 = vmatprep.subr.mxu0 0.0
    %1312 = vmatpush1.msra.mxu0 0.0
    %1313 = vmatprep.subr.mxu0 0.0
    %1314 = vmatpush1.msra.mxu0 %v1269
    %1315 = vmatprep.subr.mxu0 0.0
    %1316 = vmatpush2.msra.mxu0 0.0
    %1317 = vmatprep.subr.mxu0 0.0
    %1318 = vmatpush2.msra.mxu0 0.0
    %1319 = vmatprep.subr.mxu0 0.0
    %1320 = vmatpush2.msra.mxu0 0.0
    %1321 = vmatprep.subr.mxu0 0.0
    %1322 = vmatpush2.msra.mxu0 0.0
    %1323 = vmatprep.subr.mxu0 0.0
    %1324 = vmatpush2.msra.mxu0 0.0
    %1325 = vmatprep.subr.mxu0 0.0
    %1326 = vmatpush2.msra.mxu0 0.0
    %1327 = vmatprep.subr.mxu0 0.0
    %1328 = vmatpush2.msra.mxu0 0.0
    %1329 = vmatprep.subr.mxu0 0.0
    %1330 = vmatpush2.msra.mxu0 0.0
    %1331 = vmatprep.subr.mxu0 0.0
    %1332 = vmatpush2.msra.mxu0 0.0
    %1333 = vmatprep.subr.mxu0 0.0
    %1334 = vmatpush2.msra.mxu0 0.0
    %1335 = vmatprep.subr.mxu0 0.0
    %1336 = vmatpush2.msra.mxu0 0.0
    %1337 = vmatprep.subr.mxu0 0.0
    %1338 = vmatpush2.msra.mxu0 0.0
    %1339 = vmatprep.subr.mxu0 0.0
    %1340 = vmatpush2.msra.mxu0 0.0
    %1341 = vmatprep.subr.mxu0 0.0
    %1342 = vmatpush2.msra.mxu0 0.0
    %1343 = vmatprep.subr.mxu0 0.0
    %1344 = vmatpush2.msra.mxu0 0.0
    %1345 = vmatprep.subr.mxu0 0.0
    %1346 = vmatpush2.msra.mxu0 0.0
    %1347 = vmatprep.mubr.f32.mxu0 0.0
    %1348 = vmatmul.mubr.f32.gmra.mxu0 %v1272
    %v1349 = vpop.f32.mrf.mxu0
    %v1350 = vadd.f32 %v967, %v1349
    %v1351 = vpop.f32.mrf.mxu0
    %1352 = vmatprep.mubr.f32.mxu0 0.0
    %1353 = vmatmul.mubr.f32.gmra.mxu0 %v1275
    %v1354 = vpop.f32.mrf.mxu0
    %v1355 = vadd.f32 %v968, %v1354
    %v1356 = vpop.f32.mrf.mxu0
    %1357 = vmatprep.mubr.f32.mxu0 0.0
    %1358 = vmatmul.mubr.f32.gmra.mxu0 %v1278
    %v1359 = vpop.f32.mrf.mxu0
    %v1360 = vadd.f32 %v969, %v1359
    %v1361 = vpop.f32.mrf.mxu0
    %1362 = vmatprep.mubr.f32.mxu0 0.0
    %1363 = vmatmul.mubr.f32.gmra.mxu0 %v1281
    %v1364 = vpop.f32.mrf.mxu0
    %v1365 = vadd.f32 %v970, %v1364
    %v1366 = vpop.f32.mrf.mxu0
    %1367 = vdwg.mxu0
    %1368 = vxpose.xlu0.b32.start [1/16] %v261, 128
    %1369 = vxpose.xlu0.b32.cont [2/16] 0.0, 128
    %1370 = vxpose.xlu0.b32.cont [3/16] 0.0, 128
    %1371 = vxpose.xlu0.b32.cont [4/16] 0.0, 128
    %1372 = vxpose.xlu0.b32.cont [5/16] 0.0, 128
    %1373 = vxpose.xlu0.b32.cont [6/16] 0.0, 128
    %1374 = vxpose.xlu0.b32.cont [7/16] 0.0, 128
    %1375 = vxpose.xlu0.b32.cont [8/16] 0.0, 128
    %1376 = vxpose.xlu0.b32.cont [9/16] 0.0, 128
    %1377 = vxpose.xlu0.b32.cont [10/16] 0.0, 128
    %1378 = vxpose.xlu0.b32.cont [11/16] 0.0, 128
    %1379 = vxpose.xlu0.b32.cont [12/16] 0.0, 128
    %1380 = vxpose.xlu0.b32.cont [13/16] 0.0, 128
    %1381 = vxpose.xlu0.b32.cont [14/16] 0.0, 128
    %1382 = vxpose.xlu0.b32.cont [15/16] 0.0, 128
    %1383 = vxpose.xlu0.b32.end [16/16] 0.0, 128
    %v1384 = vpop.trf.xlu0
    %v1385 = vpop.trf.xlu0
    %v1386 = vpop.trf.xlu0
    %v1387 = vpop.trf.xlu0
    %v1388 = vpop.trf.xlu0
    %v1389 = vpop.trf.xlu0
    %v1390 = vpop.trf.xlu0
    %v1391 = vpop.trf.xlu0
    %v1392 = vpop.trf.xlu0
    %v1393 = vpop.trf.xlu0
    %v1394 = vpop.trf.xlu0
    %v1395 = vpop.trf.xlu0
    %v1396 = vpop.trf.xlu0
    %v1397 = vpop.trf.xlu0
    %v1398 = vpop.trf.xlu0
    %v1399 = vpop.trf.xlu0
    %1400 = vrot.lane.b32.xlu0 %v261, 96
    %v1401 = vpop.permute.xlu0 %1400
    %v1404 = vsel %vm1006, %v1384, 0
    %v1407 = vsel %vm1006, %v1385, 0
    %v1410 = vsel %vm1006, %v1386, 0
    %v1413 = vsel %vm1006, %v1387, 0
    %1415 = vmatprep.subr.mxu0 0.0
    %1416 = vmatpush1.msra.mxu0 0.0
    %1417 = vmatprep.subr.mxu0 0.0
    %1418 = vmatpush1.msra.mxu0 0.0
    %1419 = vmatprep.subr.mxu0 0.0
    %1420 = vmatpush1.msra.mxu0 0.0
    %1421 = vmatprep.subr.mxu0 0.0
    %1422 = vmatpush1.msra.mxu0 0.0
    %1423 = vmatprep.subr.mxu0 0.0
    %1424 = vmatpush1.msra.mxu0 0.0
    %1425 = vmatprep.subr.mxu0 0.0
    %1426 = vmatpush1.msra.mxu0 0.0
    %1427 = vmatprep.subr.mxu0 0.0
    %1428 = vmatpush1.msra.mxu0 0.0
    %1429 = vmatprep.subr.mxu0 0.0
    %1430 = vmatpush1.msra.mxu0 0.0
    %1431 = vmatprep.subr.mxu0 0.0
    %1432 = vmatpush1.msra.mxu0 0.0
    %1433 = vmatprep.subr.mxu0 0.0
    %1434 = vmatpush1.msra.mxu0 0.0
    %1435 = vmatprep.subr.mxu0 0.0
    %1436 = vmatpush1.msra.mxu0 0.0
    %1437 = vmatprep.subr.mxu0 0.0
    %1438 = vmatpush1.msra.mxu0 0.0
    %1439 = vmatprep.subr.mxu0 0.0
    %1440 = vmatpush1.msra.mxu0 0.0
    %1441 = vmatprep.subr.mxu0 0.0
    %1442 = vmatpush1.msra.mxu0 0.0
    %1443 = vmatprep.subr.mxu0 0.0
    %1444 = vmatpush1.msra.mxu0 0.0
    %1445 = vmatprep.subr.mxu0 0.0
    %1446 = vmatpush1.msra.mxu0 %v1401
    %1447 = vmatprep.subr.mxu0 0.0
    %1448 = vmatpush2.msra.mxu0 0.0
    %1449 = vmatprep.subr.mxu0 0.0
    %1450 = vmatpush2.msra.mxu0 0.0
    %1451 = vmatprep.subr.mxu0 0.0
    %1452 = vmatpush2.msra.mxu0 0.0
    %1453 = vmatprep.subr.mxu0 0.0
    %1454 = vmatpush2.msra.mxu0 0.0
    %1455 = vmatprep.subr.mxu0 0.0
    %1456 = vmatpush2.msra.mxu0 0.0
    %1457 = vmatprep.subr.mxu0 0.0
    %1458 = vmatpush2.msra.mxu0 0.0
    %1459 = vmatprep.subr.mxu0 0.0
    %1460 = vmatpush2.msra.mxu0 0.0
    %1461 = vmatprep.subr.mxu0 0.0
    %1462 = vmatpush2.msra.mxu0 0.0
    %1463 = vmatprep.subr.mxu0 0.0
    %1464 = vmatpush2.msra.mxu0 0.0
    %1465 = vmatprep.subr.mxu0 0.0
    %1466 = vmatpush2.msra.mxu0 0.0
    %1467 = vmatprep.subr.mxu0 0.0
    %1468 = vmatpush2.msra.mxu0 0.0
    %1469 = vmatprep.subr.mxu0 0.0
    %1470 = vmatpush2.msra.mxu0 0.0
    %1471 = vmatprep.subr.mxu0 0.0
    %1472 = vmatpush2.msra.mxu0 0.0
    %1473 = vmatprep.subr.mxu0 0.0
    %1474 = vmatpush2.msra.mxu0 0.0
    %1475 = vmatprep.subr.mxu0 0.0
    %1476 = vmatpush2.msra.mxu0 0.0
    %1477 = vmatprep.subr.mxu0 0.0
    %1478 = vmatpush2.msra.mxu0 0.0
    %1479 = vmatprep.mubr.f32.mxu0 0.0
    %1480 = vmatmul.mubr.f32.gmra.mxu0 %v1404
    %v1481 = vpop.f32.mrf.mxu0
    %v1482 = vadd.f32 %v967, %v1481
    %v1483 = vpop.f32.mrf.mxu0
    %1484 = vmatprep.mubr.f32.mxu0 0.0
    %1485 = vmatmul.mubr.f32.gmra.mxu0 %v1407
    %v1486 = vpop.f32.mrf.mxu0
    %v1487 = vadd.f32 %v968, %v1486
    %v1488 = vpop.f32.mrf.mxu0
    %1489 = vmatprep.mubr.f32.mxu0 0.0
    %1490 = vmatmul.mubr.f32.gmra.mxu0 %v1410
    %v1491 = vpop.f32.mrf.mxu0
    %v1492 = vadd.f32 %v969, %v1491
    %v1493 = vpop.f32.mrf.mxu0
    %1494 = vmatprep.mubr.f32.mxu0 0.0
    %1495 = vmatmul.mubr.f32.gmra.mxu0 %v1413
    %v1496 = vpop.f32.mrf.mxu0
    %v1497 = vadd.f32 %v970, %v1496
    %v1498 = vpop.f32.mrf.mxu0
    %1499 = vdwg.mxu0
    %1500 = vxpose.xlu0.b32.start [1/16] %v266, 128
    %1501 = vxpose.xlu0.b32.cont [2/16] 0.0, 128
    %1502 = vxpose.xlu0.b32.cont [3/16] 0.0, 128
    %1503 = vxpose.xlu0.b32.cont [4/16] 0.0, 128
    %1504 = vxpose.xlu0.b32.cont [5/16] 0.0, 128
    %1505 = vxpose.xlu0.b32.cont [6/16] 0.0, 128
    %1506 = vxpose.xlu0.b32.cont [7/16] 0.0, 128
    %1507 = vxpose.xlu0.b32.cont [8/16] 0.0, 128
    %1508 = vxpose.xlu0.b32.cont [9/16] 0.0, 128
    %1509 = vxpose.xlu0.b32.cont [10/16] 0.0, 128
    %1510 = vxpose.xlu0.b32.cont [11/16] 0.0, 128
    %1511 = vxpose.xlu0.b32.cont [12/16] 0.0, 128
    %1512 = vxpose.xlu0.b32.cont [13/16] 0.0, 128
    %1513 = vxpose.xlu0.b32.cont [14/16] 0.0, 128
    %1514 = vxpose.xlu0.b32.cont [15/16] 0.0, 128
    %1515 = vxpose.xlu0.b32.end [16/16] 0.0, 128
    %v1516 = vpop.trf.xlu0
    %v1517 = vpop.trf.xlu0
    %v1518 = vpop.trf.xlu0
    %v1519 = vpop.trf.xlu0
    %v1520 = vpop.trf.xlu0
    %v1521 = vpop.trf.xlu0
    %v1522 = vpop.trf.xlu0
    %v1523 = vpop.trf.xlu0
    %v1524 = vpop.trf.xlu0
    %v1525 = vpop.trf.xlu0
    %v1526 = vpop.trf.xlu0
    %v1527 = vpop.trf.xlu0
    %v1528 = vpop.trf.xlu0
    %v1529 = vpop.trf.xlu0
    %v1530 = vpop.trf.xlu0
    %v1531 = vpop.trf.xlu0
    %1532 = vrot.lane.b32.xlu0 %v266, 96
    %v1533 = vpop.permute.xlu0 %1532
    %v1536 = vsel %vm1006, %v1516, 0
    %v1539 = vsel %vm1006, %v1517, 0
    %v1542 = vsel %vm1006, %v1518, 0
    %v1545 = vsel %vm1006, %v1519, 0
    %1547 = vmatprep.subr.mxu0 0.0
    %1548 = vmatpush1.msra.mxu0 0.0
    %1549 = vmatprep.subr.mxu0 0.0
    %1550 = vmatpush1.msra.mxu0 0.0
    %1551 = vmatprep.subr.mxu0 0.0
    %1552 = vmatpush1.msra.mxu0 0.0
    %1553 = vmatprep.subr.mxu0 0.0
    %1554 = vmatpush1.msra.mxu0 0.0
    %1555 = vmatprep.subr.mxu0 0.0
    %1556 = vmatpush1.msra.mxu0 0.0
    %1557 = vmatprep.subr.mxu0 0.0
    %1558 = vmatpush1.msra.mxu0 0.0
    %1559 = vmatprep.subr.mxu0 0.0
    %1560 = vmatpush1.msra.mxu0 0.0
    %1561 = vmatprep.subr.mxu0 0.0
    %1562 = vmatpush1.msra.mxu0 0.0
    %1563 = vmatprep.subr.mxu0 0.0
    %1564 = vmatpush1.msra.mxu0 0.0
    %1565 = vmatprep.subr.mxu0 0.0
    %1566 = vmatpush1.msra.mxu0 0.0
    %1567 = vmatprep.subr.mxu0 0.0
    %1568 = vmatpush1.msra.mxu0 0.0
    %1569 = vmatprep.subr.mxu0 0.0
    %1570 = vmatpush1.msra.mxu0 0.0
    %1571 = vmatprep.subr.mxu0 0.0
    %1572 = vmatpush1.msra.mxu0 0.0
    %1573 = vmatprep.subr.mxu0 0.0
    %1574 = vmatpush1.msra.mxu0 0.0
    %1575 = vmatprep.subr.mxu0 0.0
    %1576 = vmatpush1.msra.mxu0 0.0
    %1577 = vmatprep.subr.mxu0 0.0
    %1578 = vmatpush1.msra.mxu0 %v1533
    %1579 = vmatprep.subr.mxu0 0.0
    %1580 = vmatpush2.msra.mxu0 0.0
    %1581 = vmatprep.subr.mxu0 0.0
    %1582 = vmatpush2.msra.mxu0 0.0
    %1583 = vmatprep.subr.mxu0 0.0
    %1584 = vmatpush2.msra.mxu0 0.0
    %1585 = vmatprep.subr.mxu0 0.0
    %1586 = vmatpush2.msra.mxu0 0.0
    %1587 = vmatprep.subr.mxu0 0.0
    %1588 = vmatpush2.msra.mxu0 0.0
    %1589 = vmatprep.subr.mxu0 0.0
    %1590 = vmatpush2.msra.mxu0 0.0
    %1591 = vmatprep.subr.mxu0 0.0
    %1592 = vmatpush2.msra.mxu0 0.0
    %1593 = vmatprep.subr.mxu0 0.0
    %1594 = vmatpush2.msra.mxu0 0.0
    %1595 = vmatprep.subr.mxu0 0.0
    %1596 = vmatpush2.msra.mxu0 0.0
    %1597 = vmatprep.subr.mxu0 0.0
    %1598 = vmatpush2.msra.mxu0 0.0
    %1599 = vmatprep.subr.mxu0 0.0
    %1600 = vmatpush2.msra.mxu0 0.0
    %1601 = vmatprep.subr.mxu0 0.0
    %1602 = vmatpush2.msra.mxu0 0.0
    %1603 = vmatprep.subr.mxu0 0.0
    %1604 = vmatpush2.msra.mxu0 0.0
    %1605 = vmatprep.subr.mxu0 0.0
    %1606 = vmatpush2.msra.mxu0 0.0
    %1607 = vmatprep.subr.mxu0 0.0
    %1608 = vmatpush2.msra.mxu0 0.0
    %1609 = vmatprep.subr.mxu0 0.0
    %1610 = vmatpush2.msra.mxu0 0.0
    %1611 = vmatprep.mubr.f32.mxu0 0.0
    %1612 = vmatmul.mubr.f32.gmra.mxu0 %v1536
    %v1613 = vpop.f32.mrf.mxu0
    %v1614 = vadd.f32 %v967, %v1613
    %v1615 = vpop.f32.mrf.mxu0
    %1616 = vmatprep.mubr.f32.mxu0 0.0
    %1617 = vmatmul.mubr.f32.gmra.mxu0 %v1539
    %v1618 = vpop.f32.mrf.mxu0
    %v1619 = vadd.f32 %v968, %v1618
    %v1620 = vpop.f32.mrf.mxu0
    %1621 = vmatprep.mubr.f32.mxu0 0.0
    %1622 = vmatmul.mubr.f32.gmra.mxu0 %v1542
    %v1623 = vpop.f32.mrf.mxu0
    %v1624 = vadd.f32 %v969, %v1623
    %v1625 = vpop.f32.mrf.mxu0
    %1626 = vmatprep.mubr.f32.mxu0 0.0
    %1627 = vmatmul.mubr.f32.gmra.mxu0 %v1545
    %v1628 = vpop.f32.mrf.mxu0
    %v1629 = vadd.f32 %v970, %v1628
    %v1630 = vpop.f32.mrf.mxu0
    %1631 = vdwg.mxu0
    %1632 = vxpose.xlu0.b32.start [1/16] %v271, 128
    %1633 = vxpose.xlu0.b32.cont [2/16] 0.0, 128
    %1634 = vxpose.xlu0.b32.cont [3/16] 0.0, 128
    %1635 = vxpose.xlu0.b32.cont [4/16] 0.0, 128
    %1636 = vxpose.xlu0.b32.cont [5/16] 0.0, 128
    %1637 = vxpose.xlu0.b32.cont [6/16] 0.0, 128
    %1638 = vxpose.xlu0.b32.cont [7/16] 0.0, 128
    %1639 = vxpose.xlu0.b32.cont [8/16] 0.0, 128
    %1640 = vxpose.xlu0.b32.cont [9/16] 0.0, 128
    %1641 = vxpose.xlu0.b32.cont [10/16] 0.0, 128
    %1642 = vxpose.xlu0.b32.cont [11/16] 0.0, 128
    %1643 = vxpose.xlu0.b32.cont [12/16] 0.0, 128
    %1644 = vxpose.xlu0.b32.cont [13/16] 0.0, 128
    %1645 = vxpose.xlu0.b32.cont [14/16] 0.0, 128
    %1646 = vxpose.xlu0.b32.cont [15/16] 0.0, 128
    %1647 = vxpose.xlu0.b32.end [16/16] 0.0, 128
    %v1648 = vpop.trf.xlu0
    %v1649 = vpop.trf.xlu0
    %v1650 = vpop.trf.xlu0
    %v1651 = vpop.trf.xlu0
    %v1652 = vpop.trf.xlu0
    %v1653 = vpop.trf.xlu0
    %v1654 = vpop.trf.xlu0
    %v1655 = vpop.trf.xlu0
    %v1656 = vpop.trf.xlu0
    %v1657 = vpop.trf.xlu0
    %v1658 = vpop.trf.xlu0
    %v1659 = vpop.trf.xlu0
    %v1660 = vpop.trf.xlu0
    %v1661 = vpop.trf.xlu0
    %v1662 = vpop.trf.xlu0
    %v1663 = vpop.trf.xlu0
    %1664 = vrot.lane.b32.xlu0 %v271, 96
    %v1665 = vpop.permute.xlu0 %1664
    %v1668 = vsel %vm1006, %v1648, 0
    %v1671 = vsel %vm1006, %v1649, 0
    %v1674 = vsel %vm1006, %v1650, 0
    %v1677 = vsel %vm1006, %v1651, 0
    %1679 = vmatprep.subr.mxu0 0.0
    %1680 = vmatpush1.msra.mxu0 0.0
    %1681 = vmatprep.subr.mxu0 0.0
    %1682 = vmatpush1.msra.mxu0 0.0
    %1683 = vmatprep.subr.mxu0 0.0
    %1684 = vmatpush1.msra.mxu0 0.0
    %1685 = vmatprep.subr.mxu0 0.0
    %1686 = vmatpush1.msra.mxu0 0.0
    %1687 = vmatprep.subr.mxu0 0.0
    %1688 = vmatpush1.msra.mxu0 0.0
    %1689 = vmatprep.subr.mxu0 0.0
    %1690 = vmatpush1.msra.mxu0 0.0
    %1691 = vmatprep.subr.mxu0 0.0
    %1692 = vmatpush1.msra.mxu0 0.0
    %1693 = vmatprep.subr.mxu0 0.0
    %1694 = vmatpush1.msra.mxu0 0.0
    %1695 = vmatprep.subr.mxu0 0.0
    %1696 = vmatpush1.msra.mxu0 0.0
    %1697 = vmatprep.subr.mxu0 0.0
    %1698 = vmatpush1.msra.mxu0 0.0
    %1699 = vmatprep.subr.mxu0 0.0
    %1700 = vmatpush1.msra.mxu0 0.0
    %1701 = vmatprep.subr.mxu0 0.0
    %1702 = vmatpush1.msra.mxu0 0.0
    %1703 = vmatprep.subr.mxu0 0.0
    %1704 = vmatpush1.msra.mxu0 0.0
    %1705 = vmatprep.subr.mxu0 0.0
    %1706 = vmatpush1.msra.mxu0 0.0
    %1707 = vmatprep.subr.mxu0 0.0
    %1708 = vmatpush1.msra.mxu0 0.0
    %1709 = vmatprep.subr.mxu0 0.0
    %1710 = vmatpush1.msra.mxu0 %v1665
    %1711 = vmatprep.subr.mxu0 0.0
    %1712 = vmatpush2.msra.mxu0 0.0
    %1713 = vmatprep.subr.mxu0 0.0
    %1714 = vmatpush2.msra.mxu0 0.0
    %1715 = vmatprep.subr.mxu0 0.0
    %1716 = vmatpush2.msra.mxu0 0.0
    %1717 = vmatprep.subr.mxu0 0.0
    %1718 = vmatpush2.msra.mxu0 0.0
    %1719 = vmatprep.subr.mxu0 0.0
    %1720 = vmatpush2.msra.mxu0 0.0
    %1721 = vmatprep.subr.mxu0 0.0
    %1722 = vmatpush2.msra.mxu0 0.0
    %1723 = vmatprep.subr.mxu0 0.0
    %1724 = vmatpush2.msra.mxu0 0.0
    %1725 = vmatprep.subr.mxu0 0.0
    %1726 = vmatpush2.msra.mxu0 0.0
    %1727 = vmatprep.subr.mxu0 0.0
    %1728 = vmatpush2.msra.mxu0 0.0
    %1729 = vmatprep.subr.mxu0 0.0
    %1730 = vmatpush2.msra.mxu0 0.0
    %1731 = vmatprep.subr.mxu0 0.0
    %1732 = vmatpush2.msra.mxu0 0.0
    %1733 = vmatprep.subr.mxu0 0.0
    %1734 = vmatpush2.msra.mxu0 0.0
    %1735 = vmatprep.subr.mxu0 0.0
    %1736 = vmatpush2.msra.mxu0 0.0
    %1737 = vmatprep.subr.mxu0 0.0
    %1738 = vmatpush2.msra.mxu0 0.0
    %1739 = vmatprep.subr.mxu0 0.0
    %1740 = vmatpush2.msra.mxu0 0.0
    %1741 = vmatprep.subr.mxu0 0.0
    %1742 = vmatpush2.msra.mxu0 0.0
    %1743 = vmatprep.mubr.f32.mxu0 0.0
    %1744 = vmatmul.mubr.f32.gmra.mxu0 %v1668
    %v1745 = vpop.f32.mrf.mxu0
    %v1746 = vadd.f32 %v967, %v1745
    %v1747 = vpop.f32.mrf.mxu0
    %1748 = vmatprep.mubr.f32.mxu0 0.0
    %1749 = vmatmul.mubr.f32.gmra.mxu0 %v1671
    %v1750 = vpop.f32.mrf.mxu0
    %v1751 = vadd.f32 %v968, %v1750
    %v1752 = vpop.f32.mrf.mxu0
    %1753 = vmatprep.mubr.f32.mxu0 0.0
    %1754 = vmatmul.mubr.f32.gmra.mxu0 %v1674
    %v1755 = vpop.f32.mrf.mxu0
    %v1756 = vadd.f32 %v969, %v1755
    %v1757 = vpop.f32.mrf.mxu0
    %1758 = vmatprep.mubr.f32.mxu0 0.0
    %1759 = vmatmul.mubr.f32.gmra.mxu0 %v1677
    %v1760 = vpop.f32.mrf.mxu0
    %v1761 = vadd.f32 %v970, %v1760
    %v1762 = vpop.f32.mrf.mxu0
    %1763 = vdwg.mxu0
    %v1764 = vsel %vm160, %v1086, -inf
    %1765 = vmax.xlane.f32.xlu0 %v1764
    %v1766 = vpop.xlane.xlu0 %1765
    %v1767 = vsel %vm160, %v1091, -inf
    %1768 = vmax.xlane.f32.xlu0 %v1767
    %v1769 = vpop.xlane.xlu0 %1768
    %v1770 = vsel %vm160, %v1096, -inf
    %1771 = vmax.xlane.f32.xlu0 %v1770
    %v1772 = vpop.xlane.xlu0 %1771
    %v1773 = vsel %vm160, %v1101, -inf
    %1774 = vmax.xlane.f32.xlu0 %v1773
    %v1775 = vpop.xlane.xlu0 %1774
    %v1776 = vsel %vm160, %v1218, -inf
    %1777 = vmax.xlane.f32.xlu0 %v1776
    %v1778 = vpop.xlane.xlu0 %1777
    %v1779 = vsel %vm160, %v1223, -inf
    %1780 = vmax.xlane.f32.xlu0 %v1779
    %v1781 = vpop.xlane.xlu0 %1780
    %v1782 = vsel %vm160, %v1228, -inf
    %1783 = vmax.xlane.f32.xlu0 %v1782
    %v1784 = vpop.xlane.xlu0 %1783
    %v1785 = vsel %vm160, %v1233, -inf
    %1786 = vmax.xlane.f32.xlu0 %v1785
    %v1787 = vpop.xlane.xlu0 %1786
    %v1788 = vsel %vm160, %v1350, -inf
    %1789 = vmax.xlane.f32.xlu0 %v1788
    %v1790 = vpop.xlane.xlu0 %1789
    %v1791 = vsel %vm160, %v1355, -inf
    %1792 = vmax.xlane.f32.xlu0 %v1791
    %v1793 = vpop.xlane.xlu0 %1792
    %v1794 = vsel %vm160, %v1360, -inf
    %1795 = vmax.xlane.f32.xlu0 %v1794
    %v1796 = vpop.xlane.xlu0 %1795
    %v1797 = vsel %vm160, %v1365, -inf
    %1798 = vmax.xlane.f32.xlu0 %v1797
    %v1799 = vpop.xlane.xlu0 %1798
    %v1800 = vsel %vm160, %v1482, -inf
    %1801 = vmax.xlane.f32.xlu0 %v1800
    %v1802 = vpop.xlane.xlu0 %1801
    %v1803 = vsel %vm160, %v1487, -inf
    %1804 = vmax.xlane.f32.xlu0 %v1803
    %v1805 = vpop.xlane.xlu0 %1804
    %v1806 = vsel %vm160, %v1492, -inf
    %1807 = vmax.xlane.f32.xlu0 %v1806
    %v1808 = vpop.xlane.xlu0 %1807
    %v1809 = vsel %vm160, %v1497, -inf
    %1810 = vmax.xlane.f32.xlu0 %v1809
    %v1811 = vpop.xlane.xlu0 %1810
    %v1812 = vsel %vm160, %v1614, -inf
    %1813 = vmax.xlane.f32.xlu0 %v1812
    %v1814 = vpop.xlane.xlu0 %1813
    %v1815 = vsel %vm160, %v1619, -inf
    %1816 = vmax.xlane.f32.xlu0 %v1815
    %v1817 = vpop.xlane.xlu0 %1816
    %v1818 = vsel %vm160, %v1624, -inf
    %1819 = vmax.xlane.f32.xlu0 %v1818
    %v1820 = vpop.xlane.xlu0 %1819
    %v1821 = vsel %vm160, %v1629, -inf
    %1822 = vmax.xlane.f32.xlu0 %v1821
    %v1823 = vpop.xlane.xlu0 %1822
    %v1824 = vsel %vm160, %v1746, -inf
    %1825 = vmax.xlane.f32.xlu0 %v1824
    %v1826 = vpop.xlane.xlu0 %1825
    %v1827 = vsel %vm160, %v1751, -inf
    %1828 = vmax.xlane.f32.xlu0 %v1827
    %v1829 = vpop.xlane.xlu0 %1828
    %v1830 = vsel %vm160, %v1756, -inf
    %1831 = vmax.xlane.f32.xlu0 %v1830
    %v1832 = vpop.xlane.xlu0 %1831
    %v1833 = vsel %vm160, %v1761, -inf
    %1834 = vmax.xlane.f32.xlu0 %v1833
    %v1835 = vpop.xlane.xlu0 %1834
    %v1836 = vsub.f32 %v1086, %v1766
    %v1837 = vsub.f32 %v1091, %v1769
    %v1838 = vsub.f32 %v1096, %v1772
    %v1839 = vsub.f32 %v1101, %v1775
    %v1840 = vsub.f32 %v1218, %v1778
    %v1841 = vsub.f32 %v1223, %v1781
    %v1842 = vsub.f32 %v1228, %v1784
    %v1843 = vsub.f32 %v1233, %v1787
    %v1844 = vsub.f32 %v1350, %v1790
    %v1845 = vsub.f32 %v1355, %v1793
    %v1846 = vsub.f32 %v1360, %v1796
    %v1847 = vsub.f32 %v1365, %v1799
    %v1848 = vsub.f32 %v1482, %v1802
    %v1849 = vsub.f32 %v1487, %v1805
    %v1850 = vsub.f32 %v1492, %v1808
    %v1851 = vsub.f32 %v1497, %v1811
    %v1852 = vsub.f32 %v1614, %v1814
    %v1853 = vsub.f32 %v1619, %v1817
    %v1854 = vsub.f32 %v1624, %v1820
    %v1855 = vsub.f32 %v1629, %v1823
    %v1856 = vsub.f32 %v1746, %v1826
    %v1857 = vsub.f32 %v1751, %v1829
    %v1858 = vsub.f32 %v1756, %v1832
    %v1859 = vsub.f32 %v1761, %v1835
    %v1860 = vmul.f32 %v1836, 1.442695
    %v1861 = vpow.pop %v1860
    %v1862 = vmul.f32 %v1837, 1.442695
    %v1863 = vpow.pop %v1862
    %v1864 = vmul.f32 %v1838, 1.442695
    %v1865 = vpow.pop %v1864
    %v1866 = vmul.f32 %v1839, 1.442695
    %v1867 = vpow.pop %v1866
    %v1868 = vmul.f32 %v1840, 1.442695
    %v1869 = vpow.pop %v1868
    %v1870 = vmul.f32 %v1841, 1.442695
    %v1871 = vpow.pop %v1870
    %v1872 = vmul.f32 %v1842, 1.442695
    %v1873 = vpow.pop %v1872
    %v1874 = vmul.f32 %v1843, 1.442695
    %v1875 = vpow.pop %v1874
    %v1876 = vmul.f32 %v1844, 1.442695
    %v1877 = vpow.pop %v1876
    %v1878 = vmul.f32 %v1845, 1.442695
    %v1879 = vpow.pop %v1878
    %v1880 = vmul.f32 %v1846, 1.442695
    %v1881 = vpow.pop %v1880
    %v1882 = vmul.f32 %v1847, 1.442695
    %v1883 = vpow.pop %v1882
    %v1884 = vmul.f32 %v1848, 1.442695
    %v1885 = vpow.pop %v1884
    %v1886 = vmul.f32 %v1849, 1.442695
    %v1887 = vpow.pop %v1886
    %v1888 = vmul.f32 %v1850, 1.442695
    %v1889 = vpow.pop %v1888
    %v1890 = vmul.f32 %v1851, 1.442695
    %v1891 = vpow.pop %v1890
    %v1892 = vmul.f32 %v1852, 1.442695
    %v1893 = vpow.pop %v1892
    %v1894 = vmul.f32 %v1853, 1.442695
    %v1895 = vpow.pop %v1894
    %v1896 = vmul.f32 %v1854, 1.442695
    %v1897 = vpow.pop %v1896
    %v1898 = vmul.f32 %v1855, 1.442695
    %v1899 = vpow.pop %v1898
    %v1900 = vmul.f32 %v1856, 1.442695
    %v1901 = vpow.pop %v1900
    %v1902 = vmul.f32 %v1857, 1.442695
    %v1903 = vpow.pop %v1902
    %v1904 = vmul.f32 %v1858, 1.442695
    %v1905 = vpow.pop %v1904
    %v1906 = vmul.f32 %v1859, 1.442695
    %v1907 = vpow.pop %v1906
    %v1908 = vsel %vm160, %v1861, 0.0
    %1909 = vadd.xlane.f32.xlu0 %v1908
    %v1910 = vpop.xlane.xlu0 %1909
    %v1911 = vsel %vm160, %v1863, 0.0
    %1912 = vadd.xlane.f32.xlu0 %v1911
    %v1913 = vpop.xlane.xlu0 %1912
    %v1914 = vsel %vm160, %v1865, 0.0
    %1915 = vadd.xlane.f32.xlu0 %v1914
    %v1916 = vpop.xlane.xlu0 %1915
    %v1917 = vsel %vm160, %v1867, 0.0
    %1918 = vadd.xlane.f32.xlu0 %v1917
    %v1919 = vpop.xlane.xlu0 %1918
    %v1920 = vsel %vm160, %v1869, 0.0
    %1921 = vadd.xlane.f32.xlu0 %v1920
    %v1922 = vpop.xlane.xlu0 %1921
    %v1923 = vsel %vm160, %v1871, 0.0
    %1924 = vadd.xlane.f32.xlu0 %v1923
    %v1925 = vpop.xlane.xlu0 %1924
    %v1926 = vsel %vm160, %v1873, 0.0
    %1927 = vadd.xlane.f32.xlu0 %v1926
    %v1928 = vpop.xlane.xlu0 %1927
    %v1929 = vsel %vm160, %v1875, 0.0
    %1930 = vadd.xlane.f32.xlu0 %v1929
    %v1931 = vpop.xlane.xlu0 %1930
    %v1932 = vsel %vm160, %v1877, 0.0
    %1933 = vadd.xlane.f32.xlu0 %v1932
    %v1934 = vpop.xlane.xlu0 %1933
    %v1935 = vsel %vm160, %v1879, 0.0
    %1936 = vadd.xlane.f32.xlu0 %v1935
    %v1937 = vpop.xlane.xlu0 %1936
    %v1938 = vsel %vm160, %v1881, 0.0
    %1939 = vadd.xlane.f32.xlu0 %v1938
    %v1940 = vpop.xlane.xlu0 %1939
    %v1941 = vsel %vm160, %v1883, 0.0
    %1942 = vadd.xlane.f32.xlu0 %v1941
    %v1943 = vpop.xlane.xlu0 %1942
    %v1944 = vsel %vm160, %v1885, 0.0
    %1945 = vadd.xlane.f32.xlu0 %v1944
    %v1946 = vpop.xlane.xlu0 %1945
    %v1947 = vsel %vm160, %v1887, 0.0
    %1948 = vadd.xlane.f32.xlu0 %v1947
    %v1949 = vpop.xlane.xlu0 %1948
    %v1950 = vsel %vm160, %v1889, 0.0
    %1951 = vadd.xlane.f32.xlu0 %v1950
    %v1952 = vpop.xlane.xlu0 %1951
    %v1953 = vsel %vm160, %v1891, 0.0
    %1954 = vadd.xlane.f32.xlu0 %v1953
    %v1955 = vpop.xlane.xlu0 %1954
    %v1956 = vsel %vm160, %v1893, 0.0
    %1957 = vadd.xlane.f32.xlu0 %v1956
    %v1958 = vpop.xlane.xlu0 %1957
    %v1959 = vsel %vm160, %v1895, 0.0
    %1960 = vadd.xlane.f32.xlu0 %v1959
    %v1961 = vpop.xlane.xlu0 %1960
    %v1962 = vsel %vm160, %v1897, 0.0
    %1963 = vadd.xlane.f32.xlu0 %v1962
    %v1964 = vpop.xlane.xlu0 %1963
    %v1965 = vsel %vm160, %v1899, 0.0
    %1966 = vadd.xlane.f32.xlu0 %v1965
    %v1967 = vpop.xlane.xlu0 %1966
    %v1968 = vsel %vm160, %v1901, 0.0
    %1969 = vadd.xlane.f32.xlu0 %v1968
    %v1970 = vpop.xlane.xlu0 %1969
    %v1971 = vsel %vm160, %v1903, 0.0
    %1972 = vadd.xlane.f32.xlu0 %v1971
    %v1973 = vpop.xlane.xlu0 %1972
    %v1974 = vsel %vm160, %v1905, 0.0
    %1975 = vadd.xlane.f32.xlu0 %v1974
    %v1976 = vpop.xlane.xlu0 %1975
    %v1977 = vsel %vm160, %v1907, 0.0
    %1978 = vadd.xlane.f32.xlu0 %v1977
    %v1979 = vpop.xlane.xlu0 %1978
    %v1980 = vrcp.pop %v1910
    %v1981 = vrcp.pop %v1913
    %v1982 = vrcp.pop %v1916
    %v1983 = vrcp.pop %v1919
    %v1984 = vrcp.pop %v1922
    %v1985 = vrcp.pop %v1925
    %v1986 = vrcp.pop %v1928
    %v1987 = vrcp.pop %v1931
    %v1988 = vrcp.pop %v1934
    %v1989 = vrcp.pop %v1937
    %v1990 = vrcp.pop %v1940
    %v1991 = vrcp.pop %v1943
    %v1992 = vrcp.pop %v1946
    %v1993 = vrcp.pop %v1949
    %v1994 = vrcp.pop %v1952
    %v1995 = vrcp.pop %v1955
    %v1996 = vrcp.pop %v1958
    %v1997 = vrcp.pop %v1961
    %v1998 = vrcp.pop %v1964
    %v1999 = vrcp.pop %v1967
    %v2000 = vrcp.pop %v1970
    %v2001 = vrcp.pop %v1973
    %v2002 = vrcp.pop %v1976
    %v2003 = vrcp.pop %v1979
    %v2004 = vmul.f32 %v1861, %v1980
    %v2005 = vmul.f32 %v1863, %v1981
    %v2006 = vmul.f32 %v1865, %v1982
    %v2007 = vmul.f32 %v1867, %v1983
    %v2008 = vmul.f32 %v1869, %v1984
    %v2009 = vmul.f32 %v1871, %v1985
    %v2010 = vmul.f32 %v1873, %v1986
    %v2011 = vmul.f32 %v1875, %v1987
    %v2012 = vmul.f32 %v1877, %v1988
    %v2013 = vmul.f32 %v1879, %v1989
    %v2014 = vmul.f32 %v1881, %v1990
    %v2015 = vmul.f32 %v1883, %v1991
    %v2016 = vmul.f32 %v1885, %v1992
    %v2017 = vmul.f32 %v1887, %v1993
    %v2018 = vmul.f32 %v1889, %v1994
    %v2019 = vmul.f32 %v1891, %v1995
    %v2020 = vmul.f32 %v1893, %v1996
    %v2021 = vmul.f32 %v1895, %v1997
    %v2022 = vmul.f32 %v1897, %v1998
    %v2023 = vmul.f32 %v1899, %v1999
    %v2024 = vmul.f32 %v1901, %v2000
    %v2025 = vmul.f32 %v1903, %v2001
    %v2026 = vmul.f32 %v1905, %v2002
    %v2027 = vmul.f32 %v1907, %v2003
    %v2028 = vsel %vm160, %v771, 0
    %v2031 = vsel %vm160, %v2004, 0
    %v2034 = vsel %vm160, %v2005, 0
    %v2037 = vsel %vm160, %v2006, 0
    %v2040 = vsel %vm160, %v2007, 0
    %2042 = vmatprep.subr.mxu0 0.0
    %2043 = vmatpush1.xpose.msra.mxu0 0.0
    %2044 = vmatprep.subr.mxu0 0.0
    %2045 = vmatpush1.xpose.msra.mxu0 0.0
    %2046 = vmatprep.subr.mxu0 0.0
    %2047 = vmatpush1.xpose.msra.mxu0 0.0
    %2048 = vmatprep.subr.mxu0 0.0
    %2049 = vmatpush1.xpose.msra.mxu0 0.0
    %2050 = vmatprep.subr.mxu0 0.0
    %2051 = vmatpush1.xpose.msra.mxu0 0.0
    %2052 = vmatprep.subr.mxu0 0.0
    %2053 = vmatpush1.xpose.msra.mxu0 0.0
    %2054 = vmatprep.subr.mxu0 0.0
    %2055 = vmatpush1.xpose.msra.mxu0 0.0
    %2056 = vmatprep.subr.mxu0 0.0
    %2057 = vmatpush1.xpose.msra.mxu0 0.0
    %2058 = vmatprep.subr.mxu0 0.0
    %2059 = vmatpush1.xpose.msra.mxu0 0.0
    %2060 = vmatprep.subr.mxu0 0.0
    %2061 = vmatpush1.xpose.msra.mxu0 0.0
    %2062 = vmatprep.subr.mxu0 0.0
    %2063 = vmatpush1.xpose.msra.mxu0 0.0
    %2064 = vmatprep.subr.mxu0 0.0
    %2065 = vmatpush1.xpose.msra.mxu0 0.0
    %2066 = vmatprep.subr.mxu0 0.0
    %2067 = vmatpush1.xpose.msra.mxu0 %v2040
    %2068 = vmatprep.subr.mxu0 0.0
    %2069 = vmatpush1.xpose.msra.mxu0 %v2037
    %2070 = vmatprep.subr.mxu0 0.0
    %2071 = vmatpush1.xpose.msra.mxu0 %v2034
    %2072 = vmatprep.subr.mxu0 0.0
    %2073 = vmatpush1.xpose.msra.mxu0 %v2031
    %2074 = vmatprep.subr.mxu0 0.0
    %2075 = vmatpush2.xpose.msra.mxu0 0.0
    %2076 = vmatprep.subr.mxu0 0.0
    %2077 = vmatpush2.xpose.msra.mxu0 0.0
    %2078 = vmatprep.subr.mxu0 0.0
    %2079 = vmatpush2.xpose.msra.mxu0 0.0
    %2080 = vmatprep.subr.mxu0 0.0
    %2081 = vmatpush2.xpose.msra.mxu0 0.0
    %2082 = vmatprep.subr.mxu0 0.0
    %2083 = vmatpush2.xpose.msra.mxu0 0.0
    %2084 = vmatprep.subr.mxu0 0.0
    %2085 = vmatpush2.xpose.msra.mxu0 0.0
    %2086 = vmatprep.subr.mxu0 0.0
    %2087 = vmatpush2.xpose.msra.mxu0 0.0
    %2088 = vmatprep.subr.mxu0 0.0
    %2089 = vmatpush2.xpose.msra.mxu0 0.0
    %2090 = vmatprep.subr.mxu0 0.0
    %2091 = vmatpush2.xpose.msra.mxu0 0.0
    %2092 = vmatprep.subr.mxu0 0.0
    %2093 = vmatpush2.xpose.msra.mxu0 0.0
    %2094 = vmatprep.subr.mxu0 0.0
    %2095 = vmatpush2.xpose.msra.mxu0 0.0
    %2096 = vmatprep.subr.mxu0 0.0
    %2097 = vmatpush2.xpose.msra.mxu0 0.0
    %2098 = vmatprep.subr.mxu0 0.0
    %2099 = vmatpush2.xpose.msra.mxu0 0.0
    %2100 = vmatprep.subr.mxu0 0.0
    %2101 = vmatpush2.xpose.msra.mxu0 0.0
    %2102 = vmatprep.subr.mxu0 0.0
    %2103 = vmatpush2.xpose.msra.mxu0 0.0
    %2104 = vmatprep.subr.mxu0 0.0
    %2105 = vmatpush2.xpose.msra.mxu0 0.0
    %2106 = vmatprep.mubr.f32.mxu0 0.0
    %2107 = vmatmul.mubr.f32.gmra.mxu0 %v2028
    %v2108 = vpop.f32.mrf.mxu0
    %v2109 = vadd.f32 0.0, %v2108
    %v2110 = vpop.f32.mrf.mxu0
    %2111 = vdwg.mxu0
    %v2112 = vsel %vm160, %v773, 0
    %v2115 = vsel %vm160, %v2008, 0
    %v2118 = vsel %vm160, %v2009, 0
    %v2121 = vsel %vm160, %v2010, 0
    %v2124 = vsel %vm160, %v2011, 0
    %2126 = vmatprep.subr.mxu0 0.0
    %2127 = vmatpush1.xpose.msra.mxu0 0.0
    %2128 = vmatprep.subr.mxu0 0.0
    %2129 = vmatpush1.xpose.msra.mxu0 0.0
    %2130 = vmatprep.subr.mxu0 0.0
    %2131 = vmatpush1.xpose.msra.mxu0 0.0
    %2132 = vmatprep.subr.mxu0 0.0
    %2133 = vmatpush1.xpose.msra.mxu0 0.0
    %2134 = vmatprep.subr.mxu0 0.0
    %2135 = vmatpush1.xpose.msra.mxu0 0.0
    %2136 = vmatprep.subr.mxu0 0.0
    %2137 = vmatpush1.xpose.msra.mxu0 0.0
    %2138 = vmatprep.subr.mxu0 0.0
    %2139 = vmatpush1.xpose.msra.mxu0 0.0
    %2140 = vmatprep.subr.mxu0 0.0
    %2141 = vmatpush1.xpose.msra.mxu0 0.0
    %2142 = vmatprep.subr.mxu0 0.0
    %2143 = vmatpush1.xpose.msra.mxu0 0.0
    %2144 = vmatprep.subr.mxu0 0.0
    %2145 = vmatpush1.xpose.msra.mxu0 0.0
    %2146 = vmatprep.subr.mxu0 0.0
    %2147 = vmatpush1.xpose.msra.mxu0 0.0
    %2148 = vmatprep.subr.mxu0 0.0
    %2149 = vmatpush1.xpose.msra.mxu0 0.0
    %2150 = vmatprep.subr.mxu0 0.0
    %2151 = vmatpush1.xpose.msra.mxu0 %v2124
    %2152 = vmatprep.subr.mxu0 0.0
    %2153 = vmatpush1.xpose.msra.mxu0 %v2121
    %2154 = vmatprep.subr.mxu0 0.0
    %2155 = vmatpush1.xpose.msra.mxu0 %v2118
    %2156 = vmatprep.subr.mxu0 0.0
    %2157 = vmatpush1.xpose.msra.mxu0 %v2115
    %2158 = vmatprep.subr.mxu0 0.0
    %2159 = vmatpush2.xpose.msra.mxu0 0.0
    %2160 = vmatprep.subr.mxu0 0.0
    %2161 = vmatpush2.xpose.msra.mxu0 0.0
    %2162 = vmatprep.subr.mxu0 0.0
    %2163 = vmatpush2.xpose.msra.mxu0 0.0
    %2164 = vmatprep.subr.mxu0 0.0
    %2165 = vmatpush2.xpose.msra.mxu0 0.0
    %2166 = vmatprep.subr.mxu0 0.0
    %2167 = vmatpush2.xpose.msra.mxu0 0.0
    %2168 = vmatprep.subr.mxu0 0.0
    %2169 = vmatpush2.xpose.msra.mxu0 0.0
    %2170 = vmatprep.subr.mxu0 0.0
    %2171 = vmatpush2.xpose.msra.mxu0 0.0
    %2172 = vmatprep.subr.mxu0 0.0
    %2173 = vmatpush2.xpose.msra.mxu0 0.0
    %2174 = vmatprep.subr.mxu0 0.0
    %2175 = vmatpush2.xpose.msra.mxu0 0.0
    %2176 = vmatprep.subr.mxu0 0.0
    %2177 = vmatpush2.xpose.msra.mxu0 0.0
    %2178 = vmatprep.subr.mxu0 0.0
    %2179 = vmatpush2.xpose.msra.mxu0 0.0
    %2180 = vmatprep.subr.mxu0 0.0
    %2181 = vmatpush2.xpose.msra.mxu0 0.0
    %2182 = vmatprep.subr.mxu0 0.0
    %2183 = vmatpush2.xpose.msra.mxu0 0.0
    %2184 = vmatprep.subr.mxu0 0.0
    %2185 = vmatpush2.xpose.msra.mxu0 0.0
    %2186 = vmatprep.subr.mxu0 0.0
    %2187 = vmatpush2.xpose.msra.mxu0 0.0
    %2188 = vmatprep.subr.mxu0 0.0
    %2189 = vmatpush2.xpose.msra.mxu0 0.0
    %2190 = vmatprep.mubr.f32.mxu0 0.0
    %2191 = vmatmul.mubr.f32.gmra.mxu0 %v2112
    %v2192 = vpop.f32.mrf.mxu0
    %v2193 = vadd.f32 0.0, %v2192
    %v2194 = vpop.f32.mrf.mxu0
    %2195 = vdwg.mxu0
    %v2196 = vsel %vm160, %v775, 0
    %v2199 = vsel %vm160, %v2012, 0
    %v2202 = vsel %vm160, %v2013, 0
    %v2205 = vsel %vm160, %v2014, 0
    %v2208 = vsel %vm160, %v2015, 0
    %2210 = vmatprep.subr.mxu0 0.0
    %2211 = vmatpush1.xpose.msra.mxu0 0.0
    %2212 = vmatprep.subr.mxu0 0.0
    %2213 = vmatpush1.xpose.msra.mxu0 0.0
    %2214 = vmatprep.subr.mxu0 0.0
    %2215 = vmatpush1.xpose.msra.mxu0 0.0
    %2216 = vmatprep.subr.mxu0 0.0
    %2217 = vmatpush1.xpose.msra.mxu0 0.0
    %2218 = vmatprep.subr.mxu0 0.0
    %2219 = vmatpush1.xpose.msra.mxu0 0.0
    %2220 = vmatprep.subr.mxu0 0.0
    %2221 = vmatpush1.xpose.msra.mxu0 0.0
    %2222 = vmatprep.subr.mxu0 0.0
    %2223 = vmatpush1.xpose.msra.mxu0 0.0
    %2224 = vmatprep.subr.mxu0 0.0
    %2225 = vmatpush1.xpose.msra.mxu0 0.0
    %2226 = vmatprep.subr.mxu0 0.0
    %2227 = vmatpush1.xpose.msra.mxu0 0.0
    %2228 = vmatprep.subr.mxu0 0.0
    %2229 = vmatpush1.xpose.msra.mxu0 0.0
    %2230 = vmatprep.subr.mxu0 0.0
    %2231 = vmatpush1.xpose.msra.mxu0 0.0
    %2232 = vmatprep.subr.mxu0 0.0
    %2233 = vmatpush1.xpose.msra.mxu0 0.0
    %2234 = vmatprep.subr.mxu0 0.0
    %2235 = vmatpush1.xpose.msra.mxu0 %v2208
    %2236 = vmatprep.subr.mxu0 0.0
    %2237 = vmatpush1.xpose.msra.mxu0 %v2205
    %2238 = vmatprep.subr.mxu0 0.0
    %2239 = vmatpush1.xpose.msra.mxu0 %v2202
    %2240 = vmatprep.subr.mxu0 0.0
    %2241 = vmatpush1.xpose.msra.mxu0 %v2199
    %2242 = vmatprep.subr.mxu0 0.0
    %2243 = vmatpush2.xpose.msra.mxu0 0.0
    %2244 = vmatprep.subr.mxu0 0.0
    %2245 = vmatpush2.xpose.msra.mxu0 0.0
    %2246 = vmatprep.subr.mxu0 0.0
    %2247 = vmatpush2.xpose.msra.mxu0 0.0
    %2248 = vmatprep.subr.mxu0 0.0
    %2249 = vmatpush2.xpose.msra.mxu0 0.0
    %2250 = vmatprep.subr.mxu0 0.0
    %2251 = vmatpush2.xpose.msra.mxu0 0.0
    %2252 = vmatprep.subr.mxu0 0.0
    %2253 = vmatpush2.xpose.msra.mxu0 0.0
    %2254 = vmatprep.subr.mxu0 0.0
    %2255 = vmatpush2.xpose.msra.mxu0 0.0
    %2256 = vmatprep.subr.mxu0 0.0
    %2257 = vmatpush2.xpose.msra.mxu0 0.0
    %2258 = vmatprep.subr.mxu0 0.0
    %2259 = vmatpush2.xpose.msra.mxu0 0.0
    %2260 = vmatprep.subr.mxu0 0.0
    %2261 = vmatpush2.xpose.msra.mxu0 0.0
    %2262 = vmatprep.subr.mxu0 0.0
    %2263 = vmatpush2.xpose.msra.mxu0 0.0
    %2264 = vmatprep.subr.mxu0 0.0
    %2265 = vmatpush2.xpose.msra.mxu0 0.0
    %2266 = vmatprep.subr.mxu0 0.0
    %2267 = vmatpush2.xpose.msra.mxu0 0.0
    %2268 = vmatprep.subr.mxu0 0.0
    %2269 = vmatpush2.xpose.msra.mxu0 0.0
    %2270 = vmatprep.subr.mxu0 0.0
    %2271 = vmatpush2.xpose.msra.mxu0 0.0
    %2272 = vmatprep.subr.mxu0 0.0
    %2273 = vmatpush2.xpose.msra.mxu0 0.0
    %2274 = vmatprep.mubr.f32.mxu0 0.0
    %2275 = vmatmul.mubr.f32.gmra.mxu0 %v2196
    %v2276 = vpop.f32.mrf.mxu0
    %v2277 = vadd.f32 0.0, %v2276
    %v2278 = vpop.f32.mrf.mxu0
    %2279 = vdwg.mxu0
    %v2280 = vsel %vm160, %v777, 0
    %v2283 = vsel %vm160, %v2016, 0
    %v2286 = vsel %vm160, %v2017, 0
    %v2289 = vsel %vm160, %v2018, 0
    %v2292 = vsel %vm160, %v2019, 0
    %2294 = vmatprep.subr.mxu0 0.0
    %2295 = vmatpush1.xpose.msra.mxu0 0.0
    %2296 = vmatprep.subr.mxu0 0.0
    %2297 = vmatpush1.xpose.msra.mxu0 0.0
    %2298 = vmatprep.subr.mxu0 0.0
    %2299 = vmatpush1.xpose.msra.mxu0 0.0
    %2300 = vmatprep.subr.mxu0 0.0
    %2301 = vmatpush1.xpose.msra.mxu0 0.0
    %2302 = vmatprep.subr.mxu0 0.0
    %2303 = vmatpush1.xpose.msra.mxu0 0.0
    %2304 = vmatprep.subr.mxu0 0.0
    %2305 = vmatpush1.xpose.msra.mxu0 0.0
    %2306 = vmatprep.subr.mxu0 0.0
    %2307 = vmatpush1.xpose.msra.mxu0 0.0
    %2308 = vmatprep.subr.mxu0 0.0
    %2309 = vmatpush1.xpose.msra.mxu0 0.0
    %2310 = vmatprep.subr.mxu0 0.0
    %2311 = vmatpush1.xpose.msra.mxu0 0.0
    %2312 = vmatprep.subr.mxu0 0.0
    %2313 = vmatpush1.xpose.msra.mxu0 0.0
    %2314 = vmatprep.subr.mxu0 0.0
    %2315 = vmatpush1.xpose.msra.mxu0 0.0
    %2316 = vmatprep.subr.mxu0 0.0
    %2317 = vmatpush1.xpose.msra.mxu0 0.0
    %2318 = vmatprep.subr.mxu0 0.0
    %2319 = vmatpush1.xpose.msra.mxu0 %v2292
    %2320 = vmatprep.subr.mxu0 0.0
    %2321 = vmatpush1.xpose.msra.mxu0 %v2289
    %2322 = vmatprep.subr.mxu0 0.0
    %2323 = vmatpush1.xpose.msra.mxu0 %v2286
    %2324 = vmatprep.subr.mxu0 0.0
    %2325 = vmatpush1.xpose.msra.mxu0 %v2283
    %2326 = vmatprep.subr.mxu0 0.0
    %2327 = vmatpush2.xpose.msra.mxu0 0.0
    %2328 = vmatprep.subr.mxu0 0.0
    %2329 = vmatpush2.xpose.msra.mxu0 0.0
    %2330 = vmatprep.subr.mxu0 0.0
    %2331 = vmatpush2.xpose.msra.mxu0 0.0
    %2332 = vmatprep.subr.mxu0 0.0
    %2333 = vmatpush2.xpose.msra.mxu0 0.0
    %2334 = vmatprep.subr.mxu0 0.0
    %2335 = vmatpush2.xpose.msra.mxu0 0.0
    %2336 = vmatprep.subr.mxu0 0.0
    %2337 = vmatpush2.xpose.msra.mxu0 0.0
    %2338 = vmatprep.subr.mxu0 0.0
    %2339 = vmatpush2.xpose.msra.mxu0 0.0
    %2340 = vmatprep.subr.mxu0 0.0
    %2341 = vmatpush2.xpose.msra.mxu0 0.0
    %2342 = vmatprep.subr.mxu0 0.0
    %2343 = vmatpush2.xpose.msra.mxu0 0.0
    %2344 = vmatprep.subr.mxu0 0.0
    %2345 = vmatpush2.xpose.msra.mxu0 0.0
    %2346 = vmatprep.subr.mxu0 0.0
    %2347 = vmatpush2.xpose.msra.mxu0 0.0
    %2348 = vmatprep.subr.mxu0 0.0
    %2349 = vmatpush2.xpose.msra.mxu0 0.0
    %2350 = vmatprep.subr.mxu0 0.0
    %2351 = vmatpush2.xpose.msra.mxu0 0.0
    %2352 = vmatprep.subr.mxu0 0.0
    %2353 = vmatpush2.xpose.msra.mxu0 0.0
    %2354 = vmatprep.subr.mxu0 0.0
    %2355 = vmatpush2.xpose.msra.mxu0 0.0
    %2356 = vmatprep.subr.mxu0 0.0
    %2357 = vmatpush2.xpose.msra.mxu0 0.0
    %2358 = vmatprep.mubr.f32.mxu0 0.0
    %2359 = vmatmul.mubr.f32.gmra.mxu0 %v2280
    %v2360 = vpop.f32.mrf.mxu0
    %v2361 = vadd.f32 0.0, %v2360
    %v2362 = vpop.f32.mrf.mxu0
    %2363 = vdwg.mxu0
    %v2364 = vsel %vm160, %v779, 0
    %v2367 = vsel %vm160, %v2020, 0
    %v2370 = vsel %vm160, %v2021, 0
    %v2373 = vsel %vm160, %v2022, 0
    %v2376 = vsel %vm160, %v2023, 0
    %2378 = vmatprep.subr.mxu0 0.0
    %2379 = vmatpush1.xpose.msra.mxu0 0.0
    %2380 = vmatprep.subr.mxu0 0.0
    %2381 = vmatpush1.xpose.msra.mxu0 0.0
    %2382 = vmatprep.subr.mxu0 0.0
    %2383 = vmatpush1.xpose.msra.mxu0 0.0
    %2384 = vmatprep.subr.mxu0 0.0
    %2385 = vmatpush1.xpose.msra.mxu0 0.0
    %2386 = vmatprep.subr.mxu0 0.0
    %2387 = vmatpush1.xpose.msra.mxu0 0.0
    %2388 = vmatprep.subr.mxu0 0.0
    %2389 = vmatpush1.xpose.msra.mxu0 0.0
    %2390 = vmatprep.subr.mxu0 0.0
    %2391 = vmatpush1.xpose.msra.mxu0 0.0
    %2392 = vmatprep.subr.mxu0 0.0
    %2393 = vmatpush1.xpose.msra.mxu0 0.0
    %2394 = vmatprep.subr.mxu0 0.0
    %2395 = vmatpush1.xpose.msra.mxu0 0.0
    %2396 = vmatprep.subr.mxu0 0.0
    %2397 = vmatpush1.xpose.msra.mxu0 0.0
    %2398 = vmatprep.subr.mxu0 0.0
    %2399 = vmatpush1.xpose.msra.mxu0 0.0
    %2400 = vmatprep.subr.mxu0 0.0
    %2401 = vmatpush1.xpose.msra.mxu0 0.0
    %2402 = vmatprep.subr.mxu0 0.0
    %2403 = vmatpush1.xpose.msra.mxu0 %v2376
    %2404 = vmatprep.subr.mxu0 0.0
    %2405 = vmatpush1.xpose.msra.mxu0 %v2373
    %2406 = vmatprep.subr.mxu0 0.0
    %2407 = vmatpush1.xpose.msra.mxu0 %v2370
    %2408 = vmatprep.subr.mxu0 0.0
    %2409 = vmatpush1.xpose.msra.mxu0 %v2367
    %2410 = vmatprep.subr.mxu0 0.0
    %2411 = vmatpush2.xpose.msra.mxu0 0.0
    %2412 = vmatprep.subr.mxu0 0.0
    %2413 = vmatpush2.xpose.msra.mxu0 0.0
    %2414 = vmatprep.subr.mxu0 0.0
    %2415 = vmatpush2.xpose.msra.mxu0 0.0
    %2416 = vmatprep.subr.mxu0 0.0
    %2417 = vmatpush2.xpose.msra.mxu0 0.0
    %2418 = vmatprep.subr.mxu0 0.0
    %2419 = vmatpush2.xpose.msra.mxu0 0.0
    %2420 = vmatprep.subr.mxu0 0.0
    %2421 = vmatpush2.xpose.msra.mxu0 0.0
    %2422 = vmatprep.subr.mxu0 0.0
    %2423 = vmatpush2.xpose.msra.mxu0 0.0
    %2424 = vmatprep.subr.mxu0 0.0
    %2425 = vmatpush2.xpose.msra.mxu0 0.0
    %2426 = vmatprep.subr.mxu0 0.0
    %2427 = vmatpush2.xpose.msra.mxu0 0.0
    %2428 = vmatprep.subr.mxu0 0.0
    %2429 = vmatpush2.xpose.msra.mxu0 0.0
    %2430 = vmatprep.subr.mxu0 0.0
    %2431 = vmatpush2.xpose.msra.mxu0 0.0
    %2432 = vmatprep.subr.mxu0 0.0
    %2433 = vmatpush2.xpose.msra.mxu0 0.0
    %2434 = vmatprep.subr.mxu0 0.0
    %2435 = vmatpush2.xpose.msra.mxu0 0.0
    %2436 = vmatprep.subr.mxu0 0.0
    %2437 = vmatpush2.xpose.msra.mxu0 0.0
    %2438 = vmatprep.subr.mxu0 0.0
    %2439 = vmatpush2.xpose.msra.mxu0 0.0
    %2440 = vmatprep.subr.mxu0 0.0
    %2441 = vmatpush2.xpose.msra.mxu0 0.0
    %2442 = vmatprep.mubr.f32.mxu0 0.0
    %2443 = vmatmul.mubr.f32.gmra.mxu0 %v2364
    %v2444 = vpop.f32.mrf.mxu0
    %v2445 = vadd.f32 0.0, %v2444
    %v2446 = vpop.f32.mrf.mxu0
    %2447 = vdwg.mxu0
    %v2448 = vsel %vm160, %v781, 0
    %v2451 = vsel %vm160, %v2024, 0
    %v2454 = vsel %vm160, %v2025, 0
    %v2457 = vsel %vm160, %v2026, 0
    %v2460 = vsel %vm160, %v2027, 0
    %2462 = vmatprep.subr.mxu0 0.0
    %2463 = vmatpush1.xpose.msra.mxu0 0.0
    %2464 = vmatprep.subr.mxu0 0.0
    %2465 = vmatpush1.xpose.msra.mxu0 0.0
    %2466 = vmatprep.subr.mxu0 0.0
    %2467 = vmatpush1.xpose.msra.mxu0 0.0
    %2468 = vmatprep.subr.mxu0 0.0
    %2469 = vmatpush1.xpose.msra.mxu0 0.0
    %2470 = vmatprep.subr.mxu0 0.0
    %2471 = vmatpush1.xpose.msra.mxu0 0.0
    %2472 = vmatprep.subr.mxu0 0.0
    %2473 = vmatpush1.xpose.msra.mxu0 0.0
    %2474 = vmatprep.subr.mxu0 0.0
    %2475 = vmatpush1.xpose.msra.mxu0 0.0
    %2476 = vmatprep.subr.mxu0 0.0
    %2477 = vmatpush1.xpose.msra.mxu0 0.0
    %2478 = vmatprep.subr.mxu0 0.0
    %2479 = vmatpush1.xpose.msra.mxu0 0.0
    %2480 = vmatprep.subr.mxu0 0.0
    %2481 = vmatpush1.xpose.msra.mxu0 0.0
    %2482 = vmatprep.subr.mxu0 0.0
    %2483 = vmatpush1.xpose.msra.mxu0 0.0
    %2484 = vmatprep.subr.mxu0 0.0
    %2485 = vmatpush1.xpose.msra.mxu0 0.0
    %2486 = vmatprep.subr.mxu0 0.0
    %2487 = vmatpush1.xpose.msra.mxu0 %v2460
    %2488 = vmatprep.subr.mxu0 0.0
    %2489 = vmatpush1.xpose.msra.mxu0 %v2457
    %2490 = vmatprep.subr.mxu0 0.0
    %2491 = vmatpush1.xpose.msra.mxu0 %v2454
    %2492 = vmatprep.subr.mxu0 0.0
    %2493 = vmatpush1.xpose.msra.mxu0 %v2451
    %2494 = vmatprep.subr.mxu0 0.0
    %2495 = vmatpush2.xpose.msra.mxu0 0.0
    %2496 = vmatprep.subr.mxu0 0.0
    %2497 = vmatpush2.xpose.msra.mxu0 0.0
    %2498 = vmatprep.subr.mxu0 0.0
    %2499 = vmatpush2.xpose.msra.mxu0 0.0
    %2500 = vmatprep.subr.mxu0 0.0
    %2501 = vmatpush2.xpose.msra.mxu0 0.0
    %2502 = vmatprep.subr.mxu0 0.0
    %2503 = vmatpush2.xpose.msra.mxu0 0.0
    %2504 = vmatprep.subr.mxu0 0.0
    %2505 = vmatpush2.xpose.msra.mxu0 0.0
    %2506 = vmatprep.subr.mxu0 0.0
    %2507 = vmatpush2.xpose.msra.mxu0 0.0
    %2508 = vmatprep.subr.mxu0 0.0
    %2509 = vmatpush2.xpose.msra.mxu0 0.0
    %2510 = vmatprep.subr.mxu0 0.0
    %2511 = vmatpush2.xpose.msra.mxu0 0.0
    %2512 = vmatprep.subr.mxu0 0.0
    %2513 = vmatpush2.xpose.msra.mxu0 0.0
    %2514 = vmatprep.subr.mxu0 0.0
    %2515 = vmatpush2.xpose.msra.mxu0 0.0
    %2516 = vmatprep.subr.mxu0 0.0
    %2517 = vmatpush2.xpose.msra.mxu0 0.0
    %2518 = vmatprep.subr.mxu0 0.0
    %2519 = vmatpush2.xpose.msra.mxu0 0.0
    %2520 = vmatprep.subr.mxu0 0.0
    %2521 = vmatpush2.xpose.msra.mxu0 0.0
    %2522 = vmatprep.subr.mxu0 0.0
    %2523 = vmatpush2.xpose.msra.mxu0 0.0
    %2524 = vmatprep.subr.mxu0 0.0
    %2525 = vmatpush2.xpose.msra.mxu0 0.0
    %2526 = vmatprep.mubr.f32.mxu0 0.0
    %2527 = vmatmul.mubr.f32.gmra.mxu0 %v2448
    %v2528 = vpop.f32.mrf.mxu0
    %v2529 = vadd.f32 0.0, %v2528
    %v2530 = vpop.f32.mrf.mxu0
    %2531 = vdwg.mxu0
    %2538 = vrot.lane.b32.xlu0 %v2109, 112
    %v2539 = vpop.permute.xlu0 %2538
    %2540 = vrot.lane.b32.xlu0 %v2193, 112
    %v2541 = vpop.permute.xlu0 %2540
    %2542 = vrot.lane.b32.xlu0 %v2277, 112
    %v2543 = vpop.permute.xlu0 %2542
    %2544 = vrot.lane.b32.xlu0 %v2361, 112
    %v2545 = vpop.permute.xlu0 %2544
    %2546 = vrot.lane.b32.xlu0 %v2445, 112
    %v2547 = vpop.permute.xlu0 %2546
    %2548 = vrot.lane.b32.xlu0 %v2529, 112
    %v2549 = vpop.permute.xlu0 %2548
    %2550 = vrot.lane.b32.xlu0 %v2109, 16
    %v2551 = vpop.permute.xlu0 %2550
    %2552 = vrot.lane.b32.xlu0 %v2193, 16
    %v2553 = vpop.permute.xlu0 %2552
    %2554 = vrot.lane.b32.xlu0 %v2277, 16
    %v2555 = vpop.permute.xlu0 %2554
    %2556 = vrot.lane.b32.xlu0 %v2361, 16
    %v2557 = vpop.permute.xlu0 %2556
    %2558 = vrot.lane.b32.xlu0 %v2445, 16
    %v2559 = vpop.permute.xlu0 %2558
    %2560 = vrot.lane.b32.xlu0 %v2529, 16
    %v2561 = vpop.permute.xlu0 %2560
    %2562 = vrot.lane.b32.xlu0 %v2539, 16
    %v2563 = vpop.permute.xlu0 %2562
    %2564 = vrot.lane.b32.xlu0 %v2541, 16
    %v2565 = vpop.permute.xlu0 %2564
    %2566 = vrot.lane.b32.xlu0 %v2543, 16
    %v2567 = vpop.permute.xlu0 %2566
    %2568 = vrot.lane.b32.xlu0 %v2545, 16
    %v2569 = vpop.permute.xlu0 %2568
    %2570 = vrot.lane.b32.xlu0 %v2547, 16
    %v2571 = vpop.permute.xlu0 %2570
    %2572 = vrot.lane.b32.xlu0 %v2549, 16
    %v2573 = vpop.permute.xlu0 %2572
    %v2586 = vsel %vm463, %v909, %v2551
    %v2587 = vsel %vm463, %v914, %v2553
    %v2588 = vsel %vm463, %v919, %v2555
    %v2589 = vsel %vm463, %v924, %v2557
    %v2590 = vsel %vm463, %v929, %v2559
    %v2591 = vsel %vm463, %v934, %v2561
    %v2592 = vsel %vm463, %v939, %v2563
    %v2593 = vsel %vm463, %v944, %v2565
    %v2594 = vsel %vm463, %v949, %v2567
    %v2595 = vsel %vm463, %v954, %v2569
    %v2596 = vsel %vm463, %v959, %v2571
    %v2597 = vsel %vm463, %v964, %v2573
    %v2598 = vld [vmem:[#allocation2 + $0x138] sm:$0xff]
    %v2599 = vld [vmem:[#allocation2 + $0x140] sm:$0xff]
    %v2600 = vld [vmem:[#allocation2 + $0x148] sm:$0xff]
    %v2601 = vld [vmem:[#allocation2 + $0x150] sm:$0xff]
    %v2603 = vsel %vm160, %v2586, 0
    %v2606 = vsel %vm160, %v2587, 0
    %v2609 = vsel %vm160, %v2588, 0
    %v2612 = vsel %vm160, %v2589, 0
    %v2615 = vsel %vm160, %v2590, 0
    %v2618 = vsel %vm160, %v2591, 0
    %v2621 = vsel %vm160, %v2592, 0
    %v2624 = vsel %vm160, %v2593, 0
    %v2627 = vsel %vm160, %v2594, 0
    %v2630 = vsel %vm160, %v2595, 0
    %v2633 = vsel %vm160, %v2596, 0
    %v2636 = vsel %vm160, %v2597, 0
    %2638 = vmatprep.subr.mxu0 0.0
    %2639 = vmatpush1.msra.mxu0 0.0
    %2640 = vmatprep.subr.mxu0 0.0
    %2641 = vmatpush1.msra.mxu0 0.0
    %2642 = vmatprep.subr.mxu0 0.0
    %2643 = vmatpush1.msra.mxu0 0.0
    %2644 = vmatprep.subr.mxu0 0.0
    %2645 = vmatpush1.msra.mxu0 0.0
    %2646 = vmatprep.subr.mxu0 0.0
    %2647 = vmatpush1.msra.mxu0 0.0
    %2648 = vmatprep.subr.mxu0 0.0
    %2649 = vmatpush1.msra.mxu0 0.0
    %2650 = vmatprep.subr.mxu0 0.0
    %2651 = vmatpush1.msra.mxu0 0.0
    %2652 = vmatprep.subr.mxu0 0.0
    %2653 = vmatpush1.msra.mxu0 0.0
    %2654 = vmatprep.subr.mxu0 0.0
    %2655 = vmatpush1.msra.mxu0 0.0
    %2656 = vmatprep.subr.mxu0 0.0
    %2657 = vmatpush1.msra.mxu0 0.0
    %2658 = vmatprep.subr.mxu0 0.0
    %2659 = vmatpush1.msra.mxu0 0.0
    %2660 = vmatprep.subr.mxu0 0.0
    %2661 = vmatpush1.msra.mxu0 0.0
    %2662 = vmatprep.subr.mxu0 0.0
    %2663 = vmatpush1.msra.mxu0 %v2601
    %2664 = vmatprep.subr.mxu0 0.0
    %2665 = vmatpush1.msra.mxu0 %v2600
    %2666 = vmatprep.subr.mxu0 0.0
    %2667 = vmatpush1.msra.mxu0 %v2599
    %2668 = vmatprep.subr.mxu0 0.0
    %2669 = vmatpush1.msra.mxu0 %v2598
    %2670 = vmatprep.subr.mxu0 0.0
    %2671 = vmatpush2.msra.mxu0 0.0
    %2672 = vmatprep.subr.mxu0 0.0
    %2673 = vmatpush2.msra.mxu0 0.0
    %2674 = vmatprep.subr.mxu0 0.0
    %2675 = vmatpush2.msra.mxu0 0.0
    %2676 = vmatprep.subr.mxu0 0.0
    %2677 = vmatpush2.msra.mxu0 0.0
    %2678 = vmatprep.subr.mxu0 0.0
    %2679 = vmatpush2.msra.mxu0 0.0
    %2680 = vmatprep.subr.mxu0 0.0
    %2681 = vmatpush2.msra.mxu0 0.0
    %2682 = vmatprep.subr.mxu0 0.0
    %2683 = vmatpush2.msra.mxu0 0.0
    %2684 = vmatprep.subr.mxu0 0.0
    %2685 = vmatpush2.msra.mxu0 0.0
    %2686 = vmatprep.subr.mxu0 0.0
    %2687 = vmatpush2.msra.mxu0 0.0
    %2688 = vmatprep.subr.mxu0 0.0
    %2689 = vmatpush2.msra.mxu0 0.0
    %2690 = vmatprep.subr.mxu0 0.0
    %2691 = vmatpush2.msra.mxu0 0.0
    %2692 = vmatprep.subr.mxu0 0.0
    %2693 = vmatpush2.msra.mxu0 0.0
    %2694 = vmatprep.subr.mxu0 0.0
    %2695 = vmatpush2.msra.mxu0 0.0
    %2696 = vmatprep.subr.mxu0 0.0
    %2697 = vmatpush2.msra.mxu0 0.0
    %2698 = vmatprep.subr.mxu0 0.0
    %2699 = vmatpush2.msra.mxu0 0.0
    %2700 = vmatprep.subr.mxu0 0.0
    %2701 = vmatpush2.msra.mxu0 0.0
    %2702 = vmatprep.mubr.f32.mxu0 0.0
    %2703 = vmatmul.mubr.f32.gmra.mxu0 %v2603
    %v2704 = vpop.f32.mrf.mxu0
    %v2705 = vadd.f32 0.0, %v2704
    %v2706 = vpop.f32.mrf.mxu0
    %2707 = vmatprep.mubr.f32.mxu0 0.0
    %2708 = vmatmul.mubr.f32.gmra.mxu0 %v2606
    %v2709 = vpop.f32.mrf.mxu0
    %v2710 = vadd.f32 0.0, %v2709
    %v2711 = vpop.f32.mrf.mxu0
    %2712 = vmatprep.mubr.f32.mxu0 0.0
    %2713 = vmatmul.mubr.f32.gmra.mxu0 %v2609
    %v2714 = vpop.f32.mrf.mxu0
    %v2715 = vadd.f32 0.0, %v2714
    %v2716 = vpop.f32.mrf.mxu0
    %2717 = vmatprep.mubr.f32.mxu0 0.0
    %2718 = vmatmul.mubr.f32.gmra.mxu0 %v2612
    %v2719 = vpop.f32.mrf.mxu0
    %v2720 = vadd.f32 0.0, %v2719
    %v2721 = vpop.f32.mrf.mxu0
    %2722 = vmatprep.mubr.f32.mxu0 0.0
    %2723 = vmatmul.mubr.f32.gmra.mxu0 %v2615
    %v2724 = vpop.f32.mrf.mxu0
    %v2725 = vadd.f32 0.0, %v2724
    %v2726 = vpop.f32.mrf.mxu0
    %2727 = vmatprep.mubr.f32.mxu0 0.0
    %2728 = vmatmul.mubr.f32.gmra.mxu0 %v2618
    %v2729 = vpop.f32.mrf.mxu0
    %v2730 = vadd.f32 0.0, %v2729
    %v2731 = vpop.f32.mrf.mxu0
    %2732 = vmatprep.mubr.f32.mxu0 0.0
    %2733 = vmatmul.mubr.f32.gmra.mxu0 %v2621
    %v2734 = vpop.f32.mrf.mxu0
    %v2735 = vadd.f32 0.0, %v2734
    %v2736 = vpop.f32.mrf.mxu0
    %2737 = vmatprep.mubr.f32.mxu0 0.0
    %2738 = vmatmul.mubr.f32.gmra.mxu0 %v2624
    %v2739 = vpop.f32.mrf.mxu0
    %v2740 = vadd.f32 0.0, %v2739
    %v2741 = vpop.f32.mrf.mxu0
    %2742 = vmatprep.mubr.f32.mxu0 0.0
    %2743 = vmatmul.mubr.f32.gmra.mxu0 %v2627
    %v2744 = vpop.f32.mrf.mxu0
    %v2745 = vadd.f32 0.0, %v2744
    %v2746 = vpop.f32.mrf.mxu0
    %2747 = vmatprep.mubr.f32.mxu0 0.0
    %2748 = vmatmul.mubr.f32.gmra.mxu0 %v2630
    %v2749 = vpop.f32.mrf.mxu0
    %v2750 = vadd.f32 0.0, %v2749
    %v2751 = vpop.f32.mrf.mxu0
    %2752 = vmatprep.mubr.f32.mxu0 0.0
    %2753 = vmatmul.mubr.f32.gmra.mxu0 %v2633
    %v2754 = vpop.f32.mrf.mxu0
    %v2755 = vadd.f32 0.0, %v2754
    %v2756 = vpop.f32.mrf.mxu0
    %2757 = vmatprep.mubr.f32.mxu0 0.0
    %2758 = vmatmul.mubr.f32.gmra.mxu0 %v2636
    %v2759 = vpop.f32.mrf.mxu0
    %v2760 = vadd.f32 0.0, %v2759
    %v2761 = vpop.f32.mrf.mxu0
    %2762 = vdwg.mxu0
    %v2763 = vld [vmem:[#allocation2 + $0x158] sm:$0xff]
    %v2764 = vld [vmem:[#allocation2 + $0x160] sm:$0xff]
    %v2765 = vld [vmem:[#allocation2 + $0x168] sm:$0xff]
    %v2766 = vld [vmem:[#allocation2 + $0x170] sm:$0xff]
    %2767 = vmatprep.subr.mxu0 0.0
    %2768 = vmatpush1.msra.mxu0 0.0
    %2769 = vmatprep.subr.mxu0 0.0
    %2770 = vmatpush1.msra.mxu0 0.0
    %2771 = vmatprep.subr.mxu0 0.0
    %2772 = vmatpush1.msra.mxu0 0.0
    %2773 = vmatprep.subr.mxu0 0.0
    %2774 = vmatpush1.msra.mxu0 0.0
    %2775 = vmatprep.subr.mxu0 0.0
    %2776 = vmatpush1.msra.mxu0 0.0
    %2777 = vmatprep.subr.mxu0 0.0
    %2778 = vmatpush1.msra.mxu0 0.0
    %2779 = vmatprep.subr.mxu0 0.0
    %2780 = vmatpush1.msra.mxu0 0.0
    %2781 = vmatprep.subr.mxu0 0.0
    %2782 = vmatpush1.msra.mxu0 0.0
    %2783 = vmatprep.subr.mxu0 0.0
    %2784 = vmatpush1.msra.mxu0 0.0
    %2785 = vmatprep.subr.mxu0 0.0
    %2786 = vmatpush1.msra.mxu0 0.0
    %2787 = vmatprep.subr.mxu0 0.0
    %2788 = vmatpush1.msra.mxu0 0.0
    %2789 = vmatprep.subr.mxu0 0.0
    %2790 = vmatpush1.msra.mxu0 0.0
    %2791 = vmatprep.subr.mxu0 0.0
    %2792 = vmatpush1.msra.mxu0 %v2766
    %2793 = vmatprep.subr.mxu0 0.0
    %2794 = vmatpush1.msra.mxu0 %v2765
    %2795 = vmatprep.subr.mxu0 0.0
    %2796 = vmatpush1.msra.mxu0 %v2764
    %2797 = vmatprep.subr.mxu0 0.0
    %2798 = vmatpush1.msra.mxu0 %v2763
    %2799 = vmatprep.subr.mxu0 0.0
    %2800 = vmatpush2.msra.mxu0 0.0
    %2801 = vmatprep.subr.mxu0 0.0
    %2802 = vmatpush2.msra.mxu0 0.0
    %2803 = vmatprep.subr.mxu0 0.0
    %2804 = vmatpush2.msra.mxu0 0.0
    %2805 = vmatprep.subr.mxu0 0.0
    %2806 = vmatpush2.msra.mxu0 0.0
    %2807 = vmatprep.subr.mxu0 0.0
    %2808 = vmatpush2.msra.mxu0 0.0
    %2809 = vmatprep.subr.mxu0 0.0
    %2810 = vmatpush2.msra.mxu0 0.0
    %2811 = vmatprep.subr.mxu0 0.0
    %2812 = vmatpush2.msra.mxu0 0.0
    %2813 = vmatprep.subr.mxu0 0.0
    %2814 = vmatpush2.msra.mxu0 0.0
    %2815 = vmatprep.subr.mxu0 0.0
    %2816 = vmatpush2.msra.mxu0 0.0
    %2817 = vmatprep.subr.mxu0 0.0
    %2818 = vmatpush2.msra.mxu0 0.0
    %2819 = vmatprep.subr.mxu0 0.0
    %2820 = vmatpush2.msra.mxu0 0.0
    %2821 = vmatprep.subr.mxu0 0.0
    %2822 = vmatpush2.msra.mxu0 0.0
    %2823 = vmatprep.subr.mxu0 0.0
    %2824 = vmatpush2.msra.mxu0 0.0
    %2825 = vmatprep.subr.mxu0 0.0
    %2826 = vmatpush2.msra.mxu0 0.0
    %2827 = vmatprep.subr.mxu0 0.0
    %2828 = vmatpush2.msra.mxu0 0.0
    %2829 = vmatprep.subr.mxu0 0.0
    %2830 = vmatpush2.msra.mxu0 0.0
    %2831 = vmatprep.mubr.f32.mxu0 0.0
    %2832 = vmatmul.mubr.f32.gmra.mxu0 %v2603
    %v2833 = vpop.f32.mrf.mxu0
    %v2834 = vadd.f32 0.0, %v2833
    %v2835 = vpop.f32.mrf.mxu0
    %2836 = vmatprep.mubr.f32.mxu0 0.0
    %2837 = vmatmul.mubr.f32.gmra.mxu0 %v2606
    %v2838 = vpop.f32.mrf.mxu0
    %v2839 = vadd.f32 0.0, %v2838
    %v2840 = vpop.f32.mrf.mxu0
    %2841 = vmatprep.mubr.f32.mxu0 0.0
    %2842 = vmatmul.mubr.f32.gmra.mxu0 %v2609
    %v2843 = vpop.f32.mrf.mxu0
    %v2844 = vadd.f32 0.0, %v2843
    %v2845 = vpop.f32.mrf.mxu0
    %2846 = vmatprep.mubr.f32.mxu0 0.0
    %2847 = vmatmul.mubr.f32.gmra.mxu0 %v2612
    %v2848 = vpop.f32.mrf.mxu0
    %v2849 = vadd.f32 0.0, %v2848
    %v2850 = vpop.f32.mrf.mxu0
    %2851 = vmatprep.mubr.f32.mxu0 0.0
    %2852 = vmatmul.mubr.f32.gmra.mxu0 %v2615
    %v2853 = vpop.f32.mrf.mxu0
    %v2854 = vadd.f32 0.0, %v2853
    %v2855 = vpop.f32.mrf.mxu0
    %2856 = vmatprep.mubr.f32.mxu0 0.0
    %2857 = vmatmul.mubr.f32.gmra.mxu0 %v2618
    %v2858 = vpop.f32.mrf.mxu0
    %v2859 = vadd.f32 0.0, %v2858
    %v2860 = vpop.f32.mrf.mxu0
    %2861 = vmatprep.mubr.f32.mxu0 0.0
    %2862 = vmatmul.mubr.f32.gmra.mxu0 %v2621
    %v2863 = vpop.f32.mrf.mxu0
    %v2864 = vadd.f32 0.0, %v2863
    %v2865 = vpop.f32.mrf.mxu0
    %2866 = vmatprep.mubr.f32.mxu0 0.0
    %2867 = vmatmul.mubr.f32.gmra.mxu0 %v2624
    %v2868 = vpop.f32.mrf.mxu0
    %v2869 = vadd.f32 0.0, %v2868
    %v2870 = vpop.f32.mrf.mxu0
    %2871 = vmatprep.mubr.f32.mxu0 0.0
    %2872 = vmatmul.mubr.f32.gmra.mxu0 %v2627
    %v2873 = vpop.f32.mrf.mxu0
    %v2874 = vadd.f32 0.0, %v2873
    %v2875 = vpop.f32.mrf.mxu0
    %2876 = vmatprep.mubr.f32.mxu0 0.0
    %2877 = vmatmul.mubr.f32.gmra.mxu0 %v2630
    %v2878 = vpop.f32.mrf.mxu0
    %v2879 = vadd.f32 0.0, %v2878
    %v2880 = vpop.f32.mrf.mxu0
    %2881 = vmatprep.mubr.f32.mxu0 0.0
    %2882 = vmatmul.mubr.f32.gmra.mxu0 %v2633
    %v2883 = vpop.f32.mrf.mxu0
    %v2884 = vadd.f32 0.0, %v2883
    %v2885 = vpop.f32.mrf.mxu0
    %2886 = vmatprep.mubr.f32.mxu0 0.0
    %2887 = vmatmul.mubr.f32.gmra.mxu0 %v2636
    %v2888 = vpop.f32.mrf.mxu0
    %v2889 = vadd.f32 0.0, %v2888
    %v2890 = vpop.f32.mrf.mxu0
    %2891 = vdwg.mxu0
    %v2892 = vld [vmem:[#allocation2 + $0xd8] sm:$0xff]
    %v2893 = vld [vmem:[#allocation2 + $0xe0] sm:$0xff]
    %v2894 = vld [vmem:[#allocation2 + $0xe8] sm:$0xff]
    %v2895 = vld [vmem:[#allocation2 + $0xf0] sm:$0xff]
    %v2896 = vld [vmem:[#allocation2 + $0xf8] sm:$0xff]
    %v2897 = vld [vmem:[#allocation2 + $0x100] sm:$0xff]
    %v2899 = vsel %vm637, %v2892, 0
    %v2902 = vsel %vm637, %v2893, 0
    %v2905 = vsel %vm637, %v2894, 0
    %v2908 = vsel %vm637, %v2895, 0
    %v2911 = vsel %vm637, %v2896, 0
    %v2914 = vsel %vm637, %v2897, 0
    %2916 = vmatprep.subr.mxu0 0.0
    %2917 = vmatpush1.msra.mxu0 0.0
    %2918 = vmatprep.subr.mxu0 0.0
    %2919 = vmatpush1.msra.mxu0 0.0
    %2920 = vmatprep.subr.mxu0 0.0
    %2921 = vmatpush1.msra.mxu0 0.0
    %2922 = vmatprep.subr.mxu0 0.0
    %2923 = vmatpush1.msra.mxu0 0.0
    %2924 = vmatprep.subr.mxu0 0.0
    %2925 = vmatpush1.msra.mxu0 %v2760
    %2926 = vmatprep.subr.mxu0 0.0
    %2927 = vmatpush1.msra.mxu0 %v2755
    %2928 = vmatprep.subr.mxu0 0.0
    %2929 = vmatpush1.msra.mxu0 %v2750
    %2930 = vmatprep.subr.mxu0 0.0
    %2931 = vmatpush1.msra.mxu0 %v2745
    %2932 = vmatprep.subr.mxu0 0.0
    %2933 = vmatpush1.msra.mxu0 %v2740
    %2934 = vmatprep.subr.mxu0 0.0
    %2935 = vmatpush1.msra.mxu0 %v2735
    %2936 = vmatprep.subr.mxu0 0.0
    %2937 = vmatpush1.msra.mxu0 %v2730
    %2938 = vmatprep.subr.mxu0 0.0
    %2939 = vmatpush1.msra.mxu0 %v2725
    %2940 = vmatprep.subr.mxu0 0.0
    %2941 = vmatpush1.msra.mxu0 %v2720
    %2942 = vmatprep.subr.mxu0 0.0
    %2943 = vmatpush1.msra.mxu0 %v2715
    %2944 = vmatprep.subr.mxu0 0.0
    %2945 = vmatpush1.msra.mxu0 %v2710
    %2946 = vmatprep.subr.mxu0 0.0
    %2947 = vmatpush1.msra.mxu0 %v2705
    %2948 = vmatprep.subr.mxu0 0.0
    %2949 = vmatpush2.msra.mxu0 0.0
    %2950 = vmatprep.subr.mxu0 0.0
    %2951 = vmatpush2.msra.mxu0 0.0
    %2952 = vmatprep.subr.mxu0 0.0
    %2953 = vmatpush2.msra.mxu0 0.0
    %2954 = vmatprep.subr.mxu0 0.0
    %2955 = vmatpush2.msra.mxu0 0.0
    %2956 = vmatprep.subr.mxu0 0.0
    %2957 = vmatpush2.msra.mxu0 0.0
    %2958 = vmatprep.subr.mxu0 0.0
    %2959 = vmatpush2.msra.mxu0 0.0
    %2960 = vmatprep.subr.mxu0 0.0
    %2961 = vmatpush2.msra.mxu0 0.0
    %2962 = vmatprep.subr.mxu0 0.0
    %2963 = vmatpush2.msra.mxu0 0.0
    %2964 = vmatprep.subr.mxu0 0.0
    %2965 = vmatpush2.msra.mxu0 0.0
    %2966 = vmatprep.subr.mxu0 0.0
    %2967 = vmatpush2.msra.mxu0 0.0
    %2968 = vmatprep.subr.mxu0 0.0
    %2969 = vmatpush2.msra.mxu0 0.0
    %2970 = vmatprep.subr.mxu0 0.0
    %2971 = vmatpush2.msra.mxu0 0.0
    %2972 = vmatprep.subr.mxu0 0.0
    %2973 = vmatpush2.msra.mxu0 0.0
    %2974 = vmatprep.subr.mxu0 0.0
    %2975 = vmatpush2.msra.mxu0 0.0
    %2976 = vmatprep.subr.mxu0 0.0
    %2977 = vmatpush2.msra.mxu0 0.0
    %2978 = vmatprep.subr.mxu0 0.0
    %2979 = vmatpush2.msra.mxu0 0.0
    %2980 = vmatprep.mubr.f32.mxu0 0.0
    %2981 = vmatmul.mubr.f32.gmra.mxu0 %v2899
    %v2982 = vpop.f32.mrf.mxu0
    %v2983 = vadd.f32 0.0, %v2982
    %v2984 = vpop.f32.mrf.mxu0
    %2985 = vmatprep.mubr.f32.mxu0 0.0
    %2986 = vmatmul.mubr.f32.gmra.mxu0 %v2902
    %v2987 = vpop.f32.mrf.mxu0
    %v2988 = vadd.f32 0.0, %v2987
    %v2989 = vpop.f32.mrf.mxu0
    %2990 = vmatprep.mubr.f32.mxu0 0.0
    %2991 = vmatmul.mubr.f32.gmra.mxu0 %v2905
    %v2992 = vpop.f32.mrf.mxu0
    %v2993 = vadd.f32 0.0, %v2992
    %v2994 = vpop.f32.mrf.mxu0
    %2995 = vmatprep.mubr.f32.mxu0 0.0
    %2996 = vmatmul.mubr.f32.gmra.mxu0 %v2908
    %v2997 = vpop.f32.mrf.mxu0
    %v2998 = vadd.f32 0.0, %v2997
    %v2999 = vpop.f32.mrf.mxu0
    %3000 = vmatprep.mubr.f32.mxu0 0.0
    %3001 = vmatmul.mubr.f32.gmra.mxu0 %v2911
    %v3002 = vpop.f32.mrf.mxu0
    %v3003 = vadd.f32 0.0, %v3002
    %v3004 = vpop.f32.mrf.mxu0
    %3005 = vmatprep.mubr.f32.mxu0 0.0
    %3006 = vmatmul.mubr.f32.gmra.mxu0 %v2914
    %v3007 = vpop.f32.mrf.mxu0
    %v3008 = vadd.f32 0.0, %v3007
    %v3009 = vpop.f32.mrf.mxu0
    %3010 = vdwg.mxu0
    %v3011 = vlaneseq
    %v3012 = vshrl.u32 %v3011, 7
    %v3013 = vsub.s32 2, %v3012
    %v3014 = vrot.slane %v25, %v3013
    %v3015 = vadd.f32 %v3014, %v2983
    %v3016 = vadd.f32 %v3014, %v2988
    %v3017 = vadd.f32 %v3014, %v2993
    %v3018 = vadd.f32 %v3014, %v2998
    %v3019 = vadd.f32 %v3014, %v3003
    %v3020 = vadd.f32 %v3014, %v3008
    %v3021 = vld [vmem:[#allocation2 + $0x108] sm:$0xff]
    %v3022 = vld [vmem:[#allocation2 + $0x110] sm:$0xff]
    %v3023 = vld [vmem:[#allocation2 + $0x118] sm:$0xff]
    %v3024 = vld [vmem:[#allocation2 + $0x120] sm:$0xff]
    %v3025 = vld [vmem:[#allocation2 + $0x128] sm:$0xff]
    %v3026 = vld [vmem:[#allocation2 + $0x130] sm:$0xff]
    %v3028 = vsel %vm637, %v3021, 0
    %v3031 = vsel %vm637, %v3022, 0
    %v3034 = vsel %vm637, %v3023, 0
    %v3037 = vsel %vm637, %v3024, 0
    %v3040 = vsel %vm637, %v3025, 0
    %v3043 = vsel %vm637, %v3026, 0
    %3045 = vmatprep.subr.mxu0 0.0
    %3046 = vmatpush1.msra.mxu0 0.0
    %3047 = vmatprep.subr.mxu0 0.0
    %3048 = vmatpush1.msra.mxu0 0.0
    %3049 = vmatprep.subr.mxu0 0.0
    %3050 = vmatpush1.msra.mxu0 0.0
    %3051 = vmatprep.subr.mxu0 0.0
    %3052 = vmatpush1.msra.mxu0 0.0
    %3053 = vmatprep.subr.mxu0 0.0
    %3054 = vmatpush1.msra.mxu0 %v2889
    %3055 = vmatprep.subr.mxu0 0.0
    %3056 = vmatpush1.msra.mxu0 %v2884
    %3057 = vmatprep.subr.mxu0 0.0
    %3058 = vmatpush1.msra.mxu0 %v2879
    %3059 = vmatprep.subr.mxu0 0.0
    %3060 = vmatpush1.msra.mxu0 %v2874
    %3061 = vmatprep.subr.mxu0 0.0
    %3062 = vmatpush1.msra.mxu0 %v2869
    %3063 = vmatprep.subr.mxu0 0.0
    %3064 = vmatpush1.msra.mxu0 %v2864
    %3065 = vmatprep.subr.mxu0 0.0
    %3066 = vmatpush1.msra.mxu0 %v2859
    %3067 = vmatprep.subr.mxu0 0.0
    %3068 = vmatpush1.msra.mxu0 %v2854
    %3069 = vmatprep.subr.mxu0 0.0
    %3070 = vmatpush1.msra.mxu0 %v2849
    %3071 = vmatprep.subr.mxu0 0.0
    %3072 = vmatpush1.msra.mxu0 %v2844
    %3073 = vmatprep.subr.mxu0 0.0
    %3074 = vmatpush1.msra.mxu0 %v2839
    %3075 = vmatprep.subr.mxu0 0.0
    %3076 = vmatpush1.msra.mxu0 %v2834
    %3077 = vmatprep.subr.mxu0 0.0
    %3078 = vmatpush2.msra.mxu0 0.0
    %3079 = vmatprep.subr.mxu0 0.0
    %3080 = vmatpush2.msra.mxu0 0.0
    %3081 = vmatprep.subr.mxu0 0.0
    %3082 = vmatpush2.msra.mxu0 0.0
    %3083 = vmatprep.subr.mxu0 0.0
    %3084 = vmatpush2.msra.mxu0 0.0
    %3085 = vmatprep.subr.mxu0 0.0
    %3086 = vmatpush2.msra.mxu0 0.0
    %3087 = vmatprep.subr.mxu0 0.0
    %3088 = vmatpush2.msra.mxu0 0.0
    %3089 = vmatprep.subr.mxu0 0.0
    %3090 = vmatpush2.msra.mxu0 0.0
    %3091 = vmatprep.subr.mxu0 0.0
    %3092 = vmatpush2.msra.mxu0 0.0
    %3093 = vmatprep.subr.mxu0 0.0
    %3094 = vmatpush2.msra.mxu0 0.0
    %3095 = vmatprep.subr.mxu0 0.0
    %3096 = vmatpush2.msra.mxu0 0.0
    %3097 = vmatprep.subr.mxu0 0.0
    %3098 = vmatpush2.msra.mxu0 0.0
    %3099 = vmatprep.subr.mxu0 0.0
    %3100 = vmatpush2.msra.mxu0 0.0
    %3101 = vmatprep.subr.mxu0 0.0
    %3102 = vmatpush2.msra.mxu0 0.0
    %3103 = vmatprep.subr.mxu0 0.0
    %3104 = vmatpush2.msra.mxu0 0.0
    %3105 = vmatprep.subr.mxu0 0.0
    %3106 = vmatpush2.msra.mxu0 0.0
    %3107 = vmatprep.subr.mxu0 0.0
    %3108 = vmatpush2.msra.mxu0 0.0
    %3109 = vmatprep.mubr.f32.mxu0 0.0
    %3110 = vmatmul.mubr.f32.gmra.mxu0 %v3028
    %v3111 = vpop.f32.mrf.mxu0
    %v3112 = vadd.f32 0.0, %v3111
    %v3113 = vpop.f32.mrf.mxu0
    %3114 = vmatprep.mubr.f32.mxu0 0.0
    %3115 = vmatmul.mubr.f32.gmra.mxu0 %v3031
    %v3116 = vpop.f32.mrf.mxu0
    %v3117 = vadd.f32 0.0, %v3116
    %v3118 = vpop.f32.mrf.mxu0
    %3119 = vmatprep.mubr.f32.mxu0 0.0
    %3120 = vmatmul.mubr.f32.gmra.mxu0 %v3034
    %v3121 = vpop.f32.mrf.mxu0
    %v3122 = vadd.f32 0.0, %v3121
    %v3123 = vpop.f32.mrf.mxu0
    %3124 = vmatprep.mubr.f32.mxu0 0.0
    %3125 = vmatmul.mubr.f32.gmra.mxu0 %v3037
    %v3126 = vpop.f32.mrf.mxu0
    %v3127 = vadd.f32 0.0, %v3126
    %v3128 = vpop.f32.mrf.mxu0
    %3129 = vmatprep.mubr.f32.mxu0 0.0
    %3130 = vmatmul.mubr.f32.gmra.mxu0 %v3040
    %v3131 = vpop.f32.mrf.mxu0
    %v3132 = vadd.f32 0.0, %v3131
    %v3133 = vpop.f32.mrf.mxu0
    %3134 = vmatprep.mubr.f32.mxu0 0.0
    %3135 = vmatmul.mubr.f32.gmra.mxu0 %v3043
    %v3136 = vpop.f32.mrf.mxu0
    %v3137 = vadd.f32 0.0, %v3136
    %v3138 = vpop.f32.mrf.mxu0
    %3139 = vdwg.mxu0
    %v3140 = vadd.f32 %v3015, %v3112
    %v3141 = vadd.f32 %v3016, %v3117
    %v3142 = vadd.f32 %v3017, %v3122
    %v3143 = vadd.f32 %v3018, %v3127
    %v3144 = vadd.f32 %v3019, %v3132
    %v3145 = vadd.f32 %v3020, %v3137
    %v3146 = vmul.f32 %v3140, 0.5
    %v3147 = vmul.f32 %v3141, 0.5
    %v3148 = vmul.f32 %v3142, 0.5
    %v3149 = vmul.f32 %v3143, 0.5
    %v3150 = vmul.f32 %v3144, 0.5
    %v3151 = vmul.f32 %v3145, 0.5
    %v3152 = vmul.f32 %v3140, 0.70710677
    %v3153 = vmul.f32 %v3141, 0.70710677
    %v3154 = vmul.f32 %v3142, 0.70710677
    %v3155 = vmul.f32 %v3143, 0.70710677
    %v3156 = vmul.f32 %v3144, 0.70710677
    %v3157 = vmul.f32 %v3145, 0.70710677
    %v3158 = verf.f32.pop %v3152
    %v3159 = verf.f32.pop %v3153
    %v3160 = verf.f32.pop %v3154
    %v3161 = verf.f32.pop %v3155
    %v3162 = verf.f32.pop %v3156
    %v3163 = verf.f32.pop %v3157
    %v3164 = vadd.f32 %v3158, 1.0
    %v3165 = vadd.f32 %v3159, 1.0
    %v3166 = vadd.f32 %v3160, 1.0
    %v3167 = vadd.f32 %v3161, 1.0
    %v3168 = vadd.f32 %v3162, 1.0
    %v3169 = vadd.f32 %v3163, 1.0
    %v3170 = vmul.f32 %v3146, %v3164
    %v3171 = vmul.f32 %v3147, %v3165
    %v3172 = vmul.f32 %v3148, %v3166
    %v3173 = vmul.f32 %v3149, %v3167
    %v3174 = vmul.f32 %v3150, %v3168
    %v3175 = vmul.f32 %v3151, %v3169
    %v3176 = vld [vmem:[#allocation2 + $0x178] sm:$0xff]
    %v3177 = vld [vmem:[#allocation2 + $0x180] sm:$0xff]
    %v3178 = vld [vmem:[#allocation2 + $0x188] sm:$0xff]
    %v3179 = vld [vmem:[#allocation2 + $0x190] sm:$0xff]
    %v3180 = vld [vmem:[#allocation2 + $0x198] sm:$0xff]
    %v3181 = vld [vmem:[#allocation2 + $0x1a0] sm:$0xff]
    %v3182 = vld [vmem:[#allocation2 + $0x1a8] sm:$0xff]
    %v3183 = vld [vmem:[#allocation2 + $0x1b0] sm:$0xff]
    %v3184 = vld [vmem:[#allocation2 + $0x1b8] sm:$0xff]
    %v3185 = vld [vmem:[#allocation2 + $0x1c0] sm:$0xff]
    %v3186 = vld [vmem:[#allocation2 + $0x1c8] sm:$0xff]
    %v3187 = vld [vmem:[#allocation2 + $0x1d0] sm:$0xff]
    %v3188 = vld [vmem:[#allocation2 + $0x1d8] sm:$0xff]
    %v3189 = vld [vmem:[#allocation2 + $0x1e0] sm:$0xff]
    %v3190 = vld [vmem:[#allocation2 + $0x1e8] sm:$0xff]
    %v3191 = vld [vmem:[#allocation2 + $0x1f0] sm:$0xff]
    %v3192 = vlaneseq
    %v3193 = vshrl.u32 %v3192, 7
    %v3194 = vsub.s32 3, %v3193
    %v3195 = vrot.slane %v25, %v3194
    %3196 = vmatprep.subr.mxu0 0.0
    %3197 = vmatpush1.msra.mxu0 %v3191
    %3198 = vmatprep.subr.mxu0 0.0
    %3199 = vmatpush1.msra.mxu0 %v3190
    %3200 = vmatprep.subr.mxu0 0.0
    %3201 = vmatpush1.msra.mxu0 %v3189
    %3202 = vmatprep.subr.mxu0 0.0
    %3203 = vmatpush1.msra.mxu0 %v3188
    %3204 = vmatprep.subr.mxu0 0.0
    %3205 = vmatpush1.msra.mxu0 %v3187
    %3206 = vmatprep.subr.mxu0 0.0
    %3207 = vmatpush1.msra.mxu0 %v3186
    %3208 = vmatprep.subr.mxu0 0.0
    %3209 = vmatpush1.msra.mxu0 %v3185
    %3210 = vmatprep.subr.mxu0 0.0
    %3211 = vmatpush1.msra.mxu0 %v3184
    %3212 = vmatprep.subr.mxu0 0.0
    %3213 = vmatpush1.msra.mxu0 %v3183
    %3214 = vmatprep.subr.mxu0 0.0
    %3215 = vmatpush1.msra.mxu0 %v3182
    %3216 = vmatprep.subr.mxu0 0.0
    %3217 = vmatpush1.msra.mxu0 %v3181
    %3218 = vmatprep.subr.mxu0 0.0
    %3219 = vmatpush1.msra.mxu0 %v3180
    %3220 = vmatprep.subr.mxu0 0.0
    %3221 = vmatpush1.msra.mxu0 %v3179
    %3222 = vmatprep.subr.mxu0 0.0
    %3223 = vmatpush1.msra.mxu0 %v3178
    %3224 = vmatprep.subr.mxu0 0.0
    %3225 = vmatpush1.msra.mxu0 %v3177
    %3226 = vmatprep.subr.mxu0 0.0
    %3227 = vmatpush1.msra.mxu0 %v3176
    %3228 = vmatprep.subr.mxu0 0.0
    %3229 = vmatpush2.msra.mxu0 0.0
    %3230 = vmatprep.subr.mxu0 0.0
    %3231 = vmatpush2.msra.mxu0 0.0
    %3232 = vmatprep.subr.mxu0 0.0
    %3233 = vmatpush2.msra.mxu0 0.0
    %3234 = vmatprep.subr.mxu0 0.0
    %3235 = vmatpush2.msra.mxu0 0.0
    %3236 = vmatprep.subr.mxu0 0.0
    %3237 = vmatpush2.msra.mxu0 0.0
    %3238 = vmatprep.subr.mxu0 0.0
    %3239 = vmatpush2.msra.mxu0 0.0
    %3240 = vmatprep.subr.mxu0 0.0
    %3241 = vmatpush2.msra.mxu0 0.0
    %3242 = vmatprep.subr.mxu0 0.0
    %3243 = vmatpush2.msra.mxu0 0.0
    %3244 = vmatprep.subr.mxu0 0.0
    %3245 = vmatpush2.msra.mxu0 0.0
    %3246 = vmatprep.subr.mxu0 0.0
    %3247 = vmatpush2.msra.mxu0 0.0
    %3248 = vmatprep.subr.mxu0 0.0
    %3249 = vmatpush2.msra.mxu0 0.0
    %3250 = vmatprep.subr.mxu0 0.0
    %3251 = vmatpush2.msra.mxu0 0.0
    %3252 = vmatprep.subr.mxu0 0.0
    %3253 = vmatpush2.msra.mxu0 0.0
    %3254 = vmatprep.subr.mxu0 0.0
    %3255 = vmatpush2.msra.mxu0 0.0
    %3256 = vmatprep.subr.mxu0 0.0
    %3257 = vmatpush2.msra.mxu0 0.0
    %3258 = vmatprep.subr.mxu0 0.0
    %3259 = vmatpush2.msra.mxu0 0.0
    %3260 = vmatprep.mubr.f32.mxu0 0.0
    %3261 = vmatmul.mubr.f32.gmra.mxu0 %v3170
    %v3262 = vpop.f32.mrf.mxu0
    %v3263 = vadd.f32 %v3195, %v3262
    %v3264 = vpop.f32.mrf.mxu0
    %3265 = vmatprep.mubr.f32.mxu0 0.0
    %3266 = vmatmul.mubr.f32.gmra.mxu0 %v3171
    %v3267 = vpop.f32.mrf.mxu0
    %v3268 = vadd.f32 %v3195, %v3267
    %v3269 = vpop.f32.mrf.mxu0
    %3270 = vmatprep.mubr.f32.mxu0 0.0
    %3271 = vmatmul.mubr.f32.gmra.mxu0 %v3172
    %v3272 = vpop.f32.mrf.mxu0
    %v3273 = vadd.f32 %v3195, %v3272
    %v3274 = vpop.f32.mrf.mxu0
    %3275 = vmatprep.mubr.f32.mxu0 0.0
    %3276 = vmatmul.mubr.f32.gmra.mxu0 %v3173
    %v3277 = vpop.f32.mrf.mxu0
    %v3278 = vadd.f32 %v3195, %v3277
    %v3279 = vpop.f32.mrf.mxu0
    %3280 = vmatprep.mubr.f32.mxu0 0.0
    %3281 = vmatmul.mubr.f32.gmra.mxu0 %v3174
    %v3282 = vpop.f32.mrf.mxu0
    %v3283 = vadd.f32 %v3195, %v3282
    %v3284 = vpop.f32.mrf.mxu0
    %3285 = vmatprep.mubr.f32.mxu0 0.0
    %3286 = vmatmul.mubr.f32.gmra.mxu0 %v3175
    %v3287 = vpop.f32.mrf.mxu0
    %v3288 = vadd.f32 %v3195, %v3287
    %v3289 = vpop.f32.mrf.mxu0
    %3290 = vdwg.mxu0
    %v3291 = vadd.f32 %v26, %v3263
    %v3292 = vadd.f32 %v27, %v3268
    %v3293 = vadd.f32 %v28, %v3273
    %v3294 = vadd.f32 %v29, %v3278
    %v3295 = vadd.f32 %v30, %v3283
    %v3296 = vadd.f32 %v31, %v3288
    %v3297 = vlaneseq
    %v3298 = vshrl.u32 %v3297, 7
    %v3299 = vsub.s32 4, %v3298
    %v3300 = vrot.slane %v25, %v3299
    %v3301 = vmul.f32 %v3291, %v3300
    %v3302 = vmul.f32 %v3292, %v3300
    %v3303 = vmul.f32 %v3293, %v3300
    %v3304 = vmul.f32 %v3294, %v3300
    %v3305 = vmul.f32 %v3295, %v3300
    %v3306 = vmul.f32 %v3296, %v3300
    %v3307 = vlaneseq
    %v3308 = vshrl.u32 %v3307, 7
    %v3309 = vsub.s32 5, %v3308
    %v3310 = vrot.slane %v25, %v3309
    %v3311 = vadd.f32 %v3301, %v3310
    %v3312 = vadd.f32 %v3302, %v3310
    %v3313 = vadd.f32 %v3303, %v3310
    %v3314 = vadd.f32 %v3304, %v3310
    %v3315 = vadd.f32 %v3305, %v3310
    %v3316 = vadd.f32 %v3306, %v3310
    %3317 = vst.msk [vmem:[%s2] sm:$0xff] %vm160, %v3311
    %3318 = vst.msk [vmem:[%s2 + $0x8] sm:$0xff] %vm160, %v3312
    %3319 = vst.msk [vmem:[%s2 + $0x10] sm:$0xff] %vm160, %v3313
    %3320 = vst.msk [vmem:[%s2 + $0x18] sm:$0xff] %vm160, %v3314
    %3321 = vst.msk [vmem:[%s2 + $0x20] sm:$0xff] %vm160, %v3315
    %3322 = vst.msk [vmem:[%s2 + $0x28] sm:$0xff] %vm160, %v3316
    // Predicated region
    $region14: #{tpu_custom_call.1} parent=1 // pred_check
      _
    $region15: #{tpu_custom_call.1} parent=1 // pred_check_branch
      %3324 = sbr.rel (0) target = $region17
    $region16: #{tpu_custom_call.1} parent=1 // pred_region
      _
    $region17: #{tpu_custom_call.1} parent=1 // pred_fallthru
      _
    // Predicated region
    $region18: #{tpu_custom_call.1} parent=1 // pred_check
      _
    $region19: #{tpu_custom_call.1} parent=1 // pred_check_branch
      %3326 = sbr.rel (0) target = $region21
    $region20: #{tpu_custom_call.1} parent=1 // pred_region
      _
    $region21: #{tpu_custom_call.1} parent=1 // pred_fallthru
      _
    %3327 = vsyncpa [#allocation3], 1

</llo_original>
